<compile_context>
chip_gen: v6e
topology: v6e:2x2x1
jax: 0.10.0
libtpu: 0.0.40
codegen_flags: <defaults>
</compile_context>

<pallas_src>
import functools
import math

import jax
import jax.numpy as jnp
from jax.experimental import pallas as pl
from jax.experimental.pallas import tpu as pltpu


# ---------------------------------------------------------------------------
# small helpers (padding glue, plain JAX)
# ---------------------------------------------------------------------------
def _round_up(x, m):
    return (x + m - 1) // m * m


def _pad_to(arr, shape):
    pads = [(0, s - d) for d, s in zip(arr.shape, shape)]
    if all(p == (0, 0) for p in pads):
        return arr
    return jnp.pad(arr, pads)


def _pick_t_chunk(seq):
    """Time-chunk size: whole sequence if short, else a divisor-friendly 32-64."""
    if seq <= 64:
        return max(seq, 1)
    for cand in (64, 48, 32):
        if seq % cand == 0:
            return cand
    return 64


def _vmem_limit(need_bytes):
    # Computed footprint + headroom; floor keeps Mosaic internal scratch happy,
    # cap targets v5e/v6e (128 MiB physical).  v7x large-nhid needs weight
    # streaming (see TODO at top) before this matters.
    return int(min(100 * 1024 * 1024, max(32 * 1024 * 1024, need_bytes + (8 << 20))))


# ---------------------------------------------------------------------------
# LSTM layer kernel: grid over time-chunks
#   - once per chunk:   XW = X_chunk @ W_ih + b      (M = t_chunk*batch_p)
#   - per timestep:     gates = XW[t] + h @ W_hh     (M = batch_p, K = nhid_p)
# ---------------------------------------------------------------------------
def lstm_layer_kernel(x_ref, wih_ref, whh_ref, b_ref, h0_ref, c0_ref,
                      y_ref, hT_ref, cT_ref, xw_sc,
                      *, seq_len, t_chunk, nhid_p, batch_p):
    chunk = pl.program_id(0)

    @pl.when(chunk == 0)
    def _init():
        # hT/cT output blocks have constant index maps -> VMEM resident across
        # the whole time grid; they carry the running h / c state.
        hT_ref[...] = h0_ref[...]
        cT_ref[...] = c0_ref[...]

    # Chunk-level input projection (time-batched, MXU-friendly M).  Bias is
    # folded in here once per chunk.
    xw_sc[...] = (
        jnp.dot(x_ref[...], wih_ref[...], preferred_element_type=jnp.float32)
        + b_ref[...])

    w_hh = whh_ref[...]                      # (nhid_p, 4*nhid_p) bf16
    need_mask = (seq_len % t_chunk) != 0     # static

    def step(t, carry):
        h, c = carry                         # f32 carries
        row = pl.multiple_of(t * batch_p, 8)
        gates = xw_sc[pl.ds(row, batch_p), :] + jnp.dot(
            h.astype(jnp.bfloat16), w_hh, preferred_element_type=jnp.float32)
        # PyTorch gate order [i, f, g, o]; slices are 128-lane aligned
        i_g = jax.nn.sigmoid(gates[:, 0 * nhid_p:1 * nhid_p])
        f_g = jax.nn.sigmoid(gates[:, 1 * nhid_p:2 * nhid_p])
        g_g = jnp.tanh(gates[:, 2 * nhid_p:3 * nhid_p])
        o_g = jax.nn.sigmoid(gates[:, 3 * nhid_p:4 * nhid_p])
        c_new = f_g * c + i_g * g_g
        h_new = o_g * jnp.tanh(c_new)
        if need_mask:                        # only when seq % t_chunk != 0
            valid = (chunk * t_chunk + t) < seq_len
            c_new = jnp.where(valid, c_new, c)
            h_new = jnp.where(valid, h_new, h)
        y_ref[t] = h_new.astype(y_ref.dtype)   # full (batch_p, nhid_p) row store
        return h_new, c_new

    unroll = True if t_chunk <= 8 else 8     # partial unroll for big chunks
    h, c = jax.lax.fori_loop(0, t_chunk, step,
                             (hT_ref[...], cT_ref[...]), unroll=unroll)
    hT_ref[...] = h
    cT_ref[...] = c


def _lstm_vmem_bytes(t_chunk, batch_p, in_p, nhid_p):
    rows = t_chunk * batch_p
    need = rows * in_p * 2 * 2                      # x chunk (bf16), double-buffered
    need += in_p * 4 * nhid_p * 2                   # W_ih (bf16), single-buffered
    need += nhid_p * 4 * nhid_p * 2                 # W_hh (bf16), single-buffered
    need += 4 * nhid_p * 4                          # bias
    need += 2 * batch_p * nhid_p * 4 * 2            # h0, c0
    need += rows * nhid_p * 2 * 2                   # y chunk (bf16), double-buffered
    need += 2 * batch_p * nhid_p * 4 * 2            # hT, cT outputs
    need += rows * 4 * nhid_p * 4                   # xw scratch (f32)
    return need


def lstm_layer(x2d, w_ih, w_hh, b, h0, c0, *, seq_len, t_chunk, batch_p):
    """One LSTM layer.
    x2d: (seq_p*batch_p, in_p) bf16 (time-major, batch contiguous per step);
    w_ih: (in_p, 4*nhid_p) bf16; w_hh: (nhid_p, 4*nhid_p) bf16;
    b: (1, 4*nhid_p) f32; h0/c0: (batch_p, nhid_p) f32."""
    rows, in_p = x2d.shape
    nhid_p = w_hh.shape[0]
    seq_p = rows // batch_p
    assert seq_p % t_chunk == 0
    n_chunks = seq_p // t_chunk
    rows_per_chunk = t_chunk * batch_p

    kernel = functools.partial(
        lstm_layer_kernel, seq_len=seq_len, t_chunk=t_chunk,
        nhid_p=nhid_p, batch_p=batch_p)

    vmem_bytes = _vmem_limit(_lstm_vmem_bytes(t_chunk, batch_p, in_p, nhid_p))

    y, hT, cT = pl.pallas_call(
        kernel,
        out_shape=(
            jax.ShapeDtypeStruct((seq_p, batch_p, nhid_p), jnp.bfloat16),
            jax.ShapeDtypeStruct((batch_p, nhid_p), jnp.float32),
            jax.ShapeDtypeStruct((batch_p, nhid_p), jnp.float32),
        ),
        grid_spec=pltpu.PrefetchScalarGridSpec(
            num_scalar_prefetch=0,
            grid=(n_chunks,),
            in_specs=[
                pl.BlockSpec((rows_per_chunk, in_p), lambda c: (c, 0)),
                # constant index maps + single-buffered: weights/bias stay
                # VMEM-resident once, not double-buffered.
                pl.BlockSpec((in_p, 4 * nhid_p), lambda c: (0, 0),
                             pipeline_mode=pl.Buffered(1)),
                pl.BlockSpec((nhid_p, 4 * nhid_p), lambda c: (0, 0),
                             pipeline_mode=pl.Buffered(1)),
                pl.BlockSpec((1, 4 * nhid_p), lambda c: (0, 0),
                             pipeline_mode=pl.Buffered(1)),
                pl.BlockSpec((batch_p, nhid_p), lambda c: (0, 0)),
                pl.BlockSpec((batch_p, nhid_p), lambda c: (0, 0)),
            ],
            out_specs=[
                pl.BlockSpec((t_chunk, batch_p, nhid_p), lambda c: (c, 0, 0)),
                # constant block index => VMEM-resident h / c carries, written
                # back to HBM once at the end of the grid.
                pl.BlockSpec((batch_p, nhid_p), lambda c: (0, 0)),
                pl.BlockSpec((batch_p, nhid_p), lambda c: (0, 0)),
            ],
            scratch_shapes=[
                pltpu.VMEM((rows_per_chunk, 4 * nhid_p), jnp.float32)],
        ),
        compiler_params=pltpu.CompilerParams(
            dimension_semantics=("arbitrary",),
            vmem_limit_bytes=vmem_bytes),
    )(x2d, w_ih, w_hh, b, h0, c0)
    return y, hT, cT


# ---------------------------------------------------------------------------
# Decoder (tiled linear) kernel — bf16 activations/weights, f32 accumulate
# ---------------------------------------------------------------------------
def linear_kernel(x_ref, w_ref, b_ref, o_ref):
    o_ref[...] = (
        jnp.dot(x_ref[...], w_ref[...], preferred_element_type=jnp.float32)
        + b_ref[...])


def linear(x2d, w_t, b):
    """x2d: (rows, K_p) bf16, w_t: (K_p, out_p) bf16, b: (1, out_p) f32."""
    rows, k_p = x2d.shape
    out_p = w_t.shape[1]

    if rows <= 512:
        tm, rows_p = rows, rows              # full-extent block (always legal)
    else:
        tm = 512                             # big row tile: halves weight re-reads
        rows_p = _round_up(rows, tm)
    x2d = _pad_to(x2d, (rows_p, k_p))

    if out_p <= 1024:
        tn = out_p
    elif out_p % 1024 == 0:
        tn = 1024
    else:
        tn = 512                             # out_p is a multiple of 512 by construction
    assert rows_p % tm == 0 and out_p % tn == 0

    need = (tm * k_p * 2 * 2 + k_p * tn * 2 * 2 + tn * 4 * 2 + tm * tn * 4 * 2)
    return pl.pallas_call(
        linear_kernel,
        out_shape=jax.ShapeDtypeStruct((rows_p, out_p), jnp.float32),
        grid_spec=pltpu.PrefetchScalarGridSpec(
            num_scalar_prefetch=0,
            grid=(rows_p // tm, out_p // tn),
            in_specs=[
                pl.BlockSpec((tm, k_p), lambda i, j: (i, 0)),
                pl.BlockSpec((k_p, tn), lambda i, j: (0, j)),
                pl.BlockSpec((1, tn), lambda i, j: (0, j)),
            ],
            out_specs=pl.BlockSpec((tm, tn), lambda i, j: (i, j)),
        ),
        compiler_params=pltpu.CompilerParams(
            dimension_semantics=("parallel", "parallel"),
            vmem_limit_bytes=_vmem_limit(need)),
    )(x2d, w_t, b)


# ---------------------------------------------------------------------------
# Full RNNModel forward (LSTM, attention=False)
# ---------------------------------------------------------------------------
@jax.jit
def rnn_model_forward(tokens, hidden, params):
    """tokens: (seq, batch) int32; hidden: (h0, c0) each (nlayers, batch, nhid)."""
    h0_all, c0_all = hidden
    nlayers, batch, nhid = h0_all.shape
    seq = tokens.shape[0]

    enc_w = params["enc_w_p"]
    ntoken = enc_w.shape[0]
    ninp_p = enc_w.shape[1]
    nhid_p = params["lstm"][0]["w_hh"].shape[0]

    batch_p = _round_up(batch, 8)
    t_chunk = _pick_t_chunk(seq)
    seq_p = _round_up(seq, t_chunk)

    # encoder: embedding gather (drop_input = identity in eval mode); cast to
    # bf16 here since it is only ever consumed as a bf16 matmul LHS.
    emb = enc_w[tokens].astype(jnp.bfloat16)               # (seq, batch, ninp_p)
    x3d = _pad_to(emb, (seq_p, batch_p, ninp_p))
    x2d = x3d.reshape(seq_p * batch_p, ninp_p)             # free (contiguous)

    # multi-layer LSTM (inter-layer dropout = identity in eval mode)
    h_finals, c_finals = [], []
    last_y = None
    for layer, lw in enumerate(params["lstm"]):
        h0_l = _pad_to(h0_all[layer], (batch_p, nhid_p))
        c0_l = _pad_to(c0_all[layer], (batch_p, nhid_p))
        y, hT, cT = lstm_layer(x2d, lw["w_ih"], lw["w_hh"], lw["b"], h0_l, c0_l,
                               seq_len=seq, t_chunk=t_chunk, batch_p=batch_p)
        h_finals.append(hT[:batch, :nhid])
        c_finals.append(cT[:batch, :nhid])
        x2d = y.reshape(seq_p * batch_p, nhid_p)           # bf16, free reshape
        last_y = y
    h_n = jnp.stack(h_finals, axis=0)
    c_n = jnp.stack(c_finals, axis=0)

    # decoder (drop_decoder = identity in eval mode): drop batch/seq padding
    # BEFORE flattening so decoder work scales with the real batch.
    flat = last_y[:seq, :batch].reshape(seq * batch, nhid_p)   # bf16
    decoded_p = linear(flat, params["dec_w_t"], params["dec_b"])
    decoded = decoded_p[:seq * batch, :ntoken].reshape(seq, batch, ntoken)
    return decoded, (h_n, c_n)


# ---------------------------------------------------------------------------
# Parameter construction (mirrors module __init__), padded/fused for kernels
# ---------------------------------------------------------------------------
def init_params(key, ntoken, ninp, nhid, nlayers):
    initrange = 0.1
    keys = jax.random.split(key, 2 + 4 * nlayers)
    ki = iter(keys)

    ninp_p = _round_up(ninp, 128)
    nhid_p = _round_up(nhid, 128)
    ntoken_p = _round_up(ntoken, 128) if ntoken <= 512 else _round_up(ntoken, 512)

    params = {}

    # nn.Embedding(ntoken, ninp), uniform(-0.1, 0.1); zero-pad feature dim
    enc_w = jax.random.uniform(next(ki), (ntoken, ninp), jnp.float32,
                               -initrange, initrange)
    params["enc_w_p"] = _pad_to(enc_w, (ntoken, ninp_p))

    # nn.LSTM(ninp, nhid, nlayers): PyTorch init uniform(+-1/sqrt(nhid)).
    # Weights are per-gate zero-padded to 128-lane boundaries, transposed to
    # (K, 4*nhid_p) and stored as separate W_ih / W_hh bf16 matrices; biases
    # pre-summed (applied once per time chunk).
    stdv = 1.0 / math.sqrt(nhid)
    lstm_layers = []
    for layer in range(nlayers):
        in_dim = ninp if layer == 0 else nhid
        in_p = ninp_p if layer == 0 else nhid_p
        w_ih = jax.random.uniform(next(ki), (4 * nhid, in_dim), jnp.float32, -stdv, stdv)
        w_hh = jax.random.uniform(next(ki), (4 * nhid, nhid), jnp.float32, -stdv, stdv)
        b_ih = jax.random.uniform(next(ki), (4 * nhid,), jnp.float32, -stdv, stdv)
        b_hh = jax.random.uniform(next(ki), (4 * nhid,), jnp.float32, -stdv, stdv)

        w_ih_p = _pad_to(w_ih.reshape(4, nhid, in_dim), (4, nhid_p, in_p))
        w_hh_p = _pad_to(w_hh.reshape(4, nhid, nhid), (4, nhid_p, nhid_p))
        w_ih_t = w_ih_p.transpose(2, 0, 1).reshape(in_p, 4 * nhid_p).astype(jnp.bfloat16)
        w_hh_t = w_hh_p.transpose(2, 0, 1).reshape(nhid_p, 4 * nhid_p).astype(jnp.bfloat16)

        b = _pad_to((b_ih + b_hh).reshape(4, nhid), (4, nhid_p))
        b = b.reshape(1, 4 * nhid_p).astype(jnp.float32)
        lstm_layers.append({"w_ih": w_ih_t, "w_hh": w_hh_t, "b": b})
    params["lstm"] = lstm_layers

    # nn.Linear(nhid, ntoken): weight uniform(-0.1, 0.1), bias zero
    dec_w = jax.random.uniform(next(ki), (ntoken, nhid), jnp.float32,
                               -initrange, initrange)
    params["dec_w_t"] = _pad_to(dec_w.T, (nhid_p, ntoken_p)).astype(jnp.bfloat16)
    params["dec_b"] = jnp.zeros((1, ntoken_p), jnp.float32)
    return params


if __name__ == "__main__":
    # small shapes consistent with the module
    ntoken, ninp, nhid, nlayers = 64, 32, 32, 2
    seq_len, batch = 8, 2

    root = jax.random.PRNGKey(0)
    k_params, k_tokens = jax.random.split(root)
    params = init_params(k_params, ntoken, ninp, nhid, nlayers)

    tokens = jax.random.randint(k_tokens, (seq_len, batch), 0, ntoken,
                                dtype=jnp.int32)
    # init_hidden(bsz) for LSTM -> (h0, c0), each (nlayers, batch, nhid) zeros
    h0 = jnp.zeros((nlayers, batch, nhid), jnp.float32)
    c0 = jnp.zeros((nlayers, batch, nhid), jnp.float32)

    decoded, (h_n, c_n) = rnn_model_forward(tokens, (h0, c0), params)
    jax.block_until_ready((decoded, h_n, c_n))

    assert decoded.shape == (seq_len, batch, ntoken)
    assert h_n.shape == (nlayers, batch, nhid)
    assert c_n.shape == (nlayers, batch, nhid)
    print("KERNEL_OK")
</pallas_src>

<mosaic_0001>
module attributes {stable_mosaic.version = 11 : i64} {
  func.func @linear_kernel(%arg0: i32, %arg1: i32, %arg2: memref<16x128xbf16, #tpu.memory_space<vmem>>, %arg3: memref<128x128xbf16, #tpu.memory_space<vmem>>, %arg4: memref<1x128xf32, #tpu.memory_space<vmem>>, %arg5: memref<16x128xf32, #tpu.memory_space<vmem>>) attributes {dimension_semantics = [#tpu.dimension_semantics<parallel>, #tpu.dimension_semantics<parallel>], iteration_bounds = array<i64: 1, 1>, scalar_prefetch = 0 : i64, scratch_operands = 0 : i64, tpu.core_type = #tpu.core_type<tc>, window_params = [{transform_indices = @transform_0, window_bounds = array<i64: 16, 128>}, {transform_indices = @transform_1, window_bounds = array<i64: 128, 128>}, {transform_indices = @transform_2, window_bounds = array<i64: 1, 128>}, {transform_indices = @transform_3, window_bounds = array<i64: 16, 128>}]} {
    %c0 = arith.constant 0 : index
    %c0_0 = arith.constant 0 : index
    %0 = vector.load %arg2[%c0, %c0_0] : memref<16x128xbf16, #tpu.memory_space<vmem>>, vector<16x128xbf16>
    %c0_1 = arith.constant 0 : index
    %c0_2 = arith.constant 0 : index
    %1 = vector.load %arg3[%c0_1, %c0_2] : memref<128x128xbf16, #tpu.memory_space<vmem>>, vector<128x128xbf16>
    %cst = arith.constant dense<0.000000e+00> : vector<16x128xf32>
    %2 = tpu.matmul %0, %1, %cst {dimension_numbers = #tpu.dot_dimension_numbers<[1], [0], [0], [1], [0, 0, 1, 1], [], []>} : vector<16x128xbf16>, vector<128x128xbf16>, vector<16x128xf32> -> vector<16x128xf32>
    %c0_3 = arith.constant 0 : index
    %c0_4 = arith.constant 0 : index
    %3 = vector.load %arg4[%c0_3, %c0_4] : memref<1x128xf32, #tpu.memory_space<vmem>>, vector<1x128xf32>
    %4 = vector.broadcast %3 : vector<1x128xf32> to vector<16x128xf32>
    %5 = arith.addf %2, %4 : vector<16x128xf32>
    %c0_5 = arith.constant 0 : index
    %c0_6 = arith.constant 0 : index
    %6 = vector.load %arg5[%c0_5, %c0_6] : memref<16x128xf32, #tpu.memory_space<vmem>>, vector<16x128xf32>
    tpu.vector_store %arg5[%c0_5, %c0_6], %5 {strides = array<i32>} : memref<16x128xf32, #tpu.memory_space<vmem>>, vector<16x128xf32>,
    return
  }
  func.func @transform_0(%arg0: i32, %arg1: i32) -> (i32, i32) {
    %c0_i32 = arith.constant 0 : i32
    %c0_i32_0 = arith.constant 0 : i32
    return %arg0, %c0_i32 : i32, i32
  }
  func.func @transform_1(%arg0: i32, %arg1: i32) -> (i32, i32) {
    %c0_i32 = arith.constant 0 : i32
    %c0_i32_0 = arith.constant 0 : i32
    return %c0_i32, %arg1 : i32, i32
  }
  func.func @transform_2(%arg0: i32, %arg1: i32) -> (i32, i32) {
    %c0_i32 = arith.constant 0 : i32
    %c0_i32_0 = arith.constant 0 : i32
    return %c0_i32, %arg1 : i32, i32
  }
  func.func @transform_3(%arg0: i32, %arg1: i32) -> (i32, i32) {
    %c0_i32 = arith.constant 0 : i32
    return %arg0, %arg1 : i32, i32
  }
}

module attributes {stable_mosaic.version = 11 : i64} {
  func.func @lstm_layer_kernel(%arg0: i32, %arg1: memref<64x128xbf16, #tpu.memory_space<vmem>>, %arg2: memref<128x512xbf16, #tpu.memory_space<vmem>>, %arg3: memref<128x512xbf16, #tpu.memory_space<vmem>>, %arg4: memref<1x512xf32, #tpu.memory_space<vmem>>, %arg5: memref<8x128xf32, #tpu.memory_space<vmem>>, %arg6: memref<8x128xf32, #tpu.memory_space<vmem>>, %arg7: memref<8x8x128xbf16, #tpu.memory_space<vmem>>, %arg8: memref<8x128xf32, #tpu.memory_space<vmem>>, %arg9: memref<8x128xf32, #tpu.memory_space<vmem>>, %arg10: memref<64x512xf32, #tpu.memory_space<vmem>>) attributes {dimension_semantics = [#tpu.dimension_semantics<arbitrary>], iteration_bounds = array<i64: 1>, scalar_prefetch = 0 : i64, scratch_operands = 1 : i64, tpu.core_type = #tpu.core_type<tc>, window_params = [{transform_indices = @transform_0, window_bounds = array<i64: 64, 128>}, {pipeline_mode = #tpu.pipeline_mode<synchronous>, transform_indices = @transform_1, window_bounds = array<i64: 128, 512>}, {pipeline_mode = #tpu.pipeline_mode<synchronous>, transform_indices = @transform_2, window_bounds = array<i64: 128, 512>}, {pipeline_mode = #tpu.pipeline_mode<synchronous>, transform_indices = @transform_3, window_bounds = array<i64: 1, 512>}, {pipeline_mode = #tpu.pipeline_mode<synchronous>, transform_indices = @transform_4, window_bounds = array<i64: 8, 128>}, {pipeline_mode = #tpu.pipeline_mode<synchronous>, transform_indices = @transform_5, window_bounds = array<i64: 8, 128>}, {transform_indices = @transform_6, window_bounds = array<i64: 8, 8, 128>}, {pipeline_mode = #tpu.pipeline_mode<synchronous>, transform_indices = @transform_7, window_bounds = array<i64: 8, 128>}, {pipeline_mode = #tpu.pipeline_mode<synchronous>, transform_indices = @transform_8, window_bounds = array<i64: 8, 128>}]} {
    %c0_i32 = arith.constant 0 : i32
    %0 = arith.cmpi eq, %arg0, %c0_i32 : i32
    %1 = arith.extui %0 : i1 to i32
    %c0_i32_0 = arith.constant 0 : i32
    %2 = arith.cmpi ne, %1, %c0_i32_0 : i32
    scf.if %2 {
      %c0_83 = arith.constant 0 : index
      %c0_84 = arith.constant 0 : index
      %311 = vector.load %arg5[%c0_83, %c0_84] : memref<8x128xf32, #tpu.memory_space<vmem>>, vector<8x128xf32>
      %c0_85 = arith.constant 0 : index
      %c0_86 = arith.constant 0 : index
      %312 = vector.load %arg8[%c0_85, %c0_86] : memref<8x128xf32, #tpu.memory_space<vmem>>, vector<8x128xf32>
      tpu.vector_store %arg8[%c0_85, %c0_86], %311 {strides = array<i32>} : memref<8x128xf32, #tpu.memory_space<vmem>>, vector<8x128xf32>,
      %c0_87 = arith.constant 0 : index
      %c0_88 = arith.constant 0 : index
      %313 = vector.load %arg6[%c0_87, %c0_88] : memref<8x128xf32, #tpu.memory_space<vmem>>, vector<8x128xf32>
      %c0_89 = arith.constant 0 : index
      %c0_90 = arith.constant 0 : index
      %314 = vector.load %arg9[%c0_89, %c0_90] : memref<8x128xf32, #tpu.memory_space<vmem>>, vector<8x128xf32>
      tpu.vector_store %arg9[%c0_89, %c0_90], %313 {strides = array<i32>} : memref<8x128xf32, #tpu.memory_space<vmem>>, vector<8x128xf32>,
    } else {
    }
    %c0 = arith.constant 0 : index
    %c0_1 = arith.constant 0 : index
    %3 = vector.load %arg1[%c0, %c0_1] : memref<64x128xbf16, #tpu.memory_space<vmem>>, vector<64x128xbf16>
    %c0_2 = arith.constant 0 : index
    %c0_3 = arith.constant 0 : index
    %4 = vector.load %arg2[%c0_2, %c0_3] : memref<128x512xbf16, #tpu.memory_space<vmem>>, vector<128x512xbf16>
    %cst = arith.constant dense<0.000000e+00> : vector<64x512xf32>
    %5 = tpu.matmul %3, %4, %cst {dimension_numbers = #tpu.dot_dimension_numbers<[1], [0], [0], [1], [0, 0, 1, 1], [], []>} : vector<64x128xbf16>, vector<128x512xbf16>, vector<64x512xf32> -> vector<64x512xf32>
    %c0_4 = arith.constant 0 : index
    %c0_5 = arith.constant 0 : index
    %6 = vector.load %arg4[%c0_4, %c0_5] : memref<1x512xf32, #tpu.memory_space<vmem>>, vector<1x512xf32>
    %7 = vector.broadcast %6 : vector<1x512xf32> to vector<64x512xf32>
    %8 = arith.addf %5, %7 : vector<64x512xf32>
    %c0_6 = arith.constant 0 : index
    %c0_7 = arith.constant 0 : index
    %9 = vector.load %arg10[%c0_6, %c0_7] : memref<64x512xf32, #tpu.memory_space<vmem>>, vector<64x512xf32>
    tpu.vector_store %arg10[%c0_6, %c0_7], %8 {strides = array<i32>} : memref<64x512xf32, #tpu.memory_space<vmem>>, vector<64x512xf32>,
    %c0_8 = arith.constant 0 : index
    %c0_9 = arith.constant 0 : index
    %10 = vector.load %arg3[%c0_8, %c0_9] : memref<128x512xbf16, #tpu.memory_space<vmem>>, vector<128x512xbf16>
    %c0_10 = arith.constant 0 : index
    %c0_11 = arith.constant 0 : index
    %11 = vector.load %arg8[%c0_10, %c0_11] : memref<8x128xf32, #tpu.memory_space<vmem>>, vector<8x128xf32>
    %c0_12 = arith.constant 0 : index
    %c0_13 = arith.constant 0 : index
    %12 = vector.load %arg9[%c0_12, %c0_13] : memref<8x128xf32, #tpu.memory_space<vmem>>, vector<8x128xf32>
    %c0_i32_14 = arith.constant 0 : i32
    %c8_i32 = arith.constant 8 : i32
    %13 = arith.muli %c0_i32_14, %c8_i32 : i32
    %14 = tpu.assume_multiple %13, 8 : i32
    %15 = arith.index_cast %14 : i32 to index
    %c0_15 = arith.constant 0 : index
    %16 = vector.load %arg10[%15, %c0_15] : memref<64x512xf32, #tpu.memory_space<vmem>>, vector<8x512xf32>
    %17 = arith.truncf %11 : vector<8x128xf32> to vector<8x128xbf16>
    %cst_16 = arith.constant dense<0.000000e+00> : vector<8x512xf32>
    %18 = tpu.matmul %17, %10, %cst_16 {dimension_numbers = #tpu.dot_dimension_numbers<[1], [0], [0], [1], [0, 0, 1, 1], [], []>} : vector<8x128xbf16>, vector<128x512xbf16>, vector<8x512xf32> -> vector<8x512xf32>
    %19 = arith.addf %16, %18 : vector<8x512xf32>
    %20 = vector.extract_strided_slice %19 {offsets = [0, 0], sizes = [8, 128], strides = [1, 1]} : vector<8x512xf32> to vector<8x128xf32>
    %21 = arith.negf %20 : vector<8x128xf32>
    %22 = math.exp %21 : vector<8x128xf32>
    %cst_17 = arith.constant 1.000000e+00 : f32
    %23 = vector.broadcast %cst_17 : f32 to vector<8x128xf32>
    %24 = arith.addf %23, %22 : vector<8x128xf32>
    %25 = arith.divf %23, %24 : vector<8x128xf32>
    %26 = vector.extract_strided_slice %19 {offsets = [0, 128], sizes = [8, 128], strides = [1, 1]} : vector<8x512xf32> to vector<8x128xf32>
    %27 = arith.negf %26 : vector<8x128xf32>
    %28 = math.exp %27 : vector<8x128xf32>
    %cst_18 = arith.constant 1.000000e+00 : f32
    %29 = vector.broadcast %cst_18 : f32 to vector<8x128xf32>
    %30 = arith.addf %29, %28 : vector<8x128xf32>
    %31 = arith.divf %29, %30 : vector<8x128xf32>
    %32 = vector.extract_strided_slice %19 {offsets = [0, 256], sizes = [8, 128], strides = [1, 1]} : vector<8x512xf32> to vector<8x128xf32>
    %33 = math.tanh %32 : vector<8x128xf32>
    %34 = vector.extract_strided_slice %19 {offsets = [0, 384], sizes = [8, 128], strides = [1, 1]} : vector<8x512xf32> to vector<8x128xf32>
    %35 = arith.negf %34 : vector<8x128xf32>
    %36 = math.exp %35 : vector<8x128xf32>
    %cst_19 = arith.constant 1.000000e+00 : f32
    %37 = vector.broadcast %cst_19 : f32 to vector<8x128xf32>
    %38 = arith.addf %37, %36 : vector<8x128xf32>
    %39 = arith.divf %37, %38 : vector<8x128xf32>
    %40 = arith.mulf %31, %12 : vector<8x128xf32>
    %41 = arith.mulf %25, %33 : vector<8x128xf32>
    %42 = arith.addf %40, %41 : vector<8x128xf32>
    %43 = math.tanh %42 : vector<8x128xf32>
    %44 = arith.mulf %39, %43 : vector<8x128xf32>
    %45 = arith.truncf %44 : vector<8x128xf32> to vector<8x128xbf16>
    %46 = arith.index_cast %c0_i32_14 : i32 to index
    %c0_20 = arith.constant 0 : index
    %c0_21 = arith.constant 0 : index
    %47 = vector.load %arg7[%46, %c0_20, %c0_21] : memref<8x8x128xbf16, #tpu.memory_space<vmem>>, vector<1x8x128xbf16>
    %48 = vector.shape_cast %47 : vector<1x8x128xbf16> to vector<8x128xbf16>
    %49 = vector.shape_cast %45 : vector<8x128xbf16> to vector<1x8x128xbf16>
    tpu.vector_store %arg7[%46, %c0_20, %c0_21], %49 {strides = array<i32>} : memref<8x8x128xbf16, #tpu.memory_space<vmem>>, vector<1x8x128xbf16>,
    %c1_i32 = arith.constant 1 : i32
    %c8_i32_22 = arith.constant 8 : i32
    %50 = arith.muli %c1_i32, %c8_i32_22 : i32
    %51 = tpu.assume_multiple %50, 8 : i32
    %52 = arith.index_cast %51 : i32 to index
    %c0_23 = arith.constant 0 : index
    %53 = vector.load %arg10[%52, %c0_23] : memref<64x512xf32, #tpu.memory_space<vmem>>, vector<8x512xf32>
    %54 = arith.truncf %44 : vector<8x128xf32> to vector<8x128xbf16>
    %cst_24 = arith.constant dense<0.000000e+00> : vector<8x512xf32>
    %55 = tpu.matmul %54, %10, %cst_24 {dimension_numbers = #tpu.dot_dimension_numbers<[1], [0], [0], [1], [0, 0, 1, 1], [], []>} : vector<8x128xbf16>, vector<128x512xbf16>, vector<8x512xf32> -> vector<8x512xf32>
    %56 = arith.addf %53, %55 : vector<8x512xf32>
    %57 = vector.extract_strided_slice %56 {offsets = [0, 0], sizes = [8, 128], strides = [1, 1]} : vector<8x512xf32> to vector<8x128xf32>
    %58 = arith.negf %57 : vector<8x128xf32>
    %59 = math.exp %58 : vector<8x128xf32>
    %cst_25 = arith.constant 1.000000e+00 : f32
    %60 = vector.broadcast %cst_25 : f32 to vector<8x128xf32>
    %61 = arith.addf %60, %59 : vector<8x128xf32>
    %62 = arith.divf %60, %61 : vector<8x128xf32>
    %63 = vector.extract_strided_slice %56 {offsets = [0, 128], sizes = [8, 128], strides = [1, 1]} : vector<8x512xf32> to vector<8x128xf32>
    %64 = arith.negf %63 : vector<8x128xf32>
    %65 = math.exp %64 : vector<8x128xf32>
    %cst_26 = arith.constant 1.000000e+00 : f32
    %66 = vector.broadcast %cst_26 : f32 to vector<8x128xf32>
    %67 = arith.addf %66, %65 : vector<8x128xf32>
    %68 = arith.divf %66, %67 : vector<8x128xf32>
    %69 = vector.extract_strided_slice %56 {offsets = [0, 256], sizes = [8, 128], strides = [1, 1]} : vector<8x512xf32> to vector<8x128xf32>
    %70 = math.tanh %69 : vector<8x128xf32>
    %71 = vector.extract_strided_slice %56 {offsets = [0, 384], sizes = [8, 128], strides = [1, 1]} : vector<8x512xf32> to vector<8x128xf32>
    %72 = arith.negf %71 : vector<8x128xf32>
    %73 = math.exp %72 : vector<8x128xf32>
    %cst_27 = arith.constant 1.000000e+00 : f32
    %74 = vector.broadcast %cst_27 : f32 to vector<8x128xf32>
    %75 = arith.addf %74, %73 : vector<8x128xf32>
    %76 = arith.divf %74, %75 : vector<8x128xf32>
    %77 = arith.mulf %68, %42 : vector<8x128xf32>
    %78 = arith.mulf %62, %70 : vector<8x128xf32>
    %79 = arith.addf %77, %78 : vector<8x128xf32>
    %80 = math.tanh %79 : vector<8x128xf32>
    %81 = arith.mulf %76, %80 : vector<8x128xf32>
    %82 = arith.truncf %81 : vector<8x128xf32> to vector<8x128xbf16>
    %83 = arith.index_cast %c1_i32 : i32 to index
    %c0_28 = arith.constant 0 : index
    %c0_29 = arith.constant 0 : index
    %84 = vector.load %arg7[%83, %c0_28, %c0_29] : memref<8x8x128xbf16, #tpu.memory_space<vmem>>, vector<1x8x128xbf16>
    %85 = vector.shape_cast %84 : vector<1x8x128xbf16> to vector<8x128xbf16>
    %86 = vector.shape_cast %82 : vector<8x128xbf16> to vector<1x8x128xbf16>
    tpu.vector_store %arg7[%83, %c0_28, %c0_29], %86 {strides = array<i32>} : memref<8x8x128xbf16, #tpu.memory_space<vmem>>, vector<1x8x128xbf16>,
    %c2_i32 = arith.constant 2 : i32
    %c8_i32_30 = arith.constant 8 : i32
    %87 = arith.muli %c2_i32, %c8_i32_30 : i32
    %88 = tpu.assume_multiple %87, 8 : i32
    %89 = arith.index_cast %88 : i32 to index
    %c0_31 = arith.constant 0 : index
    %90 = vector.load %arg10[%89, %c0_31] : memref<64x512xf32, #tpu.memory_space<vmem>>, vector<8x512xf32>
    %91 = arith.truncf %81 : vector<8x128xf32> to vector<8x128xbf16>
    %cst_32 = arith.constant dense<0.000000e+00> : vector<8x512xf32>
    %92 = tpu.matmul %91, %10, %cst_32 {dimension_numbers = #tpu.dot_dimension_numbers<[1], [0], [0], [1], [0, 0, 1, 1], [], []>} : vector<8x128xbf16>, vector<128x512xbf16>, vector<8x512xf32> -> vector<8x512xf32>
    %93 = arith.addf %90, %92 : vector<8x512xf32>
    %94 = vector.extract_strided_slice %93 {offsets = [0, 0], sizes = [8, 128], strides = [1, 1]} : vector<8x512xf32> to vector<8x128xf32>
    %95 = arith.negf %94 : vector<8x128xf32>
    %96 = math.exp %95 : vector<8x128xf32>
    %cst_33 = arith.constant 1.000000e+00 : f32
    %97 = vector.broadcast %cst_33 : f32 to vector<8x128xf32>
    %98 = arith.addf %97, %96 : vector<8x128xf32>
    %99 = arith.divf %97, %98 : vector<8x128xf32>
    %100 = vector.extract_strided_slice %93 {offsets = [0, 128], sizes = [8, 128], strides = [1, 1]} : vector<8x512xf32> to vector<8x128xf32>
    %101 = arith.negf %100 : vector<8x128xf32>
    %102 = math.exp %101 : vector<8x128xf32>
    %cst_34 = arith.constant 1.000000e+00 : f32
    %103 = vector.broadcast %cst_34 : f32 to vector<8x128xf32>
    %104 = arith.addf %103, %102 : vector<8x128xf32>
    %105 = arith.divf %103, %104 : vector<8x128xf32>
    %106 = vector.extract_strided_slice %93 {offsets = [0, 256], sizes = [8, 128], strides = [1, 1]} : vector<8x512xf32> to vector<8x128xf32>
    %107 = math.tanh %106 : vector<8x128xf32>
    %108 = vector.extract_strided_slice %93 {offsets = [0, 384], sizes = [8, 128], strides = [1, 1]} : vector<8x512xf32> to vector<8x128xf32>
    %109 = arith.negf %108 : vector<8x128xf32>
    %110 = math.exp %109 : vector<8x128xf32>
    %cst_35 = arith.constant 1.000000e+00 : f32
    %111 = vector.broadcast %cst_35 : f32 to vector<8x128xf32>
    %112 = arith.addf %111, %110 : vector<8x128xf32>
    %113 = arith.divf %111, %112 : vector<8x128xf32>
    %114 = arith.mulf %105, %79 : vector<8x128xf32>
    %115 = arith.mulf %99, %107 : vector<8x128xf32>
    %116 = arith.addf %114, %115 : vector<8x128xf32>
    %117 = math.tanh %116 : vector<8x128xf32>
    %118 = arith.mulf %113, %117 : vector<8x128xf32>
    %119 = arith.truncf %118 : vector<8x128xf32> to vector<8x128xbf16>
    %120 = arith.index_cast %c2_i32 : i32 to index
    %c0_36 = arith.constant 0 : index
    %c0_37 = arith.constant 0 : index
    %121 = vector.load %arg7[%120, %c0_36, %c0_37] : memref<8x8x128xbf16, #tpu.memory_space<vmem>>, vector<1x8x128xbf16>
    %122 = vector.shape_cast %121 : vector<1x8x128xbf16> to vector<8x128xbf16>
    %123 = vector.shape_cast %119 : vector<8x128xbf16> to vector<1x8x128xbf16>
    tpu.vector_store %arg7[%120, %c0_36, %c0_37], %123 {strides = array<i32>} : memref<8x8x128xbf16, #tpu.memory_space<vmem>>, vector<1x8x128xbf16>,
    %c3_i32 = arith.constant 3 : i32
    %c8_i32_38 = arith.constant 8 : i32
    %124 = arith.muli %c3_i32, %c8_i32_38 : i32
    %125 = tpu.assume_multiple %124, 8 : i32
    %126 = arith.index_cast %125 : i32 to index
    %c0_39 = arith.constant 0 : index
    %127 = vector.load %arg10[%126, %c0_39] : memref<64x512xf32, #tpu.memory_space<vmem>>, vector<8x512xf32>
    %128 = arith.truncf %118 : vector<8x128xf32> to vector<8x128xbf16>
    %cst_40 = arith.constant dense<0.000000e+00> : vector<8x512xf32>
    %129 = tpu.matmul %128, %10, %cst_40 {dimension_numbers = #tpu.dot_dimension_numbers<[1], [0], [0], [1], [0, 0, 1, 1], [], []>} : vector<8x128xbf16>, vector<128x512xbf16>, vector<8x512xf32> -> vector<8x512xf32>
    %130 = arith.addf %127, %129 : vector<8x512xf32>
    %131 = vector.extract_strided_slice %130 {offsets = [0, 0], sizes = [8, 128], strides = [1, 1]} : vector<8x512xf32> to vector<8x128xf32>
    %132 = arith.negf %131 : vector<8x128xf32>
    %133 = math.exp %132 : vector<8x128xf32>
    %cst_41 = arith.constant 1.000000e+00 : f32
    %134 = vector.broadcast %cst_41 : f32 to vector<8x128xf32>
    %135 = arith.addf %134, %133 : vector<8x128xf32>
    %136 = arith.divf %134, %135 : vector<8x128xf32>
    %137 = vector.extract_strided_slice %130 {offsets = [0, 128], sizes = [8, 128], strides = [1, 1]} : vector<8x512xf32> to vector<8x128xf32>
    %138 = arith.negf %137 : vector<8x128xf32>
    %139 = math.exp %138 : vector<8x128xf32>
    %cst_42 = arith.constant 1.000000e+00 : f32
    %140 = vector.broadcast %cst_42 : f32 to vector<8x128xf32>
    %141 = arith.addf %140, %139 : vector<8x128xf32>
    %142 = arith.divf %140, %141 : vector<8x128xf32>
    %143 = vector.extract_strided_slice %130 {offsets = [0, 256], sizes = [8, 128], strides = [1, 1]} : vector<8x512xf32> to vector<8x128xf32>
    %144 = math.tanh %143 : vector<8x128xf32>
    %145 = vector.extract_strided_slice %130 {offsets = [0, 384], sizes = [8, 128], strides = [1, 1]} : vector<8x512xf32> to vector<8x128xf32>
    %146 = arith.negf %145 : vector<8x128xf32>
    %147 = math.exp %146 : vector<8x128xf32>
    %cst_43 = arith.constant 1.000000e+00 : f32
    %148 = vector.broadcast %cst_43 : f32 to vector<8x128xf32>
    %149 = arith.addf %148, %147 : vector<8x128xf32>
    %150 = arith.divf %148, %149 : vector<8x128xf32>
    %151 = arith.mulf %142, %116 : vector<8x128xf32>
    %152 = arith.mulf %136, %144 : vector<8x128xf32>
    %153 = arith.addf %151, %152 : vector<8x128xf32>
    %154 = math.tanh %153 : vector<8x128xf32>
    %155 = arith.mulf %150, %154 : vector<8x128xf32>
    %156 = arith.truncf %155 : vector<8x128xf32> to vector<8x128xbf16>
    %157 = arith.index_cast %c3_i32 : i32 to index
    %c0_44 = arith.constant 0 : index
    %c0_45 = arith.constant 0 : index
    %158 = vector.load %arg7[%157, %c0_44, %c0_45] : memref<8x8x128xbf16, #tpu.memory_space<vmem>>, vector<1x8x128xbf16>
    %159 = vector.shape_cast %158 : vector<1x8x128xbf16> to vector<8x128xbf16>
    %160 = vector.shape_cast %156 : vector<8x128xbf16> to vector<1x8x128xbf16>
    tpu.vector_store %arg7[%157, %c0_44, %c0_45], %160 {strides = array<i32>} : memref<8x8x128xbf16, #tpu.memory_space<vmem>>, vector<1x8x128xbf16>,
    %c4_i32 = arith.constant 4 : i32
    %c8_i32_46 = arith.constant 8 : i32
    %161 = arith.muli %c4_i32, %c8_i32_46 : i32
    %162 = tpu.assume_multiple %161, 8 : i32
    %163 = arith.index_cast %162 : i32 to index
    %c0_47 = arith.constant 0 : index
    %164 = vector.load %arg10[%163, %c0_47] : memref<64x512xf32, #tpu.memory_space<vmem>>, vector<8x512xf32>
    %165 = arith.truncf %155 : vector<8x128xf32> to vector<8x128xbf16>
    %cst_48 = arith.constant dense<0.000000e+00> : vector<8x512xf32>
    %166 = tpu.matmul %165, %10, %cst_48 {dimension_numbers = #tpu.dot_dimension_numbers<[1], [0], [0], [1], [0, 0, 1, 1], [], []>} : vector<8x128xbf16>, vector<128x512xbf16>, vector<8x512xf32> -> vector<8x512xf32>
    %167 = arith.addf %164, %166 : vector<8x512xf32>
    %168 = vector.extract_strided_slice %167 {offsets = [0, 0], sizes = [8, 128], strides = [1, 1]} : vector<8x512xf32> to vector<8x128xf32>
    %169 = arith.negf %168 : vector<8x128xf32>
    %170 = math.exp %169 : vector<8x128xf32>
    %cst_49 = arith.constant 1.000000e+00 : f32
    %171 = vector.broadcast %cst_49 : f32 to vector<8x128xf32>
    %172 = arith.addf %171, %170 : vector<8x128xf32>
    %173 = arith.divf %171, %172 : vector<8x128xf32>
    %174 = vector.extract_strided_slice %167 {offsets = [0, 128], sizes = [8, 128], strides = [1, 1]} : vector<8x512xf32> to vector<8x128xf32>
    %175 = arith.negf %174 : vector<8x128xf32>
    %176 = math.exp %175 : vector<8x128xf32>
    %cst_50 = arith.constant 1.000000e+00 : f32
    %177 = vector.broadcast %cst_50 : f32 to vector<8x128xf32>
    %178 = arith.addf %177, %176 : vector<8x128xf32>
    %179 = arith.divf %177, %178 : vector<8x128xf32>
    %180 = vector.extract_strided_slice %167 {offsets = [0, 256], sizes = [8, 128], strides = [1, 1]} : vector<8x512xf32> to vector<8x128xf32>
    %181 = math.tanh %180 : vector<8x128xf32>
    %182 = vector.extract_strided_slice %167 {offsets = [0, 384], sizes = [8, 128], strides = [1, 1]} : vector<8x512xf32> to vector<8x128xf32>
    %183 = arith.negf %182 : vector<8x128xf32>
    %184 = math.exp %183 : vector<8x128xf32>
    %cst_51 = arith.constant 1.000000e+00 : f32
    %185 = vector.broadcast %cst_51 : f32 to vector<8x128xf32>
    %186 = arith.addf %185, %184 : vector<8x128xf32>
    %187 = arith.divf %185, %186 : vector<8x128xf32>
    %188 = arith.mulf %179, %153 : vector<8x128xf32>
    %189 = arith.mulf %173, %181 : vector<8x128xf32>
    %190 = arith.addf %188, %189 : vector<8x128xf32>
    %191 = math.tanh %190 : vector<8x128xf32>
    %192 = arith.mulf %187, %191 : vector<8x128xf32>
    %193 = arith.truncf %192 : vector<8x128xf32> to vector<8x128xbf16>
    %194 = arith.index_cast %c4_i32 : i32 to index
    %c0_52 = arith.constant 0 : index
    %c0_53 = arith.constant 0 : index
    %195 = vector.load %arg7[%194, %c0_52, %c0_53] : memref<8x8x128xbf16, #tpu.memory_space<vmem>>, vector<1x8x128xbf16>
    %196 = vector.shape_cast %195 : vector<1x8x128xbf16> to vector<8x128xbf16>
    %197 = vector.shape_cast %193 : vector<8x128xbf16> to vector<1x8x128xbf16>
    tpu.vector_store %arg7[%194, %c0_52, %c0_53], %197 {strides = array<i32>} : memref<8x8x128xbf16, #tpu.memory_space<vmem>>, vector<1x8x128xbf16>,
    %c5_i32 = arith.constant 5 : i32
    %c8_i32_54 = arith.constant 8 : i32
    %198 = arith.muli %c5_i32, %c8_i32_54 : i32
    %199 = tpu.assume_multiple %198, 8 : i32
    %200 = arith.index_cast %199 : i32 to index
    %c0_55 = arith.constant 0 : index
    %201 = vector.load %arg10[%200, %c0_55] : memref<64x512xf32, #tpu.memory_space<vmem>>, vector<8x512xf32>
    %202 = arith.truncf %192 : vector<8x128xf32> to vector<8x128xbf16>
    %cst_56 = arith.constant dense<0.000000e+00> : vector<8x512xf32>
    %203 = tpu.matmul %202, %10, %cst_56 {dimension_numbers = #tpu.dot_dimension_numbers<[1], [0], [0], [1], [0, 0, 1, 1], [], []>} : vector<8x128xbf16>, vector<128x512xbf16>, vector<8x512xf32> -> vector<8x512xf32>
    %204 = arith.addf %201, %203 : vector<8x512xf32>
    %205 = vector.extract_strided_slice %204 {offsets = [0, 0], sizes = [8, 128], strides = [1, 1]} : vector<8x512xf32> to vector<8x128xf32>
    %206 = arith.negf %205 : vector<8x128xf32>
    %207 = math.exp %206 : vector<8x128xf32>
    %cst_57 = arith.constant 1.000000e+00 : f32
    %208 = vector.broadcast %cst_57 : f32 to vector<8x128xf32>
    %209 = arith.addf %208, %207 : vector<8x128xf32>
    %210 = arith.divf %208, %209 : vector<8x128xf32>
    %211 = vector.extract_strided_slice %204 {offsets = [0, 128], sizes = [8, 128], strides = [1, 1]} : vector<8x512xf32> to vector<8x128xf32>
    %212 = arith.negf %211 : vector<8x128xf32>
    %213 = math.exp %212 : vector<8x128xf32>
    %cst_58 = arith.constant 1.000000e+00 : f32
    %214 = vector.broadcast %cst_58 : f32 to vector<8x128xf32>
    %215 = arith.addf %214, %213 : vector<8x128xf32>
    %216 = arith.divf %214, %215 : vector<8x128xf32>
    %217 = vector.extract_strided_slice %204 {offsets = [0, 256], sizes = [8, 128], strides = [1, 1]} : vector<8x512xf32> to vector<8x128xf32>
    %218 = math.tanh %217 : vector<8x128xf32>
    %219 = vector.extract_strided_slice %204 {offsets = [0, 384], sizes = [8, 128], strides = [1, 1]} : vector<8x512xf32> to vector<8x128xf32>
    %220 = arith.negf %219 : vector<8x128xf32>
    %221 = math.exp %220 : vector<8x128xf32>
    %cst_59 = arith.constant 1.000000e+00 : f32
    %222 = vector.broadcast %cst_59 : f32 to vector<8x128xf32>
    %223 = arith.addf %222, %221 : vector<8x128xf32>
    %224 = arith.divf %222, %223 : vector<8x128xf32>
    %225 = arith.mulf %216, %190 : vector<8x128xf32>
    %226 = arith.mulf %210, %218 : vector<8x128xf32>
    %227 = arith.addf %225, %226 : vector<8x128xf32>
    %228 = math.tanh %227 : vector<8x128xf32>
    %229 = arith.mulf %224, %228 : vector<8x128xf32>
    %230 = arith.truncf %229 : vector<8x128xf32> to vector<8x128xbf16>
    %231 = arith.index_cast %c5_i32 : i32 to index
    %c0_60 = arith.constant 0 : index
    %c0_61 = arith.constant 0 : index
    %232 = vector.load %arg7[%231, %c0_60, %c0_61] : memref<8x8x128xbf16, #tpu.memory_space<vmem>>, vector<1x8x128xbf16>
    %233 = vector.shape_cast %232 : vector<1x8x128xbf16> to vector<8x128xbf16>
    %234 = vector.shape_cast %230 : vector<8x128xbf16> to vector<1x8x128xbf16>
    tpu.vector_store %arg7[%231, %c0_60, %c0_61], %234 {strides = array<i32>} : memref<8x8x128xbf16, #tpu.memory_space<vmem>>, vector<1x8x128xbf16>,
    %c6_i32 = arith.constant 6 : i32
    %c8_i32_62 = arith.constant 8 : i32
    %235 = arith.muli %c6_i32, %c8_i32_62 : i32
    %236 = tpu.assume_multiple %235, 8 : i32
    %237 = arith.index_cast %236 : i32 to index
    %c0_63 = arith.constant 0 : index
    %238 = vector.load %arg10[%237, %c0_63] : memref<64x512xf32, #tpu.memory_space<vmem>>, vector<8x512xf32>
    %239 = arith.truncf %229 : vector<8x128xf32> to vector<8x128xbf16>
    %cst_64 = arith.constant dense<0.000000e+00> : vector<8x512xf32>
    %240 = tpu.matmul %239, %10, %cst_64 {dimension_numbers = #tpu.dot_dimension_numbers<[1], [0], [0], [1], [0, 0, 1, 1], [], []>} : vector<8x128xbf16>, vector<128x512xbf16>, vector<8x512xf32> -> vector<8x512xf32>
    %241 = arith.addf %238, %240 : vector<8x512xf32>
    %242 = vector.extract_strided_slice %241 {offsets = [0, 0], sizes = [8, 128], strides = [1, 1]} : vector<8x512xf32> to vector<8x128xf32>
    %243 = arith.negf %242 : vector<8x128xf32>
    %244 = math.exp %243 : vector<8x128xf32>
    %cst_65 = arith.constant 1.000000e+00 : f32
    %245 = vector.broadcast %cst_65 : f32 to vector<8x128xf32>
    %246 = arith.addf %245, %244 : vector<8x128xf32>
    %247 = arith.divf %245, %246 : vector<8x128xf32>
    %248 = vector.extract_strided_slice %241 {offsets = [0, 128], sizes = [8, 128], strides = [1, 1]} : vector<8x512xf32> to vector<8x128xf32>
    %249 = arith.negf %248 : vector<8x128xf32>
    %250 = math.exp %249 : vector<8x128xf32>
    %cst_66 = arith.constant 1.000000e+00 : f32
    %251 = vector.broadcast %cst_66 : f32 to vector<8x128xf32>
    %252 = arith.addf %251, %250 : vector<8x128xf32>
    %253 = arith.divf %251, %252 : vector<8x128xf32>
    %254 = vector.extract_strided_slice %241 {offsets = [0, 256], sizes = [8, 128], strides = [1, 1]} : vector<8x512xf32> to vector<8x128xf32>
    %255 = math.tanh %254 : vector<8x128xf32>
    %256 = vector.extract_strided_slice %241 {offsets = [0, 384], sizes = [8, 128], strides = [1, 1]} : vector<8x512xf32> to vector<8x128xf32>
    %257 = arith.negf %256 : vector<8x128xf32>
    %258 = math.exp %257 : vector<8x128xf32>
    %cst_67 = arith.constant 1.000000e+00 : f32
    %259 = vector.broadcast %cst_67 : f32 to vector<8x128xf32>
    %260 = arith.addf %259, %258 : vector<8x128xf32>
    %261 = arith.divf %259, %260 : vector<8x128xf32>
    %262 = arith.mulf %253, %227 : vector<8x128xf32>
    %263 = arith.mulf %247, %255 : vector<8x128xf32>
    %264 = arith.addf %262, %263 : vector<8x128xf32>
    %265 = math.tanh %264 : vector<8x128xf32>
    %266 = arith.mulf %261, %265 : vector<8x128xf32>
    %267 = arith.truncf %266 : vector<8x128xf32> to vector<8x128xbf16>
    %268 = arith.index_cast %c6_i32 : i32 to index
    %c0_68 = arith.constant 0 : index
    %c0_69 = arith.constant 0 : index
    %269 = vector.load %arg7[%268, %c0_68, %c0_69] : memref<8x8x128xbf16, #tpu.memory_space<vmem>>, vector<1x8x128xbf16>
    %270 = vector.shape_cast %269 : vector<1x8x128xbf16> to vector<8x128xbf16>
    %271 = vector.shape_cast %267 : vector<8x128xbf16> to vector<1x8x128xbf16>
    tpu.vector_store %arg7[%268, %c0_68, %c0_69], %271 {strides = array<i32>} : memref<8x8x128xbf16, #tpu.memory_space<vmem>>, vector<1x8x128xbf16>,
    %c7_i32 = arith.constant 7 : i32
    %c8_i32_70 = arith.constant 8 : i32
    %272 = arith.muli %c7_i32, %c8_i32_70 : i32
    %273 = tpu.assume_multiple %272, 8 : i32
    %274 = arith.index_cast %273 : i32 to index
    %c0_71 = arith.constant 0 : index
    %275 = vector.load %arg10[%274, %c0_71] : memref<64x512xf32, #tpu.memory_space<vmem>>, vector<8x512xf32>
    %276 = arith.truncf %266 : vector<8x128xf32> to vector<8x128xbf16>
    %cst_72 = arith.constant dense<0.000000e+00> : vector<8x512xf32>
    %277 = tpu.matmul %276, %10, %cst_72 {dimension_numbers = #tpu.dot_dimension_numbers<[1], [0], [0], [1], [0, 0, 1, 1], [], []>} : vector<8x128xbf16>, vector<128x512xbf16>, vector<8x512xf32> -> vector<8x512xf32>
    %278 = arith.addf %275, %277 : vector<8x512xf32>
    %279 = vector.extract_strided_slice %278 {offsets = [0, 0], sizes = [8, 128], strides = [1, 1]} : vector<8x512xf32> to vector<8x128xf32>
    %280 = arith.negf %279 : vector<8x128xf32>
    %281 = math.exp %280 : vector<8x128xf32>
    %cst_73 = arith.constant 1.000000e+00 : f32
    %282 = vector.broadcast %cst_73 : f32 to vector<8x128xf32>
    %283 = arith.addf %282, %281 : vector<8x128xf32>
    %284 = arith.divf %282, %283 : vector<8x128xf32>
    %285 = vector.extract_strided_slice %278 {offsets = [0, 128], sizes = [8, 128], strides = [1, 1]} : vector<8x512xf32> to vector<8x128xf32>
    %286 = arith.negf %285 : vector<8x128xf32>
    %287 = math.exp %286 : vector<8x128xf32>
    %cst_74 = arith.constant 1.000000e+00 : f32
    %288 = vector.broadcast %cst_74 : f32 to vector<8x128xf32>
    %289 = arith.addf %288, %287 : vector<8x128xf32>
    %290 = arith.divf %288, %289 : vector<8x128xf32>
    %291 = vector.extract_strided_slice %278 {offsets = [0, 256], sizes = [8, 128], strides = [1, 1]} : vector<8x512xf32> to vector<8x128xf32>
    %292 = math.tanh %291 : vector<8x128xf32>
    %293 = vector.extract_strided_slice %278 {offsets = [0, 384], sizes = [8, 128], strides = [1, 1]} : vector<8x512xf32> to vector<8x128xf32>
    %294 = arith.negf %293 : vector<8x128xf32>
    %295 = math.exp %294 : vector<8x128xf32>
    %cst_75 = arith.constant 1.000000e+00 : f32
    %296 = vector.broadcast %cst_75 : f32 to vector<8x128xf32>
    %297 = arith.addf %296, %295 : vector<8x128xf32>
    %298 = arith.divf %296, %297 : vector<8x128xf32>
    %299 = arith.mulf %290, %264 : vector<8x128xf32>
    %300 = arith.mulf %284, %292 : vector<8x128xf32>
    %301 = arith.addf %299, %300 : vector<8x128xf32>
    %302 = math.tanh %301 : vector<8x128xf32>
    %303 = arith.mulf %298, %302 : vector<8x128xf32>
    %304 = arith.truncf %303 : vector<8x128xf32> to vector<8x128xbf16>
    %305 = arith.index_cast %c7_i32 : i32 to index
    %c0_76 = arith.constant 0 : index
    %c0_77 = arith.constant 0 : index
    %306 = vector.load %arg7[%305, %c0_76, %c0_77] : memref<8x8x128xbf16, #tpu.memory_space<vmem>>, vector<1x8x128xbf16>
    %307 = vector.shape_cast %306 : vector<1x8x128xbf16> to vector<8x128xbf16>
    %308 = vector.shape_cast %304 : vector<8x128xbf16> to vector<1x8x128xbf16>
    tpu.vector_store %arg7[%305, %c0_76, %c0_77], %308 {strides = array<i32>} : memref<8x8x128xbf16, #tpu.memory_space<vmem>>, vector<1x8x128xbf16>,
    %c8_i32_78 = arith.constant 8 : i32
    %c0_79 = arith.constant 0 : index
    %c0_80 = arith.constant 0 : index
    %309 = vector.load %arg8[%c0_79, %c0_80] : memref<8x128xf32, #tpu.memory_space<vmem>>, vector<8x128xf32>
    tpu.vector_store %arg8[%c0_79, %c0_80], %303 {strides = array<i32>} : memref<8x128xf32, #tpu.memory_space<vmem>>, vector<8x128xf32>,
    %c0_81 = arith.constant 0 : index
    %c0_82 = arith.constant 0 : index
    %310 = vector.load %arg9[%c0_81, %c0_82] : memref<8x128xf32, #tpu.memory_space<vmem>>, vector<8x128xf32>
    tpu.vector_store %arg9[%c0_81, %c0_82], %301 {strides = array<i32>} : memref<8x128xf32, #tpu.memory_space<vmem>>, vector<8x128xf32>,
    return
  }
  func.func @transform_0(%arg0: i32) -> (i32, i32) {
    %c0_i32 = arith.constant 0 : i32
    %c0_i32_0 = arith.constant 0 : i32
    return %arg0, %c0_i32 : i32, i32
  }
  func.func @transform_1(%arg0: i32) -> (i32, i32) {
    %c0_i32 = arith.constant 0 : i32
    %c0_i32_0 = arith.constant 0 : i32
    %c0_i32_1 = arith.constant 0 : i32
    return %c0_i32, %c0_i32_0 : i32, i32
  }
  func.func @transform_2(%arg0: i32) -> (i32, i32) {
    %c0_i32 = arith.constant 0 : i32
    %c0_i32_0 = arith.constant 0 : i32
    %c0_i32_1 = arith.constant 0 : i32
    return %c0_i32, %c0_i32_0 : i32, i32
  }
  func.func @transform_3(%arg0: i32) -> (i32, i32) {
    %c0_i32 = arith.constant 0 : i32
    %c0_i32_0 = arith.constant 0 : i32
    %c0_i32_1 = arith.constant 0 : i32
    return %c0_i32, %c0_i32_0 : i32, i32
  }
  func.func @transform_4(%arg0: i32) -> (i32, i32) {
    %c0_i32 = arith.constant 0 : i32
    %c0_i32_0 = arith.constant 0 : i32
    %c0_i32_1 = arith.constant 0 : i32
    return %c0_i32, %c0_i32_0 : i32, i32
  }
  func.func @transform_5(%arg0: i32) -> (i32, i32) {
    %c0_i32 = arith.constant 0 : i32
    %c0_i32_0 = arith.constant 0 : i32
    %c0_i32_1 = arith.constant 0 : i32
    return %c0_i32, %c0_i32_0 : i32, i32
  }
  func.func @transform_6(%arg0: i32) -> (i32, i32, i32) {
    %c0_i32 = arith.constant 0 : i32
    %c0_i32_0 = arith.constant 0 : i32
    %c0_i32_1 = arith.constant 0 : i32
    return %arg0, %c0_i32, %c0_i32_0 : i32, i32, i32
  }
  func.func @transform_7(%arg0: i32) -> (i32, i32) {
    %c0_i32 = arith.constant 0 : i32
    %c0_i32_0 = arith.constant 0 : i32
    %c0_i32_1 = arith.constant 0 : i32
    return %c0_i32, %c0_i32_0 : i32, i32
  }
  func.func @transform_8(%arg0: i32) -> (i32, i32) {
    %c0_i32 = arith.constant 0 : i32
    %c0_i32_0 = arith.constant 0 : i32
    %c0_i32_1 = arith.constant 0 : i32
    return %c0_i32, %c0_i32_0 : i32, i32
  }
}

module attributes {stable_mosaic.version = 11 : i64} {
  func.func @lstm_layer_kernel(%arg0: i32, %arg1: memref<64x128xbf16, #tpu.memory_space<vmem>>, %arg2: memref<128x512xbf16, #tpu.memory_space<vmem>>, %arg3: memref<128x512xbf16, #tpu.memory_space<vmem>>, %arg4: memref<1x512xf32, #tpu.memory_space<vmem>>, %arg5: memref<8x128xf32, #tpu.memory_space<vmem>>, %arg6: memref<8x128xf32, #tpu.memory_space<vmem>>, %arg7: memref<8x8x128xbf16, #tpu.memory_space<vmem>>, %arg8: memref<8x128xf32, #tpu.memory_space<vmem>>, %arg9: memref<8x128xf32, #tpu.memory_space<vmem>>, %arg10: memref<64x512xf32, #tpu.memory_space<vmem>>) attributes {dimension_semantics = [#tpu.dimension_semantics<arbitrary>], iteration_bounds = array<i64: 1>, scalar_prefetch = 0 : i64, scratch_operands = 1 : i64, tpu.core_type = #tpu.core_type<tc>, window_params = [{transform_indices = @transform_0, window_bounds = array<i64: 64, 128>}, {pipeline_mode = #tpu.pipeline_mode<synchronous>, transform_indices = @transform_1, window_bounds = array<i64: 128, 512>}, {pipeline_mode = #tpu.pipeline_mode<synchronous>, transform_indices = @transform_2, window_bounds = array<i64: 128, 512>}, {pipeline_mode = #tpu.pipeline_mode<synchronous>, transform_indices = @transform_3, window_bounds = array<i64: 1, 512>}, {pipeline_mode = #tpu.pipeline_mode<synchronous>, transform_indices = @transform_4, window_bounds = array<i64: 8, 128>}, {pipeline_mode = #tpu.pipeline_mode<synchronous>, transform_indices = @transform_5, window_bounds = array<i64: 8, 128>}, {transform_indices = @transform_6, window_bounds = array<i64: 8, 8, 128>}, {pipeline_mode = #tpu.pipeline_mode<synchronous>, transform_indices = @transform_7, window_bounds = array<i64: 8, 128>}, {pipeline_mode = #tpu.pipeline_mode<synchronous>, transform_indices = @transform_8, window_bounds = array<i64: 8, 128>}]} {
    %c0_i32 = arith.constant 0 : i32
    %0 = arith.cmpi eq, %arg0, %c0_i32 : i32
    %1 = arith.extui %0 : i1 to i32
    %c0_i32_0 = arith.constant 0 : i32
    %2 = arith.cmpi ne, %1, %c0_i32_0 : i32
    scf.if %2 {
      %c0_83 = arith.constant 0 : index
      %c0_84 = arith.constant 0 : index
      %311 = vector.load %arg5[%c0_83, %c0_84] : memref<8x128xf32, #tpu.memory_space<vmem>>, vector<8x128xf32>
      %c0_85 = arith.constant 0 : index
      %c0_86 = arith.constant 0 : index
      %312 = vector.load %arg8[%c0_85, %c0_86] : memref<8x128xf32, #tpu.memory_space<vmem>>, vector<8x128xf32>
      tpu.vector_store %arg8[%c0_85, %c0_86], %311 {strides = array<i32>} : memref<8x128xf32, #tpu.memory_space<vmem>>, vector<8x128xf32>,
      %c0_87 = arith.constant 0 : index
      %c0_88 = arith.constant 0 : index
      %313 = vector.load %arg6[%c0_87, %c0_88] : memref<8x128xf32, #tpu.memory_space<vmem>>, vector<8x128xf32>
      %c0_89 = arith.constant 0 : index
      %c0_90 = arith.constant 0 : index
      %314 = vector.load %arg9[%c0_89, %c0_90] : memref<8x128xf32, #tpu.memory_space<vmem>>, vector<8x128xf32>
      tpu.vector_store %arg9[%c0_89, %c0_90], %313 {strides = array<i32>} : memref<8x128xf32, #tpu.memory_space<vmem>>, vector<8x128xf32>,
    } else {
    }
    %c0 = arith.constant 0 : index
    %c0_1 = arith.constant 0 : index
    %3 = vector.load %arg1[%c0, %c0_1] : memref<64x128xbf16, #tpu.memory_space<vmem>>, vector<64x128xbf16>
    %c0_2 = arith.constant 0 : index
    %c0_3 = arith.constant 0 : index
    %4 = vector.load %arg2[%c0_2, %c0_3] : memref<128x512xbf16, #tpu.memory_space<vmem>>, vector<128x512xbf16>
    %cst = arith.constant dense<0.000000e+00> : vector<64x512xf32>
    %5 = tpu.matmul %3, %4, %cst {dimension_numbers = #tpu.dot_dimension_numbers<[1], [0], [0], [1], [0, 0, 1, 1], [], []>} : vector<64x128xbf16>, vector<128x512xbf16>, vector<64x512xf32> -> vector<64x512xf32>
    %c0_4 = arith.constant 0 : index
    %c0_5 = arith.constant 0 : index
    %6 = vector.load %arg4[%c0_4, %c0_5] : memref<1x512xf32, #tpu.memory_space<vmem>>, vector<1x512xf32>
    %7 = vector.broadcast %6 : vector<1x512xf32> to vector<64x512xf32>
    %8 = arith.addf %5, %7 : vector<64x512xf32>
    %c0_6 = arith.constant 0 : index
    %c0_7 = arith.constant 0 : index
    %9 = vector.load %arg10[%c0_6, %c0_7] : memref<64x512xf32, #tpu.memory_space<vmem>>, vector<64x512xf32>
    tpu.vector_store %arg10[%c0_6, %c0_7], %8 {strides = array<i32>} : memref<64x512xf32, #tpu.memory_space<vmem>>, vector<64x512xf32>,
    %c0_8 = arith.constant 0 : index
    %c0_9 = arith.constant 0 : index
    %10 = vector.load %arg3[%c0_8, %c0_9] : memref<128x512xbf16, #tpu.memory_space<vmem>>, vector<128x512xbf16>
    %c0_10 = arith.constant 0 : index
    %c0_11 = arith.constant 0 : index
    %11 = vector.load %arg8[%c0_10, %c0_11] : memref<8x128xf32, #tpu.memory_space<vmem>>, vector<8x128xf32>
    %c0_12 = arith.constant 0 : index
    %c0_13 = arith.constant 0 : index
    %12 = vector.load %arg9[%c0_12, %c0_13] : memref<8x128xf32, #tpu.memory_space<vmem>>, vector<8x128xf32>
    %c0_i32_14 = arith.constant 0 : i32
    %c8_i32 = arith.constant 8 : i32
    %13 = arith.muli %c0_i32_14, %c8_i32 : i32
    %14 = tpu.assume_multiple %13, 8 : i32
    %15 = arith.index_cast %14 : i32 to index
    %c0_15 = arith.constant 0 : index
    %16 = vector.load %arg10[%15, %c0_15] : memref<64x512xf32, #tpu.memory_space<vmem>>, vector<8x512xf32>
    %17 = arith.truncf %11 : vector<8x128xf32> to vector<8x128xbf16>
    %cst_16 = arith.constant dense<0.000000e+00> : vector<8x512xf32>
    %18 = tpu.matmul %17, %10, %cst_16 {dimension_numbers = #tpu.dot_dimension_numbers<[1], [0], [0], [1], [0, 0, 1, 1], [], []>} : vector<8x128xbf16>, vector<128x512xbf16>, vector<8x512xf32> -> vector<8x512xf32>
    %19 = arith.addf %16, %18 : vector<8x512xf32>
    %20 = vector.extract_strided_slice %19 {offsets = [0, 0], sizes = [8, 128], strides = [1, 1]} : vector<8x512xf32> to vector<8x128xf32>
    %21 = arith.negf %20 : vector<8x128xf32>
    %22 = math.exp %21 : vector<8x128xf32>
    %cst_17 = arith.constant 1.000000e+00 : f32
    %23 = vector.broadcast %cst_17 : f32 to vector<8x128xf32>
    %24 = arith.addf %23, %22 : vector<8x128xf32>
    %25 = arith.divf %23, %24 : vector<8x128xf32>
    %26 = vector.extract_strided_slice %19 {offsets = [0, 128], sizes = [8, 128], strides = [1, 1]} : vector<8x512xf32> to vector<8x128xf32>
    %27 = arith.negf %26 : vector<8x128xf32>
    %28 = math.exp %27 : vector<8x128xf32>
    %cst_18 = arith.constant 1.000000e+00 : f32
    %29 = vector.broadcast %cst_18 : f32 to vector<8x128xf32>
    %30 = arith.addf %29, %28 : vector<8x128xf32>
    %31 = arith.divf %29, %30 : vector<8x128xf32>
    %32 = vector.extract_strided_slice %19 {offsets = [0, 256], sizes = [8, 128], strides = [1, 1]} : vector<8x512xf32> to vector<8x128xf32>
    %33 = math.tanh %32 : vector<8x128xf32>
    %34 = vector.extract_strided_slice %19 {offsets = [0, 384], sizes = [8, 128], strides = [1, 1]} : vector<8x512xf32> to vector<8x128xf32>
    %35 = arith.negf %34 : vector<8x128xf32>
    %36 = math.exp %35 : vector<8x128xf32>
    %cst_19 = arith.constant 1.000000e+00 : f32
    %37 = vector.broadcast %cst_19 : f32 to vector<8x128xf32>
    %38 = arith.addf %37, %36 : vector<8x128xf32>
    %39 = arith.divf %37, %38 : vector<8x128xf32>
    %40 = arith.mulf %31, %12 : vector<8x128xf32>
    %41 = arith.mulf %25, %33 : vector<8x128xf32>
    %42 = arith.addf %40, %41 : vector<8x128xf32>
    %43 = math.tanh %42 : vector<8x128xf32>
    %44 = arith.mulf %39, %43 : vector<8x128xf32>
    %45 = arith.truncf %44 : vector<8x128xf32> to vector<8x128xbf16>
    %46 = arith.index_cast %c0_i32_14 : i32 to index
    %c0_20 = arith.constant 0 : index
    %c0_21 = arith.constant 0 : index
    %47 = vector.load %arg7[%46, %c0_20, %c0_21] : memref<8x8x128xbf16, #tpu.memory_space<vmem>>, vector<1x8x128xbf16>
    %48 = vector.shape_cast %47 : vector<1x8x128xbf16> to vector<8x128xbf16>
    %49 = vector.shape_cast %45 : vector<8x128xbf16> to vector<1x8x128xbf16>
    tpu.vector_store %arg7[%46, %c0_20, %c0_21], %49 {strides = array<i32>} : memref<8x8x128xbf16, #tpu.memory_space<vmem>>, vector<1x8x128xbf16>,
    %c1_i32 = arith.constant 1 : i32
    %c8_i32_22 = arith.constant 8 : i32
    %50 = arith.muli %c1_i32, %c8_i32_22 : i32
    %51 = tpu.assume_multiple %50, 8 : i32
    %52 = arith.index_cast %51 : i32 to index
    %c0_23 = arith.constant 0 : index
    %53 = vector.load %arg10[%52, %c0_23] : memref<64x512xf32, #tpu.memory_space<vmem>>, vector<8x512xf32>
    %54 = arith.truncf %44 : vector<8x128xf32> to vector<8x128xbf16>
    %cst_24 = arith.constant dense<0.000000e+00> : vector<8x512xf32>
    %55 = tpu.matmul %54, %10, %cst_24 {dimension_numbers = #tpu.dot_dimension_numbers<[1], [0], [0], [1], [0, 0, 1, 1], [], []>} : vector<8x128xbf16>, vector<128x512xbf16>, vector<8x512xf32> -> vector<8x512xf32>
    %56 = arith.addf %53, %55 : vector<8x512xf32>
    %57 = vector.extract_strided_slice %56 {offsets = [0, 0], sizes = [8, 128], strides = [1, 1]} : vector<8x512xf32> to vector<8x128xf32>
    %58 = arith.negf %57 : vector<8x128xf32>
    %59 = math.exp %58 : vector<8x128xf32>
    %cst_25 = arith.constant 1.000000e+00 : f32
    %60 = vector.broadcast %cst_25 : f32 to vector<8x128xf32>
    %61 = arith.addf %60, %59 : vector<8x128xf32>
    %62 = arith.divf %60, %61 : vector<8x128xf32>
    %63 = vector.extract_strided_slice %56 {offsets = [0, 128], sizes = [8, 128], strides = [1, 1]} : vector<8x512xf32> to vector<8x128xf32>
    %64 = arith.negf %63 : vector<8x128xf32>
    %65 = math.exp %64 : vector<8x128xf32>
    %cst_26 = arith.constant 1.000000e+00 : f32
    %66 = vector.broadcast %cst_26 : f32 to vector<8x128xf32>
    %67 = arith.addf %66, %65 : vector<8x128xf32>
    %68 = arith.divf %66, %67 : vector<8x128xf32>
    %69 = vector.extract_strided_slice %56 {offsets = [0, 256], sizes = [8, 128], strides = [1, 1]} : vector<8x512xf32> to vector<8x128xf32>
    %70 = math.tanh %69 : vector<8x128xf32>
    %71 = vector.extract_strided_slice %56 {offsets = [0, 384], sizes = [8, 128], strides = [1, 1]} : vector<8x512xf32> to vector<8x128xf32>
    %72 = arith.negf %71 : vector<8x128xf32>
    %73 = math.exp %72 : vector<8x128xf32>
    %cst_27 = arith.constant 1.000000e+00 : f32
    %74 = vector.broadcast %cst_27 : f32 to vector<8x128xf32>
    %75 = arith.addf %74, %73 : vector<8x128xf32>
    %76 = arith.divf %74, %75 : vector<8x128xf32>
    %77 = arith.mulf %68, %42 : vector<8x128xf32>
    %78 = arith.mulf %62, %70 : vector<8x128xf32>
    %79 = arith.addf %77, %78 : vector<8x128xf32>
    %80 = math.tanh %79 : vector<8x128xf32>
    %81 = arith.mulf %76, %80 : vector<8x128xf32>
    %82 = arith.truncf %81 : vector<8x128xf32> to vector<8x128xbf16>
    %83 = arith.index_cast %c1_i32 : i32 to index
    %c0_28 = arith.constant 0 : index
    %c0_29 = arith.constant 0 : index
    %84 = vector.load %arg7[%83, %c0_28, %c0_29] : memref<8x8x128xbf16, #tpu.memory_space<vmem>>, vector<1x8x128xbf16>
    %85 = vector.shape_cast %84 : vector<1x8x128xbf16> to vector<8x128xbf16>
    %86 = vector.shape_cast %82 : vector<8x128xbf16> to vector<1x8x128xbf16>
    tpu.vector_store %arg7[%83, %c0_28, %c0_29], %86 {strides = array<i32>} : memref<8x8x128xbf16, #tpu.memory_space<vmem>>, vector<1x8x128xbf16>,
    %c2_i32 = arith.constant 2 : i32
    %c8_i32_30 = arith.constant 8 : i32
    %87 = arith.muli %c2_i32, %c8_i32_30 : i32
    %88 = tpu.assume_multiple %87, 8 : i32
    %89 = arith.index_cast %88 : i32 to index
    %c0_31 = arith.constant 0 : index
    %90 = vector.load %arg10[%89, %c0_31] : memref<64x512xf32, #tpu.memory_space<vmem>>, vector<8x512xf32>
    %91 = arith.truncf %81 : vector<8x128xf32> to vector<8x128xbf16>
    %cst_32 = arith.constant dense<0.000000e+00> : vector<8x512xf32>
    %92 = tpu.matmul %91, %10, %cst_32 {dimension_numbers = #tpu.dot_dimension_numbers<[1], [0], [0], [1], [0, 0, 1, 1], [], []>} : vector<8x128xbf16>, vector<128x512xbf16>, vector<8x512xf32> -> vector<8x512xf32>
    %93 = arith.addf %90, %92 : vector<8x512xf32>
    %94 = vector.extract_strided_slice %93 {offsets = [0, 0], sizes = [8, 128], strides = [1, 1]} : vector<8x512xf32> to vector<8x128xf32>
    %95 = arith.negf %94 : vector<8x128xf32>
    %96 = math.exp %95 : vector<8x128xf32>
    %cst_33 = arith.constant 1.000000e+00 : f32
    %97 = vector.broadcast %cst_33 : f32 to vector<8x128xf32>
    %98 = arith.addf %97, %96 : vector<8x128xf32>
    %99 = arith.divf %97, %98 : vector<8x128xf32>
    %100 = vector.extract_strided_slice %93 {offsets = [0, 128], sizes = [8, 128], strides = [1, 1]} : vector<8x512xf32> to vector<8x128xf32>
    %101 = arith.negf %100 : vector<8x128xf32>
    %102 = math.exp %101 : vector<8x128xf32>
    %cst_34 = arith.constant 1.000000e+00 : f32
    %103 = vector.broadcast %cst_34 : f32 to vector<8x128xf32>
    %104 = arith.addf %103, %102 : vector<8x128xf32>
    %105 = arith.divf %103, %104 : vector<8x128xf32>
    %106 = vector.extract_strided_slice %93 {offsets = [0, 256], sizes = [8, 128], strides = [1, 1]} : vector<8x512xf32> to vector<8x128xf32>
    %107 = math.tanh %106 : vector<8x128xf32>
    %108 = vector.extract_strided_slice %93 {offsets = [0, 384], sizes = [8, 128], strides = [1, 1]} : vector<8x512xf32> to vector<8x128xf32>
    %109 = arith.negf %108 : vector<8x128xf32>
    %110 = math.exp %109 : vector<8x128xf32>
    %cst_35 = arith.constant 1.000000e+00 : f32
    %111 = vector.broadcast %cst_35 : f32 to vector<8x128xf32>
    %112 = arith.addf %111, %110 : vector<8x128xf32>
    %113 = arith.divf %111, %112 : vector<8x128xf32>
    %114 = arith.mulf %105, %79 : vector<8x128xf32>
    %115 = arith.mulf %99, %107 : vector<8x128xf32>
    %116 = arith.addf %114, %115 : vector<8x128xf32>
    %117 = math.tanh %116 : vector<8x128xf32>
    %118 = arith.mulf %113, %117 : vector<8x128xf32>
    %119 = arith.truncf %118 : vector<8x128xf32> to vector<8x128xbf16>
    %120 = arith.index_cast %c2_i32 : i32 to index
    %c0_36 = arith.constant 0 : index
    %c0_37 = arith.constant 0 : index
    %121 = vector.load %arg7[%120, %c0_36, %c0_37] : memref<8x8x128xbf16, #tpu.memory_space<vmem>>, vector<1x8x128xbf16>
    %122 = vector.shape_cast %121 : vector<1x8x128xbf16> to vector<8x128xbf16>
    %123 = vector.shape_cast %119 : vector<8x128xbf16> to vector<1x8x128xbf16>
    tpu.vector_store %arg7[%120, %c0_36, %c0_37], %123 {strides = array<i32>} : memref<8x8x128xbf16, #tpu.memory_space<vmem>>, vector<1x8x128xbf16>,
    %c3_i32 = arith.constant 3 : i32
    %c8_i32_38 = arith.constant 8 : i32
    %124 = arith.muli %c3_i32, %c8_i32_38 : i32
    %125 = tpu.assume_multiple %124, 8 : i32
    %126 = arith.index_cast %125 : i32 to index
    %c0_39 = arith.constant 0 : index
    %127 = vector.load %arg10[%126, %c0_39] : memref<64x512xf32, #tpu.memory_space<vmem>>, vector<8x512xf32>
    %128 = arith.truncf %118 : vector<8x128xf32> to vector<8x128xbf16>
    %cst_40 = arith.constant dense<0.000000e+00> : vector<8x512xf32>
    %129 = tpu.matmul %128, %10, %cst_40 {dimension_numbers = #tpu.dot_dimension_numbers<[1], [0], [0], [1], [0, 0, 1, 1], [], []>} : vector<8x128xbf16>, vector<128x512xbf16>, vector<8x512xf32> -> vector<8x512xf32>
    %130 = arith.addf %127, %129 : vector<8x512xf32>
    %131 = vector.extract_strided_slice %130 {offsets = [0, 0], sizes = [8, 128], strides = [1, 1]} : vector<8x512xf32> to vector<8x128xf32>
    %132 = arith.negf %131 : vector<8x128xf32>
    %133 = math.exp %132 : vector<8x128xf32>
    %cst_41 = arith.constant 1.000000e+00 : f32
    %134 = vector.broadcast %cst_41 : f32 to vector<8x128xf32>
    %135 = arith.addf %134, %133 : vector<8x128xf32>
    %136 = arith.divf %134, %135 : vector<8x128xf32>
    %137 = vector.extract_strided_slice %130 {offsets = [0, 128], sizes = [8, 128], strides = [1, 1]} : vector<8x512xf32> to vector<8x128xf32>
    %138 = arith.negf %137 : vector<8x128xf32>
    %139 = math.exp %138 : vector<8x128xf32>
    %cst_42 = arith.constant 1.000000e+00 : f32
    %140 = vector.broadcast %cst_42 : f32 to vector<8x128xf32>
    %141 = arith.addf %140, %139 : vector<8x128xf32>
    %142 = arith.divf %140, %141 : vector<8x128xf32>
    %143 = vector.extract_strided_slice %130 {offsets = [0, 256], sizes = [8, 128], strides = [1, 1]} : vector<8x512xf32> to vector<8x128xf32>
    %144 = math.tanh %143 : vector<8x128xf32>
    %145 = vector.extract_strided_slice %130 {offsets = [0, 384], sizes = [8, 128], strides = [1, 1]} : vector<8x512xf32> to vector<8x128xf32>
    %146 = arith.negf %145 : vector<8x128xf32>
    %147 = math.exp %146 : vector<8x128xf32>
    %cst_43 = arith.constant 1.000000e+00 : f32
    %148 = vector.broadcast %cst_43 : f32 to vector<8x128xf32>
    %149 = arith.addf %148, %147 : vector<8x128xf32>
    %150 = arith.divf %148, %149 : vector<8x128xf32>
    %151 = arith.mulf %142, %116 : vector<8x128xf32>
    %152 = arith.mulf %136, %144 : vector<8x128xf32>
    %153 = arith.addf %151, %152 : vector<8x128xf32>
    %154 = math.tanh %153 : vector<8x128xf32>
    %155 = arith.mulf %150, %154 : vector<8x128xf32>
    %156 = arith.truncf %155 : vector<8x128xf32> to vector<8x128xbf16>
    %157 = arith.index_cast %c3_i32 : i32 to index
    %c0_44 = arith.constant 0 : index
    %c0_45 = arith.constant 0 : index
    %158 = vector.load %arg7[%157, %c0_44, %c0_45] : memref<8x8x128xbf16, #tpu.memory_space<vmem>>, vector<1x8x128xbf16>
    %159 = vector.shape_cast %158 : vector<1x8x128xbf16> to vector<8x128xbf16>
    %160 = vector.shape_cast %156 : vector<8x128xbf16> to vector<1x8x128xbf16>
    tpu.vector_store %arg7[%157, %c0_44, %c0_45], %160 {strides = array<i32>} : memref<8x8x128xbf16, #tpu.memory_space<vmem>>, vector<1x8x128xbf16>,
    %c4_i32 = arith.constant 4 : i32
    %c8_i32_46 = arith.constant 8 : i32
    %161 = arith.muli %c4_i32, %c8_i32_46 : i32
    %162 = tpu.assume_multiple %161, 8 : i32
    %163 = arith.index_cast %162 : i32 to index
    %c0_47 = arith.constant 0 : index
    %164 = vector.load %arg10[%163, %c0_47] : memref<64x512xf32, #tpu.memory_space<vmem>>, vector<8x512xf32>
    %165 = arith.truncf %155 : vector<8x128xf32> to vector<8x128xbf16>
    %cst_48 = arith.constant dense<0.000000e+00> : vector<8x512xf32>
    %166 = tpu.matmul %165, %10, %cst_48 {dimension_numbers = #tpu.dot_dimension_numbers<[1], [0], [0], [1], [0, 0, 1, 1], [], []>} : vector<8x128xbf16>, vector<128x512xbf16>, vector<8x512xf32> -> vector<8x512xf32>
    %167 = arith.addf %164, %166 : vector<8x512xf32>
    %168 = vector.extract_strided_slice %167 {offsets = [0, 0], sizes = [8, 128], strides = [1, 1]} : vector<8x512xf32> to vector<8x128xf32>
    %169 = arith.negf %168 : vector<8x128xf32>
    %170 = math.exp %169 : vector<8x128xf32>
    %cst_49 = arith.constant 1.000000e+00 : f32
    %171 = vector.broadcast %cst_49 : f32 to vector<8x128xf32>
    %172 = arith.addf %171, %170 : vector<8x128xf32>
    %173 = arith.divf %171, %172 : vector<8x128xf32>
    %174 = vector.extract_strided_slice %167 {offsets = [0, 128], sizes = [8, 128], strides = [1, 1]} : vector<8x512xf32> to vector<8x128xf32>
    %175 = arith.negf %174 : vector<8x128xf32>
    %176 = math.exp %175 : vector<8x128xf32>
    %cst_50 = arith.constant 1.000000e+00 : f32
    %177 = vector.broadcast %cst_50 : f32 to vector<8x128xf32>
    %178 = arith.addf %177, %176 : vector<8x128xf32>
    %179 = arith.divf %177, %178 : vector<8x128xf32>
    %180 = vector.extract_strided_slice %167 {offsets = [0, 256], sizes = [8, 128], strides = [1, 1]} : vector<8x512xf32> to vector<8x128xf32>
    %181 = math.tanh %180 : vector<8x128xf32>
    %182 = vector.extract_strided_slice %167 {offsets = [0, 384], sizes = [8, 128], strides = [1, 1]} : vector<8x512xf32> to vector<8x128xf32>
    %183 = arith.negf %182 : vector<8x128xf32>
    %184 = math.exp %183 : vector<8x128xf32>
    %cst_51 = arith.constant 1.000000e+00 : f32
    %185 = vector.broadcast %cst_51 : f32 to vector<8x128xf32>
    %186 = arith.addf %185, %184 : vector<8x128xf32>
    %187 = arith.divf %185, %186 : vector<8x128xf32>
    %188 = arith.mulf %179, %153 : vector<8x128xf32>
    %189 = arith.mulf %173, %181 : vector<8x128xf32>
    %190 = arith.addf %188, %189 : vector<8x128xf32>
    %191 = math.tanh %190 : vector<8x128xf32>
    %192 = arith.mulf %187, %191 : vector<8x128xf32>
    %193 = arith.truncf %192 : vector<8x128xf32> to vector<8x128xbf16>
    %194 = arith.index_cast %c4_i32 : i32 to index
    %c0_52 = arith.constant 0 : index
    %c0_53 = arith.constant 0 : index
    %195 = vector.load %arg7[%194, %c0_52, %c0_53] : memref<8x8x128xbf16, #tpu.memory_space<vmem>>, vector<1x8x128xbf16>
    %196 = vector.shape_cast %195 : vector<1x8x128xbf16> to vector<8x128xbf16>
    %197 = vector.shape_cast %193 : vector<8x128xbf16> to vector<1x8x128xbf16>
    tpu.vector_store %arg7[%194, %c0_52, %c0_53], %197 {strides = array<i32>} : memref<8x8x128xbf16, #tpu.memory_space<vmem>>, vector<1x8x128xbf16>,
    %c5_i32 = arith.constant 5 : i32
    %c8_i32_54 = arith.constant 8 : i32
    %198 = arith.muli %c5_i32, %c8_i32_54 : i32
    %199 = tpu.assume_multiple %198, 8 : i32
    %200 = arith.index_cast %199 : i32 to index
    %c0_55 = arith.constant 0 : index
    %201 = vector.load %arg10[%200, %c0_55] : memref<64x512xf32, #tpu.memory_space<vmem>>, vector<8x512xf32>
    %202 = arith.truncf %192 : vector<8x128xf32> to vector<8x128xbf16>
    %cst_56 = arith.constant dense<0.000000e+00> : vector<8x512xf32>
    %203 = tpu.matmul %202, %10, %cst_56 {dimension_numbers = #tpu.dot_dimension_numbers<[1], [0], [0], [1], [0, 0, 1, 1], [], []>} : vector<8x128xbf16>, vector<128x512xbf16>, vector<8x512xf32> -> vector<8x512xf32>
    %204 = arith.addf %201, %203 : vector<8x512xf32>
    %205 = vector.extract_strided_slice %204 {offsets = [0, 0], sizes = [8, 128], strides = [1, 1]} : vector<8x512xf32> to vector<8x128xf32>
    %206 = arith.negf %205 : vector<8x128xf32>
    %207 = math.exp %206 : vector<8x128xf32>
    %cst_57 = arith.constant 1.000000e+00 : f32
    %208 = vector.broadcast %cst_57 : f32 to vector<8x128xf32>
    %209 = arith.addf %208, %207 : vector<8x128xf32>
    %210 = arith.divf %208, %209 : vector<8x128xf32>
    %211 = vector.extract_strided_slice %204 {offsets = [0, 128], sizes = [8, 128], strides = [1, 1]} : vector<8x512xf32> to vector<8x128xf32>
    %212 = arith.negf %211 : vector<8x128xf32>
    %213 = math.exp %212 : vector<8x128xf32>
    %cst_58 = arith.constant 1.000000e+00 : f32
    %214 = vector.broadcast %cst_58 : f32 to vector<8x128xf32>
    %215 = arith.addf %214, %213 : vector<8x128xf32>
    %216 = arith.divf %214, %215 : vector<8x128xf32>
    %217 = vector.extract_strided_slice %204 {offsets = [0, 256], sizes = [8, 128], strides = [1, 1]} : vector<8x512xf32> to vector<8x128xf32>
    %218 = math.tanh %217 : vector<8x128xf32>
    %219 = vector.extract_strided_slice %204 {offsets = [0, 384], sizes = [8, 128], strides = [1, 1]} : vector<8x512xf32> to vector<8x128xf32>
    %220 = arith.negf %219 : vector<8x128xf32>
    %221 = math.exp %220 : vector<8x128xf32>
    %cst_59 = arith.constant 1.000000e+00 : f32
    %222 = vector.broadcast %cst_59 : f32 to vector<8x128xf32>
    %223 = arith.addf %222, %221 : vector<8x128xf32>
    %224 = arith.divf %222, %223 : vector<8x128xf32>
    %225 = arith.mulf %216, %190 : vector<8x128xf32>
    %226 = arith.mulf %210, %218 : vector<8x128xf32>
    %227 = arith.addf %225, %226 : vector<8x128xf32>
    %228 = math.tanh %227 : vector<8x128xf32>
    %229 = arith.mulf %224, %228 : vector<8x128xf32>
    %230 = arith.truncf %229 : vector<8x128xf32> to vector<8x128xbf16>
    %231 = arith.index_cast %c5_i32 : i32 to index
    %c0_60 = arith.constant 0 : index
    %c0_61 = arith.constant 0 : index
    %232 = vector.load %arg7[%231, %c0_60, %c0_61] : memref<8x8x128xbf16, #tpu.memory_space<vmem>>, vector<1x8x128xbf16>
    %233 = vector.shape_cast %232 : vector<1x8x128xbf16> to vector<8x128xbf16>
    %234 = vector.shape_cast %230 : vector<8x128xbf16> to vector<1x8x128xbf16>
    tpu.vector_store %arg7[%231, %c0_60, %c0_61], %234 {strides = array<i32>} : memref<8x8x128xbf16, #tpu.memory_space<vmem>>, vector<1x8x128xbf16>,
    %c6_i32 = arith.constant 6 : i32
    %c8_i32_62 = arith.constant 8 : i32
    %235 = arith.muli %c6_i32, %c8_i32_62 : i32
    %236 = tpu.assume_multiple %235, 8 : i32
    %237 = arith.index_cast %236 : i32 to index
    %c0_63 = arith.constant 0 : index
    %238 = vector.load %arg10[%237, %c0_63] : memref<64x512xf32, #tpu.memory_space<vmem>>, vector<8x512xf32>
    %239 = arith.truncf %229 : vector<8x128xf32> to vector<8x128xbf16>
    %cst_64 = arith.constant dense<0.000000e+00> : vector<8x512xf32>
    %240 = tpu.matmul %239, %10, %cst_64 {dimension_numbers = #tpu.dot_dimension_numbers<[1], [0], [0], [1], [0, 0, 1, 1], [], []>} : vector<8x128xbf16>, vector<128x512xbf16>, vector<8x512xf32> -> vector<8x512xf32>
    %241 = arith.addf %238, %240 : vector<8x512xf32>
    %242 = vector.extract_strided_slice %241 {offsets = [0, 0], sizes = [8, 128], strides = [1, 1]} : vector<8x512xf32> to vector<8x128xf32>
    %243 = arith.negf %242 : vector<8x128xf32>
    %244 = math.exp %243 : vector<8x128xf32>
    %cst_65 = arith.constant 1.000000e+00 : f32
    %245 = vector.broadcast %cst_65 : f32 to vector<8x128xf32>
    %246 = arith.addf %245, %244 : vector<8x128xf32>
    %247 = arith.divf %245, %246 : vector<8x128xf32>
    %248 = vector.extract_strided_slice %241 {offsets = [0, 128], sizes = [8, 128], strides = [1, 1]} : vector<8x512xf32> to vector<8x128xf32>
    %249 = arith.negf %248 : vector<8x128xf32>
    %250 = math.exp %249 : vector<8x128xf32>
    %cst_66 = arith.constant 1.000000e+00 : f32
    %251 = vector.broadcast %cst_66 : f32 to vector<8x128xf32>
    %252 = arith.addf %251, %250 : vector<8x128xf32>
    %253 = arith.divf %251, %252 : vector<8x128xf32>
    %254 = vector.extract_strided_slice %241 {offsets = [0, 256], sizes = [8, 128], strides = [1, 1]} : vector<8x512xf32> to vector<8x128xf32>
    %255 = math.tanh %254 : vector<8x128xf32>
    %256 = vector.extract_strided_slice %241 {offsets = [0, 384], sizes = [8, 128], strides = [1, 1]} : vector<8x512xf32> to vector<8x128xf32>
    %257 = arith.negf %256 : vector<8x128xf32>
    %258 = math.exp %257 : vector<8x128xf32>
    %cst_67 = arith.constant 1.000000e+00 : f32
    %259 = vector.broadcast %cst_67 : f32 to vector<8x128xf32>
    %260 = arith.addf %259, %258 : vector<8x128xf32>
    %261 = arith.divf %259, %260 : vector<8x128xf32>
    %262 = arith.mulf %253, %227 : vector<8x128xf32>
    %263 = arith.mulf %247, %255 : vector<8x128xf32>
    %264 = arith.addf %262, %263 : vector<8x128xf32>
    %265 = math.tanh %264 : vector<8x128xf32>
    %266 = arith.mulf %261, %265 : vector<8x128xf32>
    %267 = arith.truncf %266 : vector<8x128xf32> to vector<8x128xbf16>
    %268 = arith.index_cast %c6_i32 : i32 to index
    %c0_68 = arith.constant 0 : index
    %c0_69 = arith.constant 0 : index
    %269 = vector.load %arg7[%268, %c0_68, %c0_69] : memref<8x8x128xbf16, #tpu.memory_space<vmem>>, vector<1x8x128xbf16>
    %270 = vector.shape_cast %269 : vector<1x8x128xbf16> to vector<8x128xbf16>
    %271 = vector.shape_cast %267 : vector<8x128xbf16> to vector<1x8x128xbf16>
    tpu.vector_store %arg7[%268, %c0_68, %c0_69], %271 {strides = array<i32>} : memref<8x8x128xbf16, #tpu.memory_space<vmem>>, vector<1x8x128xbf16>,
    %c7_i32 = arith.constant 7 : i32
    %c8_i32_70 = arith.constant 8 : i32
    %272 = arith.muli %c7_i32, %c8_i32_70 : i32
    %273 = tpu.assume_multiple %272, 8 : i32
    %274 = arith.index_cast %273 : i32 to index
    %c0_71 = arith.constant 0 : index
    %275 = vector.load %arg10[%274, %c0_71] : memref<64x512xf32, #tpu.memory_space<vmem>>, vector<8x512xf32>
    %276 = arith.truncf %266 : vector<8x128xf32> to vector<8x128xbf16>
    %cst_72 = arith.constant dense<0.000000e+00> : vector<8x512xf32>
    %277 = tpu.matmul %276, %10, %cst_72 {dimension_numbers = #tpu.dot_dimension_numbers<[1], [0], [0], [1], [0, 0, 1, 1], [], []>} : vector<8x128xbf16>, vector<128x512xbf16>, vector<8x512xf32> -> vector<8x512xf32>
    %278 = arith.addf %275, %277 : vector<8x512xf32>
    %279 = vector.extract_strided_slice %278 {offsets = [0, 0], sizes = [8, 128], strides = [1, 1]} : vector<8x512xf32> to vector<8x128xf32>
    %280 = arith.negf %279 : vector<8x128xf32>
    %281 = math.exp %280 : vector<8x128xf32>
    %cst_73 = arith.constant 1.000000e+00 : f32
    %282 = vector.broadcast %cst_73 : f32 to vector<8x128xf32>
    %283 = arith.addf %282, %281 : vector<8x128xf32>
    %284 = arith.divf %282, %283 : vector<8x128xf32>
    %285 = vector.extract_strided_slice %278 {offsets = [0, 128], sizes = [8, 128], strides = [1, 1]} : vector<8x512xf32> to vector<8x128xf32>
    %286 = arith.negf %285 : vector<8x128xf32>
    %287 = math.exp %286 : vector<8x128xf32>
    %cst_74 = arith.constant 1.000000e+00 : f32
    %288 = vector.broadcast %cst_74 : f32 to vector<8x128xf32>
    %289 = arith.addf %288, %287 : vector<8x128xf32>
    %290 = arith.divf %288, %289 : vector<8x128xf32>
    %291 = vector.extract_strided_slice %278 {offsets = [0, 256], sizes = [8, 128], strides = [1, 1]} : vector<8x512xf32> to vector<8x128xf32>
    %292 = math.tanh %291 : vector<8x128xf32>
    %293 = vector.extract_strided_slice %278 {offsets = [0, 384], sizes = [8, 128], strides = [1, 1]} : vector<8x512xf32> to vector<8x128xf32>
    %294 = arith.negf %293 : vector<8x128xf32>
    %295 = math.exp %294 : vector<8x128xf32>
    %cst_75 = arith.constant 1.000000e+00 : f32
    %296 = vector.broadcast %cst_75 : f32 to vector<8x128xf32>
    %297 = arith.addf %296, %295 : vector<8x128xf32>
    %298 = arith.divf %296, %297 : vector<8x128xf32>
    %299 = arith.mulf %290, %264 : vector<8x128xf32>
    %300 = arith.mulf %284, %292 : vector<8x128xf32>
    %301 = arith.addf %299, %300 : vector<8x128xf32>
    %302 = math.tanh %301 : vector<8x128xf32>
    %303 = arith.mulf %298, %302 : vector<8x128xf32>
    %304 = arith.truncf %303 : vector<8x128xf32> to vector<8x128xbf16>
    %305 = arith.index_cast %c7_i32 : i32 to index
    %c0_76 = arith.constant 0 : index
    %c0_77 = arith.constant 0 : index
    %306 = vector.load %arg7[%305, %c0_76, %c0_77] : memref<8x8x128xbf16, #tpu.memory_space<vmem>>, vector<1x8x128xbf16>
    %307 = vector.shape_cast %306 : vector<1x8x128xbf16> to vector<8x128xbf16>
    %308 = vector.shape_cast %304 : vector<8x128xbf16> to vector<1x8x128xbf16>
    tpu.vector_store %arg7[%305, %c0_76, %c0_77], %308 {strides = array<i32>} : memref<8x8x128xbf16, #tpu.memory_space<vmem>>, vector<1x8x128xbf16>,
    %c8_i32_78 = arith.constant 8 : i32
    %c0_79 = arith.constant 0 : index
    %c0_80 = arith.constant 0 : index
    %309 = vector.load %arg8[%c0_79, %c0_80] : memref<8x128xf32, #tpu.memory_space<vmem>>, vector<8x128xf32>
    tpu.vector_store %arg8[%c0_79, %c0_80], %303 {strides = array<i32>} : memref<8x128xf32, #tpu.memory_space<vmem>>, vector<8x128xf32>,
    %c0_81 = arith.constant 0 : index
    %c0_82 = arith.constant 0 : index
    %310 = vector.load %arg9[%c0_81, %c0_82] : memref<8x128xf32, #tpu.memory_space<vmem>>, vector<8x128xf32>
    tpu.vector_store %arg9[%c0_81, %c0_82], %301 {strides = array<i32>} : memref<8x128xf32, #tpu.memory_space<vmem>>, vector<8x128xf32>,
    return
  }
  func.func @transform_0(%arg0: i32) -> (i32, i32) {
    %c0_i32 = arith.constant 0 : i32
    %c0_i32_0 = arith.constant 0 : i32
    return %arg0, %c0_i32 : i32, i32
  }
  func.func @transform_1(%arg0: i32) -> (i32, i32) {
    %c0_i32 = arith.constant 0 : i32
    %c0_i32_0 = arith.constant 0 : i32
    %c0_i32_1 = arith.constant 0 : i32
    return %c0_i32, %c0_i32_0 : i32, i32
  }
  func.func @transform_2(%arg0: i32) -> (i32, i32) {
    %c0_i32 = arith.constant 0 : i32
    %c0_i32_0 = arith.constant 0 : i32
    %c0_i32_1 = arith.constant 0 : i32
    return %c0_i32, %c0_i32_0 : i32, i32
  }
  func.func @transform_3(%arg0: i32) -> (i32, i32) {
    %c0_i32 = arith.constant 0 : i32
    %c0_i32_0 = arith.constant 0 : i32
    %c0_i32_1 = arith.constant 0 : i32
    return %c0_i32, %c0_i32_0 : i32, i32
  }
  func.func @transform_4(%arg0: i32) -> (i32, i32) {
    %c0_i32 = arith.constant 0 : i32
    %c0_i32_0 = arith.constant 0 : i32
    %c0_i32_1 = arith.constant 0 : i32
    return %c0_i32, %c0_i32_0 : i32, i32
  }
  func.func @transform_5(%arg0: i32) -> (i32, i32) {
    %c0_i32 = arith.constant 0 : i32
    %c0_i32_0 = arith.constant 0 : i32
    %c0_i32_1 = arith.constant 0 : i32
    return %c0_i32, %c0_i32_0 : i32, i32
  }
  func.func @transform_6(%arg0: i32) -> (i32, i32, i32) {
    %c0_i32 = arith.constant 0 : i32
    %c0_i32_0 = arith.constant 0 : i32
    %c0_i32_1 = arith.constant 0 : i32
    return %arg0, %c0_i32, %c0_i32_0 : i32, i32, i32
  }
  func.func @transform_7(%arg0: i32) -> (i32, i32) {
    %c0_i32 = arith.constant 0 : i32
    %c0_i32_0 = arith.constant 0 : i32
    %c0_i32_1 = arith.constant 0 : i32
    return %c0_i32, %c0_i32_0 : i32, i32
  }
  func.func @transform_8(%arg0: i32) -> (i32, i32) {
    %c0_i32 = arith.constant 0 : i32
    %c0_i32_0 = arith.constant 0 : i32
    %c0_i32_1 = arith.constant 0 : i32
    return %c0_i32, %c0_i32_0 : i32, i32
  }
}

</mosaic_0001>

<llo_original>
// kernel: rnn_model_forward.5
$region0: #{rnn_model_forward.5}
  #allocation0 [shape = 'u32[]', space=smem, size = 0x4, offset = 0x4, fixed_abs, tag = 'smem constant byte address 0x4 - core index']
  #allocation1 [shape = 'u32[144,128]{1,0:T(1,128)}', space=vmem, size = 0x12000, scoped, tag = 'internal scratch']
  %s0 = inlined_call_operand.vmem [shape: bf16[16,128], index: 0, kind: input, shape index: {}]
  %s1 = inlined_call_operand.vmem [shape: bf16[128,128], index: 1, kind: input, shape index: {}]
  %s2 = inlined_call_operand.vmem [shape: f32[1,128], index: 2, kind: input, shape index: {}]
  %s3 = inlined_call_operand.hbm [shape: f32[16,128], index: 3, kind: output, shape index: {}]
  %s4 = sld [smem:[#allocation0]]
  $region22: #{rnn_model_forward.5} parent=0
    _
  %s6 = ssub.s32 1, %s4
  %s7 = scalar_select 0, %s6, %s4
  $region1: #{rnn_model_forward.5} parent=0
    #allocation2 [shape = 'u8[8192]{0}', space=vmem, size = 0x2000, scoped, tag = 'output window, operand 0, single buffered']
    #allocation3 [shape = 's32[1]{0}', space=sflag, size = 0x4, scoped, tag = 'scoped memory for rnn_model_forward.5']
    %8 = vsyncpa [#allocation3], 0
    // Predicated region
    $region2: #{rnn_model_forward.5} parent=1 // pred_check
      _
    $region3: #{rnn_model_forward.5} parent=1 // pred_check_branch
      %10 = sbr.rel (0) target = $region5
    $region4: #{rnn_model_forward.5} parent=1 // pred_region
      _
    $region5: #{rnn_model_forward.5} parent=1 // pred_fallthru
      _
    // Predicated region
    $region6: #{rnn_model_forward.5} parent=1 // pred_check
      _
    $region7: #{rnn_model_forward.5} parent=1 // pred_check_branch
      %12 = sbr.rel (0) target = $region9
    $region8: #{rnn_model_forward.5} parent=1 // pred_region
      _
    $region9: #{rnn_model_forward.5} parent=1 // pred_fallthru
      _
    // Predicated region
    $region10: #{rnn_model_forward.5} parent=1 // pred_check
      _
    $region11: #{rnn_model_forward.5} parent=1 // pred_check_branch
      %14 = sbr.rel (0) target = $region13
    $region12: #{rnn_model_forward.5} parent=1 // pred_region
      _
    $region13: #{rnn_model_forward.5} parent=1 // pred_fallthru
      _
    %v16 = vld [vmem:[%s0] sm:$0xf]
    %v17 = vld [vmem:[%s0 + $0x4] sm:$0xf]
    %v18 = vld [vmem:[%s1] sm:$0xf]
    %v19 = vld [vmem:[%s1 + $0x4] sm:$0xf]
    %v20 = vld [vmem:[%s1 + $0x8] sm:$0xf]
    %v21 = vld [vmem:[%s1 + $0xc] sm:$0xf]
    %v22 = vld [vmem:[%s1 + $0x10] sm:$0xf]
    %v23 = vld [vmem:[%s1 + $0x14] sm:$0xf]
    %v24 = vld [vmem:[%s1 + $0x18] sm:$0xf]
    %v25 = vld [vmem:[%s1 + $0x1c] sm:$0xf]
    %v26 = vld [vmem:[%s1 + $0x20] sm:$0xf]
    %v27 = vld [vmem:[%s1 + $0x24] sm:$0xf]
    %v28 = vld [vmem:[%s1 + $0x28] sm:$0xf]
    %v29 = vld [vmem:[%s1 + $0x2c] sm:$0xf]
    %v30 = vld [vmem:[%s1 + $0x30] sm:$0xf]
    %v31 = vld [vmem:[%s1 + $0x34] sm:$0xf]
    %v32 = vld [vmem:[%s1 + $0x38] sm:$0xf]
    %v33 = vld [vmem:[%s1 + $0x3c] sm:$0xf]
    %v34 = vld [vmem:[%s2] sm:$0x1]
    %v36 = vlaneseq
    %v37 = vshrl.u32 %v36, 7
    %v38 = vsub.s32 0, %v37
    %v39 = vrot.slane %v34, %v38
    %v43 = vunpack.c.l.b16 %v16
    %v44 = vunpack.c.l.b16 %v17
    %v45 = vpack.c.b16 %v44, %v43
    %v63 = vunpack.c.l.b16 %v18
    %v64 = vunpack.c.l.b16 %v19
    %v65 = vunpack.c.l.b16 %v20
    %v66 = vunpack.c.l.b16 %v21
    %v67 = vunpack.c.l.b16 %v22
    %v68 = vunpack.c.l.b16 %v23
    %v69 = vunpack.c.l.b16 %v24
    %v70 = vunpack.c.l.b16 %v25
    %v71 = vunpack.c.l.b16 %v26
    %v72 = vunpack.c.l.b16 %v27
    %v73 = vunpack.c.l.b16 %v28
    %v74 = vunpack.c.l.b16 %v29
    %v75 = vunpack.c.l.b16 %v30
    %v76 = vunpack.c.l.b16 %v31
    %v77 = vunpack.c.l.b16 %v32
    %v78 = vunpack.c.l.b16 %v33
    %v79 = vpack.c.b16 %v64, %v63
    %v80 = vpack.c.b16 %v66, %v65
    %v81 = vpack.c.b16 %v68, %v67
    %v82 = vpack.c.b16 %v70, %v69
    %v83 = vpack.c.b16 %v72, %v71
    %v84 = vpack.c.b16 %v74, %v73
    %v85 = vpack.c.b16 %v76, %v75
    %v86 = vpack.c.b16 %v78, %v77
    %95 = vmatprep.subr.bf16.mxu0 0
    %96 = vmatpush1.bf16.msra.mxu0 %v86
    %97 = vmatprep.subr.bf16.mxu0 0
    %98 = vmatpush1.bf16.msra.mxu0 %v85
    %99 = vmatprep.subr.bf16.mxu0 0
    %100 = vmatpush1.bf16.msra.mxu0 %v84
    %101 = vmatprep.subr.bf16.mxu0 0
    %102 = vmatpush1.bf16.msra.mxu0 %v83
    %103 = vmatprep.subr.bf16.mxu0 0
    %104 = vmatpush1.bf16.msra.mxu0 %v82
    %105 = vmatprep.subr.bf16.mxu0 0
    %106 = vmatpush1.bf16.msra.mxu0 %v81
    %107 = vmatprep.subr.bf16.mxu0 0
    %108 = vmatpush1.bf16.msra.mxu0 %v80
    %109 = vmatprep.subr.bf16.mxu0 0
    %110 = vmatpush1.bf16.msra.mxu0 %v79
    %111 = vmatprep.subr.bf16.mxu0 0
    %112 = vmatpush2.bf16.msra.mxu0 0
    %113 = vmatprep.subr.bf16.mxu0 0
    %114 = vmatpush2.bf16.msra.mxu0 0
    %115 = vmatprep.subr.bf16.mxu0 0
    %116 = vmatpush2.bf16.msra.mxu0 0
    %117 = vmatprep.subr.bf16.mxu0 0
    %118 = vmatpush2.bf16.msra.mxu0 0
    %119 = vmatprep.subr.bf16.mxu0 0
    %120 = vmatpush2.bf16.msra.mxu0 0
    %121 = vmatprep.subr.bf16.mxu0 0
    %122 = vmatpush2.bf16.msra.mxu0 0
    %123 = vmatprep.subr.bf16.mxu0 0
    %124 = vmatpush2.bf16.msra.mxu0 0
    %125 = vmatprep.subr.bf16.mxu0 0
    %126 = vmatpush2.bf16.msra.mxu0 0
    %127 = vmatprep.mubr.bf16.mxu0 0
    %128 = vmatmul.mubr.bf16.gmra.mxu0 %v45
    %v129 = vpop.f32.mrf.mxu0
    %v130 = vadd.f32 %v39, %v129
    %v131 = vpop.f32.mrf.mxu0
    %v132 = vpop.f32.mrf.mxu0
    %v133 = vadd.f32 %v39, %v132
    %v134 = vpop.f32.mrf.mxu0
    %135 = vdwg.mxu0
    %136 = vst [vmem:[#allocation2] sm:$0xff] %v130
    %137 = vst [vmem:[#allocation2 + $0x8] sm:$0xff] %v133
    // Predicated region
    $region14: #{rnn_model_forward.5} parent=1 // pred_check
      _
    $region15: #{rnn_model_forward.5} parent=1 // pred_check_branch
      %139 = sbr.rel (0) target = $region17
    $region16: #{rnn_model_forward.5} parent=1 // pred_region
      %s141 = ssub.s32 256, 256
      %142 = vsyncadd [#allocation3], %s141
      %s143 = sshll.u32 [#allocation2], 4
      %s144 = int_to_ptr.vmem [resolvable:$true] %s143
      %149 = dma.vmem_to_hbm [thread:$0]  %s144, 256, %s3, [#allocation3], 128, 128, 8
    $region17: #{rnn_model_forward.5} parent=1 // pred_fallthru
      _
    // Predicated region
    $region18: #{rnn_model_forward.5} parent=1 // pred_check
      _
    $region19: #{rnn_model_forward.5} parent=1 // pred_check_branch
      %151 = sbr.rel (0) target = $region21
    $region20: #{rnn_model_forward.5} parent=1 // pred_region
      %152 = dma.done [#allocation3], 256
    $region21: #{rnn_model_forward.5} parent=1 // pred_fallthru
      _
    %153 = vsyncpa [#allocation3], 1

// kernel: rnn_model_forward.3
$region0: #{rnn_model_forward.3}
  #allocation0 [shape = 'u32[]', space=smem, size = 0x4, offset = 0x4, fixed_abs, tag = 'smem constant byte address 0x4 - core index']
  #allocation1 [shape = 'u32[144,128]{1,0:T(1,128)}', space=vmem, size = 0x12000, scoped, tag = 'internal scratch']
  #allocation2 [shape = 'f32[64,512]{1,0:T(8,128)}', space=vmem, size = 0x20000, scoped, tag = 'scratch operand']
  %s0 = inlined_call_operand.vmem [shape: bf16[64,128], index: 0, kind: input, shape index: {}]
  %s1 = inlined_call_operand.hbm [shape: bf16[128,512], index: 1, kind: input, shape index: {}]
  %s2 = inlined_call_operand.hbm [shape: bf16[128,512], index: 2, kind: input, shape index: {}]
  %s3 = inlined_call_operand.vmem [shape: f32[1,512], index: 3, kind: input, shape index: {}]
  %s4 = inlined_call_operand.vmem [shape: f32[8,128], index: 4, kind: input, shape index: {}]
  %s5 = inlined_call_operand.vmem [shape: f32[8,128], index: 5, kind: input, shape index: {}]
  %s6 = inlined_call_operand.vmem [shape: bf16[8,8,128], index: 6, kind: output, shape index: {0}]
  %s7 = inlined_call_operand.vmem [shape: f32[8,128], index: 7, kind: output, shape index: {1}]
  %s8 = inlined_call_operand.vmem [shape: f32[8,128], index: 8, kind: output, shape index: {2}]
  %9 = xla_tuple %s6, %s7, %s8
  %s10 = sld [smem:[#allocation0]]
  $region62: #{rnn_model_forward.3} parent=0
    _
  %s12 = ssub.s32 1, %s10
  %s13 = scalar_select 0, %s12, %s10
  $region1: #{rnn_model_forward.3} parent=0
    #allocation3 [shape = 'u8[131072]{0}', space=vmem, size = 0x20000, scoped, tag = 'input window, operand 1, single buffered']
    #allocation4 [shape = 's32[1]{0}', space=sflag, size = 0x4, scoped, tag = 'scoped memory for rnn_model_forward.3']
    #allocation5 [shape = 'u8[131072]{0}', space=vmem, size = 0x20000, scoped, tag = 'input window, operand 2, single buffered']
    #allocation6 [shape = 's32[1]{0}', space=sflag, size = 0x4, scoped, tag = 'scoped memory for rnn_model_forward.3']
    %14 = vsyncpa [#allocation4], 0
    %15 = vsyncpa [#allocation6], 0
    // Predicated region
    $region2: #{rnn_model_forward.3} parent=1 // pred_check
      _
    $region3: #{rnn_model_forward.3} parent=1 // pred_check_branch
      %17 = sbr.rel (0) target = $region5
    $region4: #{rnn_model_forward.3} parent=1 // pred_region
      _
    $region5: #{rnn_model_forward.3} parent=1 // pred_fallthru
      _
    // Predicated region
    $region6: #{rnn_model_forward.3} parent=1 // pred_check
      _
    $region7: #{rnn_model_forward.3} parent=1 // pred_check_branch
      %19 = sbr.rel (0) target = $region9
    $region8: #{rnn_model_forward.3} parent=1 // pred_region
      %s21 = ssub.s32 4096, 4096
      %22 = vsyncadd [#allocation4], %s21
      %s23 = sshll.u32 [#allocation3], 4
      %s24 = int_to_ptr.vmem [resolvable:$true] %s23
      %29 = dma.hbm_to_vmem [thread:$0]  %s1, 4096, %s24, [#allocation4], 256, 256, 16
    $region9: #{rnn_model_forward.3} parent=1 // pred_fallthru
      _
    // Predicated region
    $region10: #{rnn_model_forward.3} parent=1 // pred_check
      _
    $region11: #{rnn_model_forward.3} parent=1 // pred_check_branch
      %31 = sbr.rel (0) target = $region13
    $region12: #{rnn_model_forward.3} parent=1 // pred_region
      %s33 = ssub.s32 4096, 4096
      %34 = vsyncadd [#allocation6], %s33
      %s35 = sshll.u32 [#allocation5], 4
      %s36 = int_to_ptr.vmem [resolvable:$true] %s35
      %41 = dma.hbm_to_vmem [thread:$0]  %s2, 4096, %s36, [#allocation6], 256, 256, 16
    $region13: #{rnn_model_forward.3} parent=1 // pred_fallthru
      _
    // Predicated region
    $region14: #{rnn_model_forward.3} parent=1 // pred_check
      _
    $region15: #{rnn_model_forward.3} parent=1 // pred_check_branch
      %43 = sbr.rel (0) target = $region17
    $region16: #{rnn_model_forward.3} parent=1 // pred_region
      _
    $region17: #{rnn_model_forward.3} parent=1 // pred_fallthru
      _
    // Predicated region
    $region18: #{rnn_model_forward.3} parent=1 // pred_check
      _
    $region19: #{rnn_model_forward.3} parent=1 // pred_check_branch
      %45 = sbr.rel (0) target = $region21
    $region20: #{rnn_model_forward.3} parent=1 // pred_region
      _
    $region21: #{rnn_model_forward.3} parent=1 // pred_fallthru
      _
    // Predicated region
    $region22: #{rnn_model_forward.3} parent=1 // pred_check
      _
    $region23: #{rnn_model_forward.3} parent=1 // pred_check_branch
      %47 = sbr.rel (0) target = $region25
    $region24: #{rnn_model_forward.3} parent=1 // pred_region
      _
    $region25: #{rnn_model_forward.3} parent=1 // pred_fallthru
      _
    // Predicated region
    $region26: #{rnn_model_forward.3} parent=1 // pred_check
      _
    $region27: #{rnn_model_forward.3} parent=1 // pred_check_branch
      %49 = sbr.rel (0) target = $region29
    $region28: #{rnn_model_forward.3} parent=1 // pred_region
      %50 = dma.done [#allocation4], 4096
    $region29: #{rnn_model_forward.3} parent=1 // pred_fallthru
      _
    // Predicated region
    $region30: #{rnn_model_forward.3} parent=1 // pred_check
      _
    $region31: #{rnn_model_forward.3} parent=1 // pred_check_branch
      %52 = sbr.rel (0) target = $region33
    $region32: #{rnn_model_forward.3} parent=1 // pred_region
      %53 = dma.done [#allocation6], 4096
    $region33: #{rnn_model_forward.3} parent=1 // pred_fallthru
      _
    %p55 = scmp.eq.s32.totalorder 0, 0
    // Predicated region
    $region34: #{rnn_model_forward.3} parent=1 // pred_check
      %p56 = pneg %p55
    $region35: #{rnn_model_forward.3} parent=1 // pred_check_branch
      %58 = sbr.rel (%p56) target = $region37
    $region36: #{rnn_model_forward.3} parent=1 // pred_region
      %v59 = vld [vmem:[%s4] sm:$0xff]
      %60 = vst [vmem:[%s7] sm:$0xff] %v59
      %v61 = vld [vmem:[%s5] sm:$0xff]
      %62 = vst [vmem:[%s8] sm:$0xff] %v61
    $region37: #{rnn_model_forward.3} parent=1 // pred_fallthru
      _
    %v63 = vld [vmem:[%s0] sm:$0xf]
    %v64 = vld [vmem:[%s0 + $0x4] sm:$0xf]
    %v65 = vld [vmem:[%s0 + $0x8] sm:$0xf]
    %v66 = vld [vmem:[%s0 + $0xc] sm:$0xf]
    %v67 = vld [vmem:[%s0 + $0x10] sm:$0xf]
    %v68 = vld [vmem:[%s0 + $0x14] sm:$0xf]
    %v69 = vld [vmem:[%s0 + $0x18] sm:$0xf]
    %v70 = vld [vmem:[%s0 + $0x1c] sm:$0xf]
    %v71 = vld [vmem:[#allocation3] sm:$0xff]
    %v72 = vld [vmem:[#allocation3 + $0x8] sm:$0xff]
    %v73 = vld [vmem:[#allocation3 + $0x10] sm:$0xff]
    %v74 = vld [vmem:[#allocation3 + $0x18] sm:$0xff]
    %v75 = vld [vmem:[#allocation3 + $0x20] sm:$0xff]
    %v76 = vld [vmem:[#allocation3 + $0x28] sm:$0xff]
    %v77 = vld [vmem:[#allocation3 + $0x30] sm:$0xff]
    %v78 = vld [vmem:[#allocation3 + $0x38] sm:$0xff]
    %v79 = vld [vmem:[#allocation3 + $0x40] sm:$0xff]
    %v80 = vld [vmem:[#allocation3 + $0x48] sm:$0xff]
    %v81 = vld [vmem:[#allocation3 + $0x50] sm:$0xff]
    %v82 = vld [vmem:[#allocation3 + $0x58] sm:$0xff]
    %v83 = vld [vmem:[#allocation3 + $0x60] sm:$0xff]
    %v84 = vld [vmem:[#allocation3 + $0x68] sm:$0xff]
    %v85 = vld [vmem:[#allocation3 + $0x70] sm:$0xff]
    %v86 = vld [vmem:[#allocation3 + $0x78] sm:$0xff]
    %v87 = vld [vmem:[#allocation3 + $0x80] sm:$0xff]
    %v88 = vld [vmem:[#allocation3 + $0x88] sm:$0xff]
    %v89 = vld [vmem:[#allocation3 + $0x90] sm:$0xff]
    %v90 = vld [vmem:[#allocation3 + $0x98] sm:$0xff]
    %v91 = vld [vmem:[#allocation3 + $0xa0] sm:$0xff]
    %v92 = vld [vmem:[#allocation3 + $0xa8] sm:$0xff]
    %v93 = vld [vmem:[#allocation3 + $0xb0] sm:$0xff]
    %v94 = vld [vmem:[#allocation3 + $0xb8] sm:$0xff]
    %v95 = vld [vmem:[#allocation3 + $0xc0] sm:$0xff]
    %v96 = vld [vmem:[#allocation3 + $0xc8] sm:$0xff]
    %v97 = vld [vmem:[#allocation3 + $0xd0] sm:$0xff]
    %v98 = vld [vmem:[#allocation3 + $0xd8] sm:$0xff]
    %v99 = vld [vmem:[#allocation3 + $0xe0] sm:$0xff]
    %v100 = vld [vmem:[#allocation3 + $0xe8] sm:$0xff]
    %v101 = vld [vmem:[#allocation3 + $0xf0] sm:$0xff]
    %v102 = vld [vmem:[#allocation3 + $0xf8] sm:$0xff]
    %v103 = vld [vmem:[%s3] sm:$0xf]
    %v105 = vlaneseq
    %v106 = vshrl.u32 %v105, 7
    %v107 = vsub.s32 0, %v106
    %v108 = vrot.slane %v103, %v107
    %v109 = vlaneseq
    %v110 = vshrl.u32 %v109, 7
    %v111 = vsub.s32 1, %v110
    %v112 = vrot.slane %v103, %v111
    %v113 = vlaneseq
    %v114 = vshrl.u32 %v113, 7
    %v115 = vsub.s32 2, %v114
    %v116 = vrot.slane %v103, %v115
    %v117 = vlaneseq
    %v118 = vshrl.u32 %v117, 7
    %v119 = vsub.s32 3, %v118
    %v120 = vrot.slane %v103, %v119
    %v133 = vunpack.c.l.b16 %v63
    %v134 = vunpack.c.l.b16 %v64
    %v135 = vunpack.c.l.b16 %v65
    %v136 = vunpack.c.l.b16 %v66
    %v137 = vunpack.c.l.b16 %v67
    %v138 = vunpack.c.l.b16 %v68
    %v139 = vunpack.c.l.b16 %v69
    %v140 = vunpack.c.l.b16 %v70
    %v141 = vpack.c.b16 %v134, %v133
    %v142 = vpack.c.b16 %v136, %v135
    %v143 = vpack.c.b16 %v138, %v137
    %v144 = vpack.c.b16 %v140, %v139
    %v181 = vunpack.c.l.b16 %v71
    %v182 = vunpack.c.h.b16 %v71
    %v183 = vunpack.c.l.b16 %v72
    %v184 = vunpack.c.h.b16 %v72
    %v185 = vunpack.c.l.b16 %v73
    %v186 = vunpack.c.h.b16 %v73
    %v187 = vunpack.c.l.b16 %v74
    %v188 = vunpack.c.h.b16 %v74
    %v189 = vunpack.c.l.b16 %v75
    %v190 = vunpack.c.h.b16 %v75
    %v191 = vunpack.c.l.b16 %v76
    %v192 = vunpack.c.h.b16 %v76
    %v193 = vunpack.c.l.b16 %v77
    %v194 = vunpack.c.h.b16 %v77
    %v195 = vunpack.c.l.b16 %v78
    %v196 = vunpack.c.h.b16 %v78
    %v197 = vunpack.c.l.b16 %v79
    %v198 = vunpack.c.h.b16 %v79
    %v199 = vunpack.c.l.b16 %v80
    %v200 = vunpack.c.h.b16 %v80
    %v201 = vunpack.c.l.b16 %v81
    %v202 = vunpack.c.h.b16 %v81
    %v203 = vunpack.c.l.b16 %v82
    %v204 = vunpack.c.h.b16 %v82
    %v205 = vunpack.c.l.b16 %v83
    %v206 = vunpack.c.h.b16 %v83
    %v207 = vunpack.c.l.b16 %v84
    %v208 = vunpack.c.h.b16 %v84
    %v209 = vunpack.c.l.b16 %v85
    %v210 = vunpack.c.h.b16 %v85
    %v211 = vunpack.c.l.b16 %v86
    %v212 = vunpack.c.h.b16 %v86
    %v213 = vunpack.c.l.b16 %v87
    %v214 = vunpack.c.h.b16 %v87
    %v215 = vunpack.c.l.b16 %v88
    %v216 = vunpack.c.h.b16 %v88
    %v217 = vunpack.c.l.b16 %v89
    %v218 = vunpack.c.h.b16 %v89
    %v219 = vunpack.c.l.b16 %v90
    %v220 = vunpack.c.h.b16 %v90
    %v221 = vunpack.c.l.b16 %v91
    %v222 = vunpack.c.h.b16 %v91
    %v223 = vunpack.c.l.b16 %v92
    %v224 = vunpack.c.h.b16 %v92
    %v225 = vunpack.c.l.b16 %v93
    %v226 = vunpack.c.h.b16 %v93
    %v227 = vunpack.c.l.b16 %v94
    %v228 = vunpack.c.h.b16 %v94
    %v229 = vunpack.c.l.b16 %v95
    %v230 = vunpack.c.h.b16 %v95
    %v231 = vunpack.c.l.b16 %v96
    %v232 = vunpack.c.h.b16 %v96
    %v233 = vunpack.c.l.b16 %v97
    %v234 = vunpack.c.h.b16 %v97
    %v235 = vunpack.c.l.b16 %v98
    %v236 = vunpack.c.h.b16 %v98
    %v237 = vunpack.c.l.b16 %v99
    %v238 = vunpack.c.h.b16 %v99
    %v239 = vunpack.c.l.b16 %v100
    %v240 = vunpack.c.h.b16 %v100
    %v241 = vunpack.c.l.b16 %v101
    %v242 = vunpack.c.h.b16 %v101
    %v243 = vunpack.c.l.b16 %v102
    %v244 = vunpack.c.h.b16 %v102
    %v245 = vpack.c.b16 %v185, %v181
    %v246 = vpack.c.b16 %v186, %v182
    %v247 = vpack.c.b16 %v187, %v183
    %v248 = vpack.c.b16 %v188, %v184
    %v249 = vpack.c.b16 %v193, %v189
    %v250 = vpack.c.b16 %v194, %v190
    %v251 = vpack.c.b16 %v195, %v191
    %v252 = vpack.c.b16 %v196, %v192
    %v253 = vpack.c.b16 %v201, %v197
    %v254 = vpack.c.b16 %v202, %v198
    %v255 = vpack.c.b16 %v203, %v199
    %v256 = vpack.c.b16 %v204, %v200
    %v257 = vpack.c.b16 %v209, %v205
    %v258 = vpack.c.b16 %v210, %v206
    %v259 = vpack.c.b16 %v211, %v207
    %v260 = vpack.c.b16 %v212, %v208
    %v261 = vpack.c.b16 %v217, %v213
    %v262 = vpack.c.b16 %v218, %v214
    %v263 = vpack.c.b16 %v219, %v215
    %v264 = vpack.c.b16 %v220, %v216
    %v265 = vpack.c.b16 %v225, %v221
    %v266 = vpack.c.b16 %v226, %v222
    %v267 = vpack.c.b16 %v227, %v223
    %v268 = vpack.c.b16 %v228, %v224
    %v269 = vpack.c.b16 %v233, %v229
    %v270 = vpack.c.b16 %v234, %v230
    %v271 = vpack.c.b16 %v235, %v231
    %v272 = vpack.c.b16 %v236, %v232
    %v273 = vpack.c.b16 %v241, %v237
    %v274 = vpack.c.b16 %v242, %v238
    %v275 = vpack.c.b16 %v243, %v239
    %v276 = vpack.c.b16 %v244, %v240
    %309 = vmatprep.subr.bf16.mxu0 %v274
    %310 = vmatpush1.bf16.msra.mxu0 %v273
    %311 = vmatprep.subr.bf16.mxu0 %v270
    %312 = vmatpush1.bf16.msra.mxu0 %v269
    %313 = vmatprep.subr.bf16.mxu0 %v266
    %314 = vmatpush1.bf16.msra.mxu0 %v265
    %315 = vmatprep.subr.bf16.mxu0 %v262
    %316 = vmatpush1.bf16.msra.mxu0 %v261
    %317 = vmatprep.subr.bf16.mxu0 %v258
    %318 = vmatpush1.bf16.msra.mxu0 %v257
    %319 = vmatprep.subr.bf16.mxu0 %v254
    %320 = vmatpush1.bf16.msra.mxu0 %v253
    %321 = vmatprep.subr.bf16.mxu0 %v250
    %322 = vmatpush1.bf16.msra.mxu0 %v249
    %323 = vmatprep.subr.bf16.mxu0 %v246
    %324 = vmatpush1.bf16.msra.mxu0 %v245
    %325 = vmatprep.subr.bf16.mxu0 0
    %326 = vmatpush2.bf16.msra.mxu0 0
    %327 = vmatprep.subr.bf16.mxu0 0
    %328 = vmatpush2.bf16.msra.mxu0 0
    %329 = vmatprep.subr.bf16.mxu0 0
    %330 = vmatpush2.bf16.msra.mxu0 0
    %331 = vmatprep.subr.bf16.mxu0 0
    %332 = vmatpush2.bf16.msra.mxu0 0
    %333 = vmatprep.subr.bf16.mxu0 0
    %334 = vmatpush2.bf16.msra.mxu0 0
    %335 = vmatprep.subr.bf16.mxu0 0
    %336 = vmatpush2.bf16.msra.mxu0 0
    %337 = vmatprep.subr.bf16.mxu0 0
    %338 = vmatpush2.bf16.msra.mxu0 0
    %339 = vmatprep.subr.bf16.mxu0 0
    %340 = vmatpush2.bf16.msra.mxu0 0
    %341 = vmatprep.mubr.bf16.mxu0 0
    %342 = vmatmul.mubr.bf16.gmra.mxu0 %v141
    %v343 = vpop.f32.mrf.mxu0
    %v344 = vadd.f32 %v108, %v343
    %v345 = vpop.f32.mrf.mxu0
    %v346 = vadd.f32 %v112, %v345
    %v347 = vpop.f32.mrf.mxu0
    %v348 = vadd.f32 %v108, %v347
    %v349 = vpop.f32.mrf.mxu0
    %v350 = vadd.f32 %v112, %v349
    %351 = vmatprep.mubr.bf16.mxu0 0
    %352 = vmatmul.mubr.bf16.gmra.mxu0 %v142
    %v353 = vpop.f32.mrf.mxu0
    %v354 = vadd.f32 %v108, %v353
    %v355 = vpop.f32.mrf.mxu0
    %v356 = vadd.f32 %v112, %v355
    %v357 = vpop.f32.mrf.mxu0
    %v358 = vadd.f32 %v108, %v357
    %v359 = vpop.f32.mrf.mxu0
    %v360 = vadd.f32 %v112, %v359
    %361 = vmatprep.mubr.bf16.mxu0 0
    %362 = vmatmul.mubr.bf16.gmra.mxu0 %v143
    %v363 = vpop.f32.mrf.mxu0
    %v364 = vadd.f32 %v108, %v363
    %v365 = vpop.f32.mrf.mxu0
    %v366 = vadd.f32 %v112, %v365
    %v367 = vpop.f32.mrf.mxu0
    %v368 = vadd.f32 %v108, %v367
    %v369 = vpop.f32.mrf.mxu0
    %v370 = vadd.f32 %v112, %v369
    %371 = vmatprep.mubr.bf16.mxu0 0
    %372 = vmatmul.mubr.bf16.gmra.mxu0 %v144
    %v373 = vpop.f32.mrf.mxu0
    %v374 = vadd.f32 %v108, %v373
    %v375 = vpop.f32.mrf.mxu0
    %v376 = vadd.f32 %v112, %v375
    %v377 = vpop.f32.mrf.mxu0
    %v378 = vadd.f32 %v108, %v377
    %v379 = vpop.f32.mrf.mxu0
    %v380 = vadd.f32 %v112, %v379
    %381 = vdwg.mxu0
    %382 = vmatprep.subr.bf16.mxu0 %v276
    %383 = vmatpush1.bf16.msra.mxu0 %v275
    %384 = vmatprep.subr.bf16.mxu0 %v272
    %385 = vmatpush1.bf16.msra.mxu0 %v271
    %386 = vmatprep.subr.bf16.mxu0 %v268
    %387 = vmatpush1.bf16.msra.mxu0 %v267
    %388 = vmatprep.subr.bf16.mxu0 %v264
    %389 = vmatpush1.bf16.msra.mxu0 %v263
    %390 = vmatprep.subr.bf16.mxu0 %v260
    %391 = vmatpush1.bf16.msra.mxu0 %v259
    %392 = vmatprep.subr.bf16.mxu0 %v256
    %393 = vmatpush1.bf16.msra.mxu0 %v255
    %394 = vmatprep.subr.bf16.mxu0 %v252
    %395 = vmatpush1.bf16.msra.mxu0 %v251
    %396 = vmatprep.subr.bf16.mxu0 %v248
    %397 = vmatpush1.bf16.msra.mxu0 %v247
    %398 = vmatprep.subr.bf16.mxu0 0
    %399 = vmatpush2.bf16.msra.mxu0 0
    %400 = vmatprep.subr.bf16.mxu0 0
    %401 = vmatpush2.bf16.msra.mxu0 0
    %402 = vmatprep.subr.bf16.mxu0 0
    %403 = vmatpush2.bf16.msra.mxu0 0
    %404 = vmatprep.subr.bf16.mxu0 0
    %405 = vmatpush2.bf16.msra.mxu0 0
    %406 = vmatprep.subr.bf16.mxu0 0
    %407 = vmatpush2.bf16.msra.mxu0 0
    %408 = vmatprep.subr.bf16.mxu0 0
    %409 = vmatpush2.bf16.msra.mxu0 0
    %410 = vmatprep.subr.bf16.mxu0 0
    %411 = vmatpush2.bf16.msra.mxu0 0
    %412 = vmatprep.subr.bf16.mxu0 0
    %413 = vmatpush2.bf16.msra.mxu0 0
    %414 = vmatprep.mubr.bf16.mxu0 0
    %415 = vmatmul.mubr.bf16.gmra.mxu0 %v141
    %v416 = vpop.f32.mrf.mxu0
    %v417 = vadd.f32 %v116, %v416
    %v418 = vpop.f32.mrf.mxu0
    %v419 = vadd.f32 %v120, %v418
    %v420 = vpop.f32.mrf.mxu0
    %v421 = vadd.f32 %v116, %v420
    %v422 = vpop.f32.mrf.mxu0
    %v423 = vadd.f32 %v120, %v422
    %424 = vmatprep.mubr.bf16.mxu0 0
    %425 = vmatmul.mubr.bf16.gmra.mxu0 %v142
    %v426 = vpop.f32.mrf.mxu0
    %v427 = vadd.f32 %v116, %v426
    %v428 = vpop.f32.mrf.mxu0
    %v429 = vadd.f32 %v120, %v428
    %v430 = vpop.f32.mrf.mxu0
    %v431 = vadd.f32 %v116, %v430
    %v432 = vpop.f32.mrf.mxu0
    %v433 = vadd.f32 %v120, %v432
    %434 = vmatprep.mubr.bf16.mxu0 0
    %435 = vmatmul.mubr.bf16.gmra.mxu0 %v143
    %v436 = vpop.f32.mrf.mxu0
    %v437 = vadd.f32 %v116, %v436
    %v438 = vpop.f32.mrf.mxu0
    %v439 = vadd.f32 %v120, %v438
    %v440 = vpop.f32.mrf.mxu0
    %v441 = vadd.f32 %v116, %v440
    %v442 = vpop.f32.mrf.mxu0
    %v443 = vadd.f32 %v120, %v442
    %444 = vmatprep.mubr.bf16.mxu0 0
    %445 = vmatmul.mubr.bf16.gmra.mxu0 %v144
    %v446 = vpop.f32.mrf.mxu0
    %v447 = vadd.f32 %v116, %v446
    %v448 = vpop.f32.mrf.mxu0
    %v449 = vadd.f32 %v120, %v448
    %v450 = vpop.f32.mrf.mxu0
    %v451 = vadd.f32 %v116, %v450
    %v452 = vpop.f32.mrf.mxu0
    %v453 = vadd.f32 %v120, %v452
    %454 = vdwg.mxu0
    %455 = vst [vmem:[#allocation2] sm:$0xff] %v344
    %456 = vst [vmem:[#allocation2 + $0x8] sm:$0xff] %v346
    %457 = vst [vmem:[#allocation2 + $0x10] sm:$0xff] %v417
    %458 = vst [vmem:[#allocation2 + $0x18] sm:$0xff] %v419
    %459 = vst [vmem:[#allocation2 + $0x20] sm:$0xff] %v348
    %460 = vst [vmem:[#allocation2 + $0x28] sm:$0xff] %v350
    %461 = vst [vmem:[#allocation2 + $0x30] sm:$0xff] %v421
    %462 = vst [vmem:[#allocation2 + $0x38] sm:$0xff] %v423
    %463 = vst [vmem:[#allocation2 + $0x40] sm:$0xff] %v354
    %464 = vst [vmem:[#allocation2 + $0x48] sm:$0xff] %v356
    %465 = vst [vmem:[#allocation2 + $0x50] sm:$0xff] %v427
    %466 = vst [vmem:[#allocation2 + $0x58] sm:$0xff] %v429
    %467 = vst [vmem:[#allocation2 + $0x60] sm:$0xff] %v358
    %468 = vst [vmem:[#allocation2 + $0x68] sm:$0xff] %v360
    %469 = vst [vmem:[#allocation2 + $0x70] sm:$0xff] %v431
    %470 = vst [vmem:[#allocation2 + $0x78] sm:$0xff] %v433
    %471 = vst [vmem:[#allocation2 + $0x80] sm:$0xff] %v364
    %472 = vst [vmem:[#allocation2 + $0x88] sm:$0xff] %v366
    %473 = vst [vmem:[#allocation2 + $0x90] sm:$0xff] %v437
    %474 = vst [vmem:[#allocation2 + $0x98] sm:$0xff] %v439
    %475 = vst [vmem:[#allocation2 + $0xa0] sm:$0xff] %v368
    %476 = vst [vmem:[#allocation2 + $0xa8] sm:$0xff] %v370
    %477 = vst [vmem:[#allocation2 + $0xb0] sm:$0xff] %v441
    %478 = vst [vmem:[#allocation2 + $0xb8] sm:$0xff] %v443
    %479 = vst [vmem:[#allocation2 + $0xc0] sm:$0xff] %v374
    %480 = vst [vmem:[#allocation2 + $0xc8] sm:$0xff] %v376
    %481 = vst [vmem:[#allocation2 + $0xd0] sm:$0xff] %v447
    %482 = vst [vmem:[#allocation2 + $0xd8] sm:$0xff] %v449
    %483 = vst [vmem:[#allocation2 + $0xe0] sm:$0xff] %v378
    %484 = vst [vmem:[#allocation2 + $0xe8] sm:$0xff] %v380
    %485 = vst [vmem:[#allocation2 + $0xf0] sm:$0xff] %v451
    %486 = vst [vmem:[#allocation2 + $0xf8] sm:$0xff] %v453
    %v487 = vld [vmem:[#allocation5] sm:$0xff]
    %v488 = vld [vmem:[#allocation5 + $0x8] sm:$0xff]
    %v489 = vld [vmem:[#allocation5 + $0x10] sm:$0xff]
    %v490 = vld [vmem:[#allocation5 + $0x18] sm:$0xff]
    %v491 = vld [vmem:[#allocation5 + $0x20] sm:$0xff]
    %v492 = vld [vmem:[#allocation5 + $0x28] sm:$0xff]
    %v493 = vld [vmem:[#allocation5 + $0x30] sm:$0xff]
    %v494 = vld [vmem:[#allocation5 + $0x38] sm:$0xff]
    %v495 = vld [vmem:[#allocation5 + $0x40] sm:$0xff]
    %v496 = vld [vmem:[#allocation5 + $0x48] sm:$0xff]
    %v497 = vld [vmem:[#allocation5 + $0x50] sm:$0xff]
    %v498 = vld [vmem:[#allocation5 + $0x58] sm:$0xff]
    %v499 = vld [vmem:[#allocation5 + $0x60] sm:$0xff]
    %v500 = vld [vmem:[#allocation5 + $0x68] sm:$0xff]
    %v501 = vld [vmem:[#allocation5 + $0x70] sm:$0xff]
    %v502 = vld [vmem:[#allocation5 + $0x78] sm:$0xff]
    %v503 = vld [vmem:[#allocation5 + $0x80] sm:$0xff]
    %v504 = vld [vmem:[#allocation5 + $0x88] sm:$0xff]
    %v505 = vld [vmem:[#allocation5 + $0x90] sm:$0xff]
    %v506 = vld [vmem:[#allocation5 + $0x98] sm:$0xff]
    %v507 = vld [vmem:[#allocation5 + $0xa0] sm:$0xff]
    %v508 = vld [vmem:[#allocation5 + $0xa8] sm:$0xff]
    %v509 = vld [vmem:[#allocation5 + $0xb0] sm:$0xff]
    %v510 = vld [vmem:[#allocation5 + $0xb8] sm:$0xff]
    %v511 = vld [vmem:[#allocation5 + $0xc0] sm:$0xff]
    %v512 = vld [vmem:[#allocation5 + $0xc8] sm:$0xff]
    %v513 = vld [vmem:[#allocation5 + $0xd0] sm:$0xff]
    %v514 = vld [vmem:[#allocation5 + $0xd8] sm:$0xff]
    %v515 = vld [vmem:[#allocation5 + $0xe0] sm:$0xff]
    %v516 = vld [vmem:[#allocation5 + $0xe8] sm:$0xff]
    %v517 = vld [vmem:[#allocation5 + $0xf0] sm:$0xff]
    %v518 = vld [vmem:[#allocation5 + $0xf8] sm:$0xff]
    %v519 = vld [vmem:[%s7] sm:$0xff]
    %v520 = vld [vmem:[%s8] sm:$0xff]
    %s521 = smul.u32 0, 4
    %s522 = smul.addr %s521, 8
    %s523 = scalar_lea.vmem [#allocation2], %s522
    %v524 = vld [vmem:[%s523] sm:$0xff]
    %v525 = vld [vmem:[%s523 + $0x8] sm:$0xff]
    %v526 = vld [vmem:[%s523 + $0x10] sm:$0xff]
    %v527 = vld [vmem:[%s523 + $0x18] sm:$0xff]
    %v528 = vpack.c.bf16 %v519, %v519
    %v561 = vunpack.c.l.b16 %v487
    %v562 = vunpack.c.h.b16 %v487
    %v563 = vunpack.c.l.b16 %v488
    %v564 = vunpack.c.h.b16 %v488
    %v565 = vunpack.c.l.b16 %v489
    %v566 = vunpack.c.h.b16 %v489
    %v567 = vunpack.c.l.b16 %v490
    %v568 = vunpack.c.h.b16 %v490
    %v569 = vunpack.c.l.b16 %v491
    %v570 = vunpack.c.h.b16 %v491
    %v571 = vunpack.c.l.b16 %v492
    %v572 = vunpack.c.h.b16 %v492
    %v573 = vunpack.c.l.b16 %v493
    %v574 = vunpack.c.h.b16 %v493
    %v575 = vunpack.c.l.b16 %v494
    %v576 = vunpack.c.h.b16 %v494
    %v577 = vunpack.c.l.b16 %v495
    %v578 = vunpack.c.h.b16 %v495
    %v579 = vunpack.c.l.b16 %v496
    %v580 = vunpack.c.h.b16 %v496
    %v581 = vunpack.c.l.b16 %v497
    %v582 = vunpack.c.h.b16 %v497
    %v583 = vunpack.c.l.b16 %v498
    %v584 = vunpack.c.h.b16 %v498
    %v585 = vunpack.c.l.b16 %v499
    %v586 = vunpack.c.h.b16 %v499
    %v587 = vunpack.c.l.b16 %v500
    %v588 = vunpack.c.h.b16 %v500
    %v589 = vunpack.c.l.b16 %v501
    %v590 = vunpack.c.h.b16 %v501
    %v591 = vunpack.c.l.b16 %v502
    %v592 = vunpack.c.h.b16 %v502
    %v593 = vunpack.c.l.b16 %v503
    %v594 = vunpack.c.h.b16 %v503
    %v595 = vunpack.c.l.b16 %v504
    %v596 = vunpack.c.h.b16 %v504
    %v597 = vunpack.c.l.b16 %v505
    %v598 = vunpack.c.h.b16 %v505
    %v599 = vunpack.c.l.b16 %v506
    %v600 = vunpack.c.h.b16 %v506
    %v601 = vunpack.c.l.b16 %v507
    %v602 = vunpack.c.h.b16 %v507
    %v603 = vunpack.c.l.b16 %v508
    %v604 = vunpack.c.h.b16 %v508
    %v605 = vunpack.c.l.b16 %v509
    %v606 = vunpack.c.h.b16 %v509
    %v607 = vunpack.c.l.b16 %v510
    %v608 = vunpack.c.h.b16 %v510
    %v609 = vunpack.c.l.b16 %v511
    %v610 = vunpack.c.h.b16 %v511
    %v611 = vunpack.c.l.b16 %v512
    %v612 = vunpack.c.h.b16 %v512
    %v613 = vunpack.c.l.b16 %v513
    %v614 = vunpack.c.h.b16 %v513
    %v615 = vunpack.c.l.b16 %v514
    %v616 = vunpack.c.h.b16 %v514
    %v617 = vunpack.c.l.b16 %v515
    %v618 = vunpack.c.h.b16 %v515
    %v619 = vunpack.c.l.b16 %v516
    %v620 = vunpack.c.h.b16 %v516
    %v621 = vunpack.c.l.b16 %v517
    %v622 = vunpack.c.h.b16 %v517
    %v623 = vunpack.c.l.b16 %v518
    %v624 = vunpack.c.h.b16 %v518
    %v625 = vpack.c.b16 %v565, %v561
    %v626 = vpack.c.b16 %v566, %v562
    %v627 = vpack.c.b16 %v567, %v563
    %v628 = vpack.c.b16 %v568, %v564
    %v629 = vpack.c.b16 %v573, %v569
    %v630 = vpack.c.b16 %v574, %v570
    %v631 = vpack.c.b16 %v575, %v571
    %v632 = vpack.c.b16 %v576, %v572
    %v633 = vpack.c.b16 %v581, %v577
    %v634 = vpack.c.b16 %v582, %v578
    %v635 = vpack.c.b16 %v583, %v579
    %v636 = vpack.c.b16 %v584, %v580
    %v637 = vpack.c.b16 %v589, %v585
    %v638 = vpack.c.b16 %v590, %v586
    %v639 = vpack.c.b16 %v591, %v587
    %v640 = vpack.c.b16 %v592, %v588
    %v641 = vpack.c.b16 %v597, %v593
    %v642 = vpack.c.b16 %v598, %v594
    %v643 = vpack.c.b16 %v599, %v595
    %v644 = vpack.c.b16 %v600, %v596
    %v645 = vpack.c.b16 %v605, %v601
    %v646 = vpack.c.b16 %v606, %v602
    %v647 = vpack.c.b16 %v607, %v603
    %v648 = vpack.c.b16 %v608, %v604
    %v649 = vpack.c.b16 %v613, %v609
    %v650 = vpack.c.b16 %v614, %v610
    %v651 = vpack.c.b16 %v615, %v611
    %v652 = vpack.c.b16 %v616, %v612
    %v653 = vpack.c.b16 %v621, %v617
    %v654 = vpack.c.b16 %v622, %v618
    %v655 = vpack.c.b16 %v623, %v619
    %v656 = vpack.c.b16 %v624, %v620
    %689 = vmatprep.subr.bf16.mxu0 %v654
    %690 = vmatpush1.bf16.msra.mxu0 %v653
    %691 = vmatprep.subr.bf16.mxu0 %v650
    %692 = vmatpush1.bf16.msra.mxu0 %v649
    %693 = vmatprep.subr.bf16.mxu0 %v646
    %694 = vmatpush1.bf16.msra.mxu0 %v645
    %695 = vmatprep.subr.bf16.mxu0 %v642
    %696 = vmatpush1.bf16.msra.mxu0 %v641
    %697 = vmatprep.subr.bf16.mxu0 %v638
    %698 = vmatpush1.bf16.msra.mxu0 %v637
    %699 = vmatprep.subr.bf16.mxu0 %v634
    %700 = vmatpush1.bf16.msra.mxu0 %v633
    %701 = vmatprep.subr.bf16.mxu0 %v630
    %702 = vmatpush1.bf16.msra.mxu0 %v629
    %703 = vmatprep.subr.bf16.mxu0 %v626
    %704 = vmatpush1.bf16.msra.mxu0 %v625
    %705 = vmatprep.subr.bf16.mxu0 0
    %706 = vmatpush2.bf16.msra.mxu0 0
    %707 = vmatprep.subr.bf16.mxu0 0
    %708 = vmatpush2.bf16.msra.mxu0 0
    %709 = vmatprep.subr.bf16.mxu0 0
    %710 = vmatpush2.bf16.msra.mxu0 0
    %711 = vmatprep.subr.bf16.mxu0 0
    %712 = vmatpush2.bf16.msra.mxu0 0
    %713 = vmatprep.subr.bf16.mxu0 0
    %714 = vmatpush2.bf16.msra.mxu0 0
    %715 = vmatprep.subr.bf16.mxu0 0
    %716 = vmatpush2.bf16.msra.mxu0 0
    %717 = vmatprep.subr.bf16.mxu0 0
    %718 = vmatpush2.bf16.msra.mxu0 0
    %719 = vmatprep.subr.bf16.mxu0 0
    %720 = vmatpush2.bf16.msra.mxu0 0
    %721 = vmatprep.mubr.bf16.mxu0 0
    %722 = vmatmul.mubr.bf16.gmra.mxu0 %v528
    %v723 = vpop.f32.mrf.mxu0
    %v724 = vadd.f32 0.0, %v723
    %v725 = vpop.f32.mrf.mxu0
    %v726 = vadd.f32 0.0, %v725
    %v727 = vpop.f32.mrf.mxu0
    %v728 = vpop.f32.mrf.mxu0
    %729 = vdwg.mxu0
    %730 = vmatprep.subr.bf16.mxu0 %v656
    %731 = vmatpush1.bf16.msra.mxu0 %v655
    %732 = vmatprep.subr.bf16.mxu0 %v652
    %733 = vmatpush1.bf16.msra.mxu0 %v651
    %734 = vmatprep.subr.bf16.mxu0 %v648
    %735 = vmatpush1.bf16.msra.mxu0 %v647
    %736 = vmatprep.subr.bf16.mxu0 %v644
    %737 = vmatpush1.bf16.msra.mxu0 %v643
    %738 = vmatprep.subr.bf16.mxu0 %v640
    %739 = vmatpush1.bf16.msra.mxu0 %v639
    %740 = vmatprep.subr.bf16.mxu0 %v636
    %741 = vmatpush1.bf16.msra.mxu0 %v635
    %742 = vmatprep.subr.bf16.mxu0 %v632
    %743 = vmatpush1.bf16.msra.mxu0 %v631
    %744 = vmatprep.subr.bf16.mxu0 %v628
    %745 = vmatpush1.bf16.msra.mxu0 %v627
    %746 = vmatprep.subr.bf16.mxu0 0
    %747 = vmatpush2.bf16.msra.mxu0 0
    %748 = vmatprep.subr.bf16.mxu0 0
    %749 = vmatpush2.bf16.msra.mxu0 0
    %750 = vmatprep.subr.bf16.mxu0 0
    %751 = vmatpush2.bf16.msra.mxu0 0
    %752 = vmatprep.subr.bf16.mxu0 0
    %753 = vmatpush2.bf16.msra.mxu0 0
    %754 = vmatprep.subr.bf16.mxu0 0
    %755 = vmatpush2.bf16.msra.mxu0 0
    %756 = vmatprep.subr.bf16.mxu0 0
    %757 = vmatpush2.bf16.msra.mxu0 0
    %758 = vmatprep.subr.bf16.mxu0 0
    %759 = vmatpush2.bf16.msra.mxu0 0
    %760 = vmatprep.subr.bf16.mxu0 0
    %761 = vmatpush2.bf16.msra.mxu0 0
    %762 = vmatprep.mubr.bf16.mxu0 0
    %763 = vmatmul.mubr.bf16.gmra.mxu0 %v528
    %v764 = vpop.f32.mrf.mxu0
    %v765 = vadd.f32 0.0, %v764
    %v766 = vpop.f32.mrf.mxu0
    %v767 = vadd.f32 0.0, %v766
    %v768 = vpop.f32.mrf.mxu0
    %v769 = vpop.f32.mrf.mxu0
    %770 = vdwg.mxu0
    %v771 = vadd.f32 %v524, %v724
    %v772 = vadd.f32 %v525, %v726
    %v773 = vadd.f32 %v526, %v765
    %v774 = vadd.f32 %v527, %v767
    %v775 = vxor.u32 %v771, 2147483648
    %v776 = vmul.f32 %v775, 1.442695
    %v777 = vpow.pop %v776
    %v778 = vadd.f32 %v777, 1.0
    %v779 = vrcp.pop %v778
    %v780 = vmul.f32 1.0, %v779
    %v781 = vxor.u32 %v772, 2147483648
    %v782 = vmul.f32 %v781, 1.442695
    %v783 = vpow.pop %v782
    %v784 = vadd.f32 %v783, 1.0
    %v785 = vrcp.pop %v784
    %v786 = vmul.f32 1.0, %v785
    %v787 = vtanh.pop %v773
    %v788 = vxor.u32 %v774, 2147483648
    %v789 = vmul.f32 %v788, 1.442695
    %v790 = vpow.pop %v789
    %v791 = vadd.f32 %v790, 1.0
    %v792 = vrcp.pop %v791
    %v793 = vmul.f32 1.0, %v792
    %v794 = vmul.f32 %v786, %v520
    %v795 = vmul.f32 %v780, %v787
    %v796 = vadd.f32 %v794, %v795
    %v797 = vtanh.pop %v796
    %v798 = vmul.f32 %v793, %v797
    %v799 = vpack.c.bf16 %v798, %v798
    %800 = vst [vmem:[%s6] sm:$0xf] %v799
    %s801 = smul.u32 1, 4
    %s802 = smul.addr %s801, 8
    %s803 = scalar_lea.vmem [#allocation2], %s802
    %v804 = vld [vmem:[%s803] sm:$0xff]
    %v805 = vld [vmem:[%s803 + $0x8] sm:$0xff]
    %v806 = vld [vmem:[%s803 + $0x10] sm:$0xff]
    %v807 = vld [vmem:[%s803 + $0x18] sm:$0xff]
    %808 = vmatprep.subr.bf16.mxu0 %v654
    %809 = vmatpush1.bf16.msra.mxu0 %v653
    %810 = vmatprep.subr.bf16.mxu0 %v650
    %811 = vmatpush1.bf16.msra.mxu0 %v649
    %812 = vmatprep.subr.bf16.mxu0 %v646
    %813 = vmatpush1.bf16.msra.mxu0 %v645
    %814 = vmatprep.subr.bf16.mxu0 %v642
    %815 = vmatpush1.bf16.msra.mxu0 %v641
    %816 = vmatprep.subr.bf16.mxu0 %v638
    %817 = vmatpush1.bf16.msra.mxu0 %v637
    %818 = vmatprep.subr.bf16.mxu0 %v634
    %819 = vmatpush1.bf16.msra.mxu0 %v633
    %820 = vmatprep.subr.bf16.mxu0 %v630
    %821 = vmatpush1.bf16.msra.mxu0 %v629
    %822 = vmatprep.subr.bf16.mxu0 %v626
    %823 = vmatpush1.bf16.msra.mxu0 %v625
    %824 = vmatprep.subr.bf16.mxu0 0
    %825 = vmatpush2.bf16.msra.mxu0 0
    %826 = vmatprep.subr.bf16.mxu0 0
    %827 = vmatpush2.bf16.msra.mxu0 0
    %828 = vmatprep.subr.bf16.mxu0 0
    %829 = vmatpush2.bf16.msra.mxu0 0
    %830 = vmatprep.subr.bf16.mxu0 0
    %831 = vmatpush2.bf16.msra.mxu0 0
    %832 = vmatprep.subr.bf16.mxu0 0
    %833 = vmatpush2.bf16.msra.mxu0 0
    %834 = vmatprep.subr.bf16.mxu0 0
    %835 = vmatpush2.bf16.msra.mxu0 0
    %836 = vmatprep.subr.bf16.mxu0 0
    %837 = vmatpush2.bf16.msra.mxu0 0
    %838 = vmatprep.subr.bf16.mxu0 0
    %839 = vmatpush2.bf16.msra.mxu0 0
    %840 = vmatprep.mubr.bf16.mxu0 0
    %841 = vmatmul.mubr.bf16.gmra.mxu0 %v799
    %v842 = vpop.f32.mrf.mxu0
    %v843 = vadd.f32 0.0, %v842
    %v844 = vpop.f32.mrf.mxu0
    %v845 = vadd.f32 0.0, %v844
    %v846 = vpop.f32.mrf.mxu0
    %v847 = vpop.f32.mrf.mxu0
    %848 = vdwg.mxu0
    %849 = vmatprep.subr.bf16.mxu0 %v656
    %850 = vmatpush1.bf16.msra.mxu0 %v655
    %851 = vmatprep.subr.bf16.mxu0 %v652
    %852 = vmatpush1.bf16.msra.mxu0 %v651
    %853 = vmatprep.subr.bf16.mxu0 %v648
    %854 = vmatpush1.bf16.msra.mxu0 %v647
    %855 = vmatprep.subr.bf16.mxu0 %v644
    %856 = vmatpush1.bf16.msra.mxu0 %v643
    %857 = vmatprep.subr.bf16.mxu0 %v640
    %858 = vmatpush1.bf16.msra.mxu0 %v639
    %859 = vmatprep.subr.bf16.mxu0 %v636
    %860 = vmatpush1.bf16.msra.mxu0 %v635
    %861 = vmatprep.subr.bf16.mxu0 %v632
    %862 = vmatpush1.bf16.msra.mxu0 %v631
    %863 = vmatprep.subr.bf16.mxu0 %v628
    %864 = vmatpush1.bf16.msra.mxu0 %v627
    %865 = vmatprep.subr.bf16.mxu0 0
    %866 = vmatpush2.bf16.msra.mxu0 0
    %867 = vmatprep.subr.bf16.mxu0 0
    %868 = vmatpush2.bf16.msra.mxu0 0
    %869 = vmatprep.subr.bf16.mxu0 0
    %870 = vmatpush2.bf16.msra.mxu0 0
    %871 = vmatprep.subr.bf16.mxu0 0
    %872 = vmatpush2.bf16.msra.mxu0 0
    %873 = vmatprep.subr.bf16.mxu0 0
    %874 = vmatpush2.bf16.msra.mxu0 0
    %875 = vmatprep.subr.bf16.mxu0 0
    %876 = vmatpush2.bf16.msra.mxu0 0
    %877 = vmatprep.subr.bf16.mxu0 0
    %878 = vmatpush2.bf16.msra.mxu0 0
    %879 = vmatprep.subr.bf16.mxu0 0
    %880 = vmatpush2.bf16.msra.mxu0 0
    %881 = vmatprep.mubr.bf16.mxu0 0
    %882 = vmatmul.mubr.bf16.gmra.mxu0 %v799
    %v883 = vpop.f32.mrf.mxu0
    %v884 = vadd.f32 0.0, %v883
    %v885 = vpop.f32.mrf.mxu0
    %v886 = vadd.f32 0.0, %v885
    %v887 = vpop.f32.mrf.mxu0
    %v888 = vpop.f32.mrf.mxu0
    %889 = vdwg.mxu0
    %v890 = vadd.f32 %v804, %v843
    %v891 = vadd.f32 %v805, %v845
    %v892 = vadd.f32 %v806, %v884
    %v893 = vadd.f32 %v807, %v886
    %v894 = vxor.u32 %v890, 2147483648
    %v895 = vmul.f32 %v894, 1.442695
    %v896 = vpow.pop %v895
    %v897 = vadd.f32 %v896, 1.0
    %v898 = vrcp.pop %v897
    %v899 = vmul.f32 1.0, %v898
    %v900 = vxor.u32 %v891, 2147483648
    %v901 = vmul.f32 %v900, 1.442695
    %v902 = vpow.pop %v901
    %v903 = vadd.f32 %v902, 1.0
    %v904 = vrcp.pop %v903
    %v905 = vmul.f32 1.0, %v904
    %v906 = vtanh.pop %v892
    %v907 = vxor.u32 %v893, 2147483648
    %v908 = vmul.f32 %v907, 1.442695
    %v909 = vpow.pop %v908
    %v910 = vadd.f32 %v909, 1.0
    %v911 = vrcp.pop %v910
    %v912 = vmul.f32 1.0, %v911
    %v913 = vmul.f32 %v905, %v796
    %v914 = vmul.f32 %v899, %v906
    %v915 = vadd.f32 %v913, %v914
    %v916 = vtanh.pop %v915
    %v917 = vmul.f32 %v912, %v916
    %v918 = vpack.c.bf16 %v917, %v917
    %s919 = scalar_lea.vmem %s6, 4
    %920 = vst [vmem:[%s919] sm:$0xf] %v918
    %s921 = smul.u32 2, 4
    %s922 = smul.addr %s921, 8
    %s923 = scalar_lea.vmem [#allocation2], %s922
    %v924 = vld [vmem:[%s923] sm:$0xff]
    %v925 = vld [vmem:[%s923 + $0x8] sm:$0xff]
    %v926 = vld [vmem:[%s923 + $0x10] sm:$0xff]
    %v927 = vld [vmem:[%s923 + $0x18] sm:$0xff]
    %928 = vmatprep.subr.bf16.mxu0 %v654
    %929 = vmatpush1.bf16.msra.mxu0 %v653
    %930 = vmatprep.subr.bf16.mxu0 %v650
    %931 = vmatpush1.bf16.msra.mxu0 %v649
    %932 = vmatprep.subr.bf16.mxu0 %v646
    %933 = vmatpush1.bf16.msra.mxu0 %v645
    %934 = vmatprep.subr.bf16.mxu0 %v642
    %935 = vmatpush1.bf16.msra.mxu0 %v641
    %936 = vmatprep.subr.bf16.mxu0 %v638
    %937 = vmatpush1.bf16.msra.mxu0 %v637
    %938 = vmatprep.subr.bf16.mxu0 %v634
    %939 = vmatpush1.bf16.msra.mxu0 %v633
    %940 = vmatprep.subr.bf16.mxu0 %v630
    %941 = vmatpush1.bf16.msra.mxu0 %v629
    %942 = vmatprep.subr.bf16.mxu0 %v626
    %943 = vmatpush1.bf16.msra.mxu0 %v625
    %944 = vmatprep.subr.bf16.mxu0 0
    %945 = vmatpush2.bf16.msra.mxu0 0
    %946 = vmatprep.subr.bf16.mxu0 0
    %947 = vmatpush2.bf16.msra.mxu0 0
    %948 = vmatprep.subr.bf16.mxu0 0
    %949 = vmatpush2.bf16.msra.mxu0 0
    %950 = vmatprep.subr.bf16.mxu0 0
    %951 = vmatpush2.bf16.msra.mxu0 0
    %952 = vmatprep.subr.bf16.mxu0 0
    %953 = vmatpush2.bf16.msra.mxu0 0
    %954 = vmatprep.subr.bf16.mxu0 0
    %955 = vmatpush2.bf16.msra.mxu0 0
    %956 = vmatprep.subr.bf16.mxu0 0
    %957 = vmatpush2.bf16.msra.mxu0 0
    %958 = vmatprep.subr.bf16.mxu0 0
    %959 = vmatpush2.bf16.msra.mxu0 0
    %960 = vmatprep.mubr.bf16.mxu0 0
    %961 = vmatmul.mubr.bf16.gmra.mxu0 %v918
    %v962 = vpop.f32.mrf.mxu0
    %v963 = vadd.f32 0.0, %v962
    %v964 = vpop.f32.mrf.mxu0
    %v965 = vadd.f32 0.0, %v964
    %v966 = vpop.f32.mrf.mxu0
    %v967 = vpop.f32.mrf.mxu0
    %968 = vdwg.mxu0
    %969 = vmatprep.subr.bf16.mxu0 %v656
    %970 = vmatpush1.bf16.msra.mxu0 %v655
    %971 = vmatprep.subr.bf16.mxu0 %v652
    %972 = vmatpush1.bf16.msra.mxu0 %v651
    %973 = vmatprep.subr.bf16.mxu0 %v648
    %974 = vmatpush1.bf16.msra.mxu0 %v647
    %975 = vmatprep.subr.bf16.mxu0 %v644
    %976 = vmatpush1.bf16.msra.mxu0 %v643
    %977 = vmatprep.subr.bf16.mxu0 %v640
    %978 = vmatpush1.bf16.msra.mxu0 %v639
    %979 = vmatprep.subr.bf16.mxu0 %v636
    %980 = vmatpush1.bf16.msra.mxu0 %v635
    %981 = vmatprep.subr.bf16.mxu0 %v632
    %982 = vmatpush1.bf16.msra.mxu0 %v631
    %983 = vmatprep.subr.bf16.mxu0 %v628
    %984 = vmatpush1.bf16.msra.mxu0 %v627
    %985 = vmatprep.subr.bf16.mxu0 0
    %986 = vmatpush2.bf16.msra.mxu0 0
    %987 = vmatprep.subr.bf16.mxu0 0
    %988 = vmatpush2.bf16.msra.mxu0 0
    %989 = vmatprep.subr.bf16.mxu0 0
    %990 = vmatpush2.bf16.msra.mxu0 0
    %991 = vmatprep.subr.bf16.mxu0 0
    %992 = vmatpush2.bf16.msra.mxu0 0
    %993 = vmatprep.subr.bf16.mxu0 0
    %994 = vmatpush2.bf16.msra.mxu0 0
    %995 = vmatprep.subr.bf16.mxu0 0
    %996 = vmatpush2.bf16.msra.mxu0 0
    %997 = vmatprep.subr.bf16.mxu0 0
    %998 = vmatpush2.bf16.msra.mxu0 0
    %999 = vmatprep.subr.bf16.mxu0 0
    %1000 = vmatpush2.bf16.msra.mxu0 0
    %1001 = vmatprep.mubr.bf16.mxu0 0
    %1002 = vmatmul.mubr.bf16.gmra.mxu0 %v918
    %v1003 = vpop.f32.mrf.mxu0
    %v1004 = vadd.f32 0.0, %v1003
    %v1005 = vpop.f32.mrf.mxu0
    %v1006 = vadd.f32 0.0, %v1005
    %v1007 = vpop.f32.mrf.mxu0
    %v1008 = vpop.f32.mrf.mxu0
    %1009 = vdwg.mxu0
    %v1010 = vadd.f32 %v924, %v963
    %v1011 = vadd.f32 %v925, %v965
    %v1012 = vadd.f32 %v926, %v1004
    %v1013 = vadd.f32 %v927, %v1006
    %v1014 = vxor.u32 %v1010, 2147483648
    %v1015 = vmul.f32 %v1014, 1.442695
    %v1016 = vpow.pop %v1015
    %v1017 = vadd.f32 %v1016, 1.0
    %v1018 = vrcp.pop %v1017
    %v1019 = vmul.f32 1.0, %v1018
    %v1020 = vxor.u32 %v1011, 2147483648
    %v1021 = vmul.f32 %v1020, 1.442695
    %v1022 = vpow.pop %v1021
    %v1023 = vadd.f32 %v1022, 1.0
    %v1024 = vrcp.pop %v1023
    %v1025 = vmul.f32 1.0, %v1024
    %v1026 = vtanh.pop %v1012
    %v1027 = vxor.u32 %v1013, 2147483648
    %v1028 = vmul.f32 %v1027, 1.442695
    %v1029 = vpow.pop %v1028
    %v1030 = vadd.f32 %v1029, 1.0
    %v1031 = vrcp.pop %v1030
    %v1032 = vmul.f32 1.0, %v1031
    %v1033 = vmul.f32 %v1025, %v915
    %v1034 = vmul.f32 %v1019, %v1026
    %v1035 = vadd.f32 %v1033, %v1034
    %v1036 = vtanh.pop %v1035
    %v1037 = vmul.f32 %v1032, %v1036
    %v1038 = vpack.c.bf16 %v1037, %v1037
    %s1039 = scalar_lea.vmem %s6, 8
    %1040 = vst [vmem:[%s1039] sm:$0xf] %v1038
    %s1041 = smul.u32 3, 4
    %s1042 = smul.addr %s1041, 8
    %s1043 = scalar_lea.vmem [#allocation2], %s1042
    %v1044 = vld [vmem:[%s1043] sm:$0xff]
    %v1045 = vld [vmem:[%s1043 + $0x8] sm:$0xff]
    %v1046 = vld [vmem:[%s1043 + $0x10] sm:$0xff]
    %v1047 = vld [vmem:[%s1043 + $0x18] sm:$0xff]
    %1048 = vmatprep.subr.bf16.mxu0 %v654
    %1049 = vmatpush1.bf16.msra.mxu0 %v653
    %1050 = vmatprep.subr.bf16.mxu0 %v650
    %1051 = vmatpush1.bf16.msra.mxu0 %v649
    %1052 = vmatprep.subr.bf16.mxu0 %v646
    %1053 = vmatpush1.bf16.msra.mxu0 %v645
    %1054 = vmatprep.subr.bf16.mxu0 %v642
    %1055 = vmatpush1.bf16.msra.mxu0 %v641
    %1056 = vmatprep.subr.bf16.mxu0 %v638
    %1057 = vmatpush1.bf16.msra.mxu0 %v637
    %1058 = vmatprep.subr.bf16.mxu0 %v634
    %1059 = vmatpush1.bf16.msra.mxu0 %v633
    %1060 = vmatprep.subr.bf16.mxu0 %v630
    %1061 = vmatpush1.bf16.msra.mxu0 %v629
    %1062 = vmatprep.subr.bf16.mxu0 %v626
    %1063 = vmatpush1.bf16.msra.mxu0 %v625
    %1064 = vmatprep.subr.bf16.mxu0 0
    %1065 = vmatpush2.bf16.msra.mxu0 0
    %1066 = vmatprep.subr.bf16.mxu0 0
    %1067 = vmatpush2.bf16.msra.mxu0 0
    %1068 = vmatprep.subr.bf16.mxu0 0
    %1069 = vmatpush2.bf16.msra.mxu0 0
    %1070 = vmatprep.subr.bf16.mxu0 0
    %1071 = vmatpush2.bf16.msra.mxu0 0
    %1072 = vmatprep.subr.bf16.mxu0 0
    %1073 = vmatpush2.bf16.msra.mxu0 0
    %1074 = vmatprep.subr.bf16.mxu0 0
    %1075 = vmatpush2.bf16.msra.mxu0 0
    %1076 = vmatprep.subr.bf16.mxu0 0
    %1077 = vmatpush2.bf16.msra.mxu0 0
    %1078 = vmatprep.subr.bf16.mxu0 0
    %1079 = vmatpush2.bf16.msra.mxu0 0
    %1080 = vmatprep.mubr.bf16.mxu0 0
    %1081 = vmatmul.mubr.bf16.gmra.mxu0 %v1038
    %v1082 = vpop.f32.mrf.mxu0
    %v1083 = vadd.f32 0.0, %v1082
    %v1084 = vpop.f32.mrf.mxu0
    %v1085 = vadd.f32 0.0, %v1084
    %v1086 = vpop.f32.mrf.mxu0
    %v1087 = vpop.f32.mrf.mxu0
    %1088 = vdwg.mxu0
    %1089 = vmatprep.subr.bf16.mxu0 %v656
    %1090 = vmatpush1.bf16.msra.mxu0 %v655
    %1091 = vmatprep.subr.bf16.mxu0 %v652
    %1092 = vmatpush1.bf16.msra.mxu0 %v651
    %1093 = vmatprep.subr.bf16.mxu0 %v648
    %1094 = vmatpush1.bf16.msra.mxu0 %v647
    %1095 = vmatprep.subr.bf16.mxu0 %v644
    %1096 = vmatpush1.bf16.msra.mxu0 %v643
    %1097 = vmatprep.subr.bf16.mxu0 %v640
    %1098 = vmatpush1.bf16.msra.mxu0 %v639
    %1099 = vmatprep.subr.bf16.mxu0 %v636
    %1100 = vmatpush1.bf16.msra.mxu0 %v635
    %1101 = vmatprep.subr.bf16.mxu0 %v632
    %1102 = vmatpush1.bf16.msra.mxu0 %v631
    %1103 = vmatprep.subr.bf16.mxu0 %v628
    %1104 = vmatpush1.bf16.msra.mxu0 %v627
    %1105 = vmatprep.subr.bf16.mxu0 0
    %1106 = vmatpush2.bf16.msra.mxu0 0
    %1107 = vmatprep.subr.bf16.mxu0 0
    %1108 = vmatpush2.bf16.msra.mxu0 0
    %1109 = vmatprep.subr.bf16.mxu0 0
    %1110 = vmatpush2.bf16.msra.mxu0 0
    %1111 = vmatprep.subr.bf16.mxu0 0
    %1112 = vmatpush2.bf16.msra.mxu0 0
    %1113 = vmatprep.subr.bf16.mxu0 0
    %1114 = vmatpush2.bf16.msra.mxu0 0
    %1115 = vmatprep.subr.bf16.mxu0 0
    %1116 = vmatpush2.bf16.msra.mxu0 0
    %1117 = vmatprep.subr.bf16.mxu0 0
    %1118 = vmatpush2.bf16.msra.mxu0 0
    %1119 = vmatprep.subr.bf16.mxu0 0
    %1120 = vmatpush2.bf16.msra.mxu0 0
    %1121 = vmatprep.mubr.bf16.mxu0 0
    %1122 = vmatmul.mubr.bf16.gmra.mxu0 %v1038
    %v1123 = vpop.f32.mrf.mxu0
    %v1124 = vadd.f32 0.0, %v1123
    %v1125 = vpop.f32.mrf.mxu0
    %v1126 = vadd.f32 0.0, %v1125
    %v1127 = vpop.f32.mrf.mxu0
    %v1128 = vpop.f32.mrf.mxu0
    %1129 = vdwg.mxu0
    %v1130 = vadd.f32 %v1044, %v1083
    %v1131 = vadd.f32 %v1045, %v1085
    %v1132 = vadd.f32 %v1046, %v1124
    %v1133 = vadd.f32 %v1047, %v1126
    %v1134 = vxor.u32 %v1130, 2147483648
    %v1135 = vmul.f32 %v1134, 1.442695
    %v1136 = vpow.pop %v1135
    %v1137 = vadd.f32 %v1136, 1.0
    %v1138 = vrcp.pop %v1137
    %v1139 = vmul.f32 1.0, %v1138
    %v1140 = vxor.u32 %v1131, 2147483648
    %v1141 = vmul.f32 %v1140, 1.442695
    %v1142 = vpow.pop %v1141
    %v1143 = vadd.f32 %v1142, 1.0
    %v1144 = vrcp.pop %v1143
    %v1145 = vmul.f32 1.0, %v1144
    %v1146 = vtanh.pop %v1132
    %v1147 = vxor.u32 %v1133, 2147483648
    %v1148 = vmul.f32 %v1147, 1.442695
    %v1149 = vpow.pop %v1148
    %v1150 = vadd.f32 %v1149, 1.0
    %v1151 = vrcp.pop %v1150
    %v1152 = vmul.f32 1.0, %v1151
    %v1153 = vmul.f32 %v1145, %v1035
    %v1154 = vmul.f32 %v1139, %v1146
    %v1155 = vadd.f32 %v1153, %v1154
    %v1156 = vtanh.pop %v1155
    %v1157 = vmul.f32 %v1152, %v1156
    %v1158 = vpack.c.bf16 %v1157, %v1157
    %s1159 = scalar_lea.vmem %s6, 12
    %1160 = vst [vmem:[%s1159] sm:$0xf] %v1158
    %s1161 = smul.u32 4, 4
    %s1162 = smul.addr %s1161, 8
    %s1163 = scalar_lea.vmem [#allocation2], %s1162
    %v1164 = vld [vmem:[%s1163] sm:$0xff]
    %v1165 = vld [vmem:[%s1163 + $0x8] sm:$0xff]
    %v1166 = vld [vmem:[%s1163 + $0x10] sm:$0xff]
    %v1167 = vld [vmem:[%s1163 + $0x18] sm:$0xff]
    %1168 = vmatprep.subr.bf16.mxu0 %v654
    %1169 = vmatpush1.bf16.msra.mxu0 %v653
    %1170 = vmatprep.subr.bf16.mxu0 %v650
    %1171 = vmatpush1.bf16.msra.mxu0 %v649
    %1172 = vmatprep.subr.bf16.mxu0 %v646
    %1173 = vmatpush1.bf16.msra.mxu0 %v645
    %1174 = vmatprep.subr.bf16.mxu0 %v642
    %1175 = vmatpush1.bf16.msra.mxu0 %v641
    %1176 = vmatprep.subr.bf16.mxu0 %v638
    %1177 = vmatpush1.bf16.msra.mxu0 %v637
    %1178 = vmatprep.subr.bf16.mxu0 %v634
    %1179 = vmatpush1.bf16.msra.mxu0 %v633
    %1180 = vmatprep.subr.bf16.mxu0 %v630
    %1181 = vmatpush1.bf16.msra.mxu0 %v629
    %1182 = vmatprep.subr.bf16.mxu0 %v626
    %1183 = vmatpush1.bf16.msra.mxu0 %v625
    %1184 = vmatprep.subr.bf16.mxu0 0
    %1185 = vmatpush2.bf16.msra.mxu0 0
    %1186 = vmatprep.subr.bf16.mxu0 0
    %1187 = vmatpush2.bf16.msra.mxu0 0
    %1188 = vmatprep.subr.bf16.mxu0 0
    %1189 = vmatpush2.bf16.msra.mxu0 0
    %1190 = vmatprep.subr.bf16.mxu0 0
    %1191 = vmatpush2.bf16.msra.mxu0 0
    %1192 = vmatprep.subr.bf16.mxu0 0
    %1193 = vmatpush2.bf16.msra.mxu0 0
    %1194 = vmatprep.subr.bf16.mxu0 0
    %1195 = vmatpush2.bf16.msra.mxu0 0
    %1196 = vmatprep.subr.bf16.mxu0 0
    %1197 = vmatpush2.bf16.msra.mxu0 0
    %1198 = vmatprep.subr.bf16.mxu0 0
    %1199 = vmatpush2.bf16.msra.mxu0 0
    %1200 = vmatprep.mubr.bf16.mxu0 0
    %1201 = vmatmul.mubr.bf16.gmra.mxu0 %v1158
    %v1202 = vpop.f32.mrf.mxu0
    %v1203 = vadd.f32 0.0, %v1202
    %v1204 = vpop.f32.mrf.mxu0
    %v1205 = vadd.f32 0.0, %v1204
    %v1206 = vpop.f32.mrf.mxu0
    %v1207 = vpop.f32.mrf.mxu0
    %1208 = vdwg.mxu0
    %1209 = vmatprep.subr.bf16.mxu0 %v656
    %1210 = vmatpush1.bf16.msra.mxu0 %v655
    %1211 = vmatprep.subr.bf16.mxu0 %v652
    %1212 = vmatpush1.bf16.msra.mxu0 %v651
    %1213 = vmatprep.subr.bf16.mxu0 %v648
    %1214 = vmatpush1.bf16.msra.mxu0 %v647
    %1215 = vmatprep.subr.bf16.mxu0 %v644
    %1216 = vmatpush1.bf16.msra.mxu0 %v643
    %1217 = vmatprep.subr.bf16.mxu0 %v640
    %1218 = vmatpush1.bf16.msra.mxu0 %v639
    %1219 = vmatprep.subr.bf16.mxu0 %v636
    %1220 = vmatpush1.bf16.msra.mxu0 %v635
    %1221 = vmatprep.subr.bf16.mxu0 %v632
    %1222 = vmatpush1.bf16.msra.mxu0 %v631
    %1223 = vmatprep.subr.bf16.mxu0 %v628
    %1224 = vmatpush1.bf16.msra.mxu0 %v627
    %1225 = vmatprep.subr.bf16.mxu0 0
    %1226 = vmatpush2.bf16.msra.mxu0 0
    %1227 = vmatprep.subr.bf16.mxu0 0
    %1228 = vmatpush2.bf16.msra.mxu0 0
    %1229 = vmatprep.subr.bf16.mxu0 0
    %1230 = vmatpush2.bf16.msra.mxu0 0
    %1231 = vmatprep.subr.bf16.mxu0 0
    %1232 = vmatpush2.bf16.msra.mxu0 0
    %1233 = vmatprep.subr.bf16.mxu0 0
    %1234 = vmatpush2.bf16.msra.mxu0 0
    %1235 = vmatprep.subr.bf16.mxu0 0
    %1236 = vmatpush2.bf16.msra.mxu0 0
    %1237 = vmatprep.subr.bf16.mxu0 0
    %1238 = vmatpush2.bf16.msra.mxu0 0
    %1239 = vmatprep.subr.bf16.mxu0 0
    %1240 = vmatpush2.bf16.msra.mxu0 0
    %1241 = vmatprep.mubr.bf16.mxu0 0
    %1242 = vmatmul.mubr.bf16.gmra.mxu0 %v1158
    %v1243 = vpop.f32.mrf.mxu0
    %v1244 = vadd.f32 0.0, %v1243
    %v1245 = vpop.f32.mrf.mxu0
    %v1246 = vadd.f32 0.0, %v1245
    %v1247 = vpop.f32.mrf.mxu0
    %v1248 = vpop.f32.mrf.mxu0
    %1249 = vdwg.mxu0
    %v1250 = vadd.f32 %v1164, %v1203
    %v1251 = vadd.f32 %v1165, %v1205
    %v1252 = vadd.f32 %v1166, %v1244
    %v1253 = vadd.f32 %v1167, %v1246
    %v1254 = vxor.u32 %v1250, 2147483648
    %v1255 = vmul.f32 %v1254, 1.442695
    %v1256 = vpow.pop %v1255
    %v1257 = vadd.f32 %v1256, 1.0
    %v1258 = vrcp.pop %v1257
    %v1259 = vmul.f32 1.0, %v1258
    %v1260 = vxor.u32 %v1251, 2147483648
    %v1261 = vmul.f32 %v1260, 1.442695
    %v1262 = vpow.pop %v1261
    %v1263 = vadd.f32 %v1262, 1.0
    %v1264 = vrcp.pop %v1263
    %v1265 = vmul.f32 1.0, %v1264
    %v1266 = vtanh.pop %v1252
    %v1267 = vxor.u32 %v1253, 2147483648
    %v1268 = vmul.f32 %v1267, 1.442695
    %v1269 = vpow.pop %v1268
    %v1270 = vadd.f32 %v1269, 1.0
    %v1271 = vrcp.pop %v1270
    %v1272 = vmul.f32 1.0, %v1271
    %v1273 = vmul.f32 %v1265, %v1155
    %v1274 = vmul.f32 %v1259, %v1266
    %v1275 = vadd.f32 %v1273, %v1274
    %v1276 = vtanh.pop %v1275
    %v1277 = vmul.f32 %v1272, %v1276
    %v1278 = vpack.c.bf16 %v1277, %v1277
    %s1279 = scalar_lea.vmem %s6, 16
    %1280 = vst [vmem:[%s1279] sm:$0xf] %v1278
    %s1281 = smul.u32 5, 4
    %s1282 = smul.addr %s1281, 8
    %s1283 = scalar_lea.vmem [#allocation2], %s1282
    %v1284 = vld [vmem:[%s1283] sm:$0xff]
    %v1285 = vld [vmem:[%s1283 + $0x8] sm:$0xff]
    %v1286 = vld [vmem:[%s1283 + $0x10] sm:$0xff]
    %v1287 = vld [vmem:[%s1283 + $0x18] sm:$0xff]
    %1288 = vmatprep.subr.bf16.mxu0 %v654
    %1289 = vmatpush1.bf16.msra.mxu0 %v653
    %1290 = vmatprep.subr.bf16.mxu0 %v650
    %1291 = vmatpush1.bf16.msra.mxu0 %v649
    %1292 = vmatprep.subr.bf16.mxu0 %v646
    %1293 = vmatpush1.bf16.msra.mxu0 %v645
    %1294 = vmatprep.subr.bf16.mxu0 %v642
    %1295 = vmatpush1.bf16.msra.mxu0 %v641
    %1296 = vmatprep.subr.bf16.mxu0 %v638
    %1297 = vmatpush1.bf16.msra.mxu0 %v637
    %1298 = vmatprep.subr.bf16.mxu0 %v634
    %1299 = vmatpush1.bf16.msra.mxu0 %v633
    %1300 = vmatprep.subr.bf16.mxu0 %v630
    %1301 = vmatpush1.bf16.msra.mxu0 %v629
    %1302 = vmatprep.subr.bf16.mxu0 %v626
    %1303 = vmatpush1.bf16.msra.mxu0 %v625
    %1304 = vmatprep.subr.bf16.mxu0 0
    %1305 = vmatpush2.bf16.msra.mxu0 0
    %1306 = vmatprep.subr.bf16.mxu0 0
    %1307 = vmatpush2.bf16.msra.mxu0 0
    %1308 = vmatprep.subr.bf16.mxu0 0
    %1309 = vmatpush2.bf16.msra.mxu0 0
    %1310 = vmatprep.subr.bf16.mxu0 0
    %1311 = vmatpush2.bf16.msra.mxu0 0
    %1312 = vmatprep.subr.bf16.mxu0 0
    %1313 = vmatpush2.bf16.msra.mxu0 0
    %1314 = vmatprep.subr.bf16.mxu0 0
    %1315 = vmatpush2.bf16.msra.mxu0 0
    %1316 = vmatprep.subr.bf16.mxu0 0
    %1317 = vmatpush2.bf16.msra.mxu0 0
    %1318 = vmatprep.subr.bf16.mxu0 0
    %1319 = vmatpush2.bf16.msra.mxu0 0
    %1320 = vmatprep.mubr.bf16.mxu0 0
    %1321 = vmatmul.mubr.bf16.gmra.mxu0 %v1278
    %v1322 = vpop.f32.mrf.mxu0
    %v1323 = vadd.f32 0.0, %v1322
    %v1324 = vpop.f32.mrf.mxu0
    %v1325 = vadd.f32 0.0, %v1324
    %v1326 = vpop.f32.mrf.mxu0
    %v1327 = vpop.f32.mrf.mxu0
    %1328 = vdwg.mxu0
    %1329 = vmatprep.subr.bf16.mxu0 %v656
    %1330 = vmatpush1.bf16.msra.mxu0 %v655
    %1331 = vmatprep.subr.bf16.mxu0 %v652
    %1332 = vmatpush1.bf16.msra.mxu0 %v651
    %1333 = vmatprep.subr.bf16.mxu0 %v648
    %1334 = vmatpush1.bf16.msra.mxu0 %v647
    %1335 = vmatprep.subr.bf16.mxu0 %v644
    %1336 = vmatpush1.bf16.msra.mxu0 %v643
    %1337 = vmatprep.subr.bf16.mxu0 %v640
    %1338 = vmatpush1.bf16.msra.mxu0 %v639
    %1339 = vmatprep.subr.bf16.mxu0 %v636
    %1340 = vmatpush1.bf16.msra.mxu0 %v635
    %1341 = vmatprep.subr.bf16.mxu0 %v632
    %1342 = vmatpush1.bf16.msra.mxu0 %v631
    %1343 = vmatprep.subr.bf16.mxu0 %v628
    %1344 = vmatpush1.bf16.msra.mxu0 %v627
    %1345 = vmatprep.subr.bf16.mxu0 0
    %1346 = vmatpush2.bf16.msra.mxu0 0
    %1347 = vmatprep.subr.bf16.mxu0 0
    %1348 = vmatpush2.bf16.msra.mxu0 0
    %1349 = vmatprep.subr.bf16.mxu0 0
    %1350 = vmatpush2.bf16.msra.mxu0 0
    %1351 = vmatprep.subr.bf16.mxu0 0
    %1352 = vmatpush2.bf16.msra.mxu0 0
    %1353 = vmatprep.subr.bf16.mxu0 0
    %1354 = vmatpush2.bf16.msra.mxu0 0
    %1355 = vmatprep.subr.bf16.mxu0 0
    %1356 = vmatpush2.bf16.msra.mxu0 0
    %1357 = vmatprep.subr.bf16.mxu0 0
    %1358 = vmatpush2.bf16.msra.mxu0 0
    %1359 = vmatprep.subr.bf16.mxu0 0
    %1360 = vmatpush2.bf16.msra.mxu0 0
    %1361 = vmatprep.mubr.bf16.mxu0 0
    %1362 = vmatmul.mubr.bf16.gmra.mxu0 %v1278
    %v1363 = vpop.f32.mrf.mxu0
    %v1364 = vadd.f32 0.0, %v1363
    %v1365 = vpop.f32.mrf.mxu0
    %v1366 = vadd.f32 0.0, %v1365
    %v1367 = vpop.f32.mrf.mxu0
    %v1368 = vpop.f32.mrf.mxu0
    %1369 = vdwg.mxu0
    %v1370 = vadd.f32 %v1284, %v1323
    %v1371 = vadd.f32 %v1285, %v1325
    %v1372 = vadd.f32 %v1286, %v1364
    %v1373 = vadd.f32 %v1287, %v1366
    %v1374 = vxor.u32 %v1370, 2147483648
    %v1375 = vmul.f32 %v1374, 1.442695
    %v1376 = vpow.pop %v1375
    %v1377 = vadd.f32 %v1376, 1.0
    %v1378 = vrcp.pop %v1377
    %v1379 = vmul.f32 1.0, %v1378
    %v1380 = vxor.u32 %v1371, 2147483648
    %v1381 = vmul.f32 %v1380, 1.442695
    %v1382 = vpow.pop %v1381
    %v1383 = vadd.f32 %v1382, 1.0
    %v1384 = vrcp.pop %v1383
    %v1385 = vmul.f32 1.0, %v1384
    %v1386 = vtanh.pop %v1372
    %v1387 = vxor.u32 %v1373, 2147483648
    %v1388 = vmul.f32 %v1387, 1.442695
    %v1389 = vpow.pop %v1388
    %v1390 = vadd.f32 %v1389, 1.0
    %v1391 = vrcp.pop %v1390
    %v1392 = vmul.f32 1.0, %v1391
    %v1393 = vmul.f32 %v1385, %v1275
    %v1394 = vmul.f32 %v1379, %v1386
    %v1395 = vadd.f32 %v1393, %v1394
    %v1396 = vtanh.pop %v1395
    %v1397 = vmul.f32 %v1392, %v1396
    %v1398 = vpack.c.bf16 %v1397, %v1397
    %s1399 = scalar_lea.vmem %s6, 20
    %1400 = vst [vmem:[%s1399] sm:$0xf] %v1398
    %s1401 = smul.u32 6, 4
    %s1402 = smul.addr %s1401, 8
    %s1403 = scalar_lea.vmem [#allocation2], %s1402
    %v1404 = vld [vmem:[%s1403] sm:$0xff]
    %v1405 = vld [vmem:[%s1403 + $0x8] sm:$0xff]
    %v1406 = vld [vmem:[%s1403 + $0x10] sm:$0xff]
    %v1407 = vld [vmem:[%s1403 + $0x18] sm:$0xff]
    %1408 = vmatprep.subr.bf16.mxu0 %v654
    %1409 = vmatpush1.bf16.msra.mxu0 %v653
    %1410 = vmatprep.subr.bf16.mxu0 %v650
    %1411 = vmatpush1.bf16.msra.mxu0 %v649
    %1412 = vmatprep.subr.bf16.mxu0 %v646
    %1413 = vmatpush1.bf16.msra.mxu0 %v645
    %1414 = vmatprep.subr.bf16.mxu0 %v642
    %1415 = vmatpush1.bf16.msra.mxu0 %v641
    %1416 = vmatprep.subr.bf16.mxu0 %v638
    %1417 = vmatpush1.bf16.msra.mxu0 %v637
    %1418 = vmatprep.subr.bf16.mxu0 %v634
    %1419 = vmatpush1.bf16.msra.mxu0 %v633
    %1420 = vmatprep.subr.bf16.mxu0 %v630
    %1421 = vmatpush1.bf16.msra.mxu0 %v629
    %1422 = vmatprep.subr.bf16.mxu0 %v626
    %1423 = vmatpush1.bf16.msra.mxu0 %v625
    %1424 = vmatprep.subr.bf16.mxu0 0
    %1425 = vmatpush2.bf16.msra.mxu0 0
    %1426 = vmatprep.subr.bf16.mxu0 0
    %1427 = vmatpush2.bf16.msra.mxu0 0
    %1428 = vmatprep.subr.bf16.mxu0 0
    %1429 = vmatpush2.bf16.msra.mxu0 0
    %1430 = vmatprep.subr.bf16.mxu0 0
    %1431 = vmatpush2.bf16.msra.mxu0 0
    %1432 = vmatprep.subr.bf16.mxu0 0
    %1433 = vmatpush2.bf16.msra.mxu0 0
    %1434 = vmatprep.subr.bf16.mxu0 0
    %1435 = vmatpush2.bf16.msra.mxu0 0
    %1436 = vmatprep.subr.bf16.mxu0 0
    %1437 = vmatpush2.bf16.msra.mxu0 0
    %1438 = vmatprep.subr.bf16.mxu0 0
    %1439 = vmatpush2.bf16.msra.mxu0 0
    %1440 = vmatprep.mubr.bf16.mxu0 0
    %1441 = vmatmul.mubr.bf16.gmra.mxu0 %v1398
    %v1442 = vpop.f32.mrf.mxu0
    %v1443 = vadd.f32 0.0, %v1442
    %v1444 = vpop.f32.mrf.mxu0
    %v1445 = vadd.f32 0.0, %v1444
    %v1446 = vpop.f32.mrf.mxu0
    %v1447 = vpop.f32.mrf.mxu0
    %1448 = vdwg.mxu0
    %1449 = vmatprep.subr.bf16.mxu0 %v656
    %1450 = vmatpush1.bf16.msra.mxu0 %v655
    %1451 = vmatprep.subr.bf16.mxu0 %v652
    %1452 = vmatpush1.bf16.msra.mxu0 %v651
    %1453 = vmatprep.subr.bf16.mxu0 %v648
    %1454 = vmatpush1.bf16.msra.mxu0 %v647
    %1455 = vmatprep.subr.bf16.mxu0 %v644
    %1456 = vmatpush1.bf16.msra.mxu0 %v643
    %1457 = vmatprep.subr.bf16.mxu0 %v640
    %1458 = vmatpush1.bf16.msra.mxu0 %v639
    %1459 = vmatprep.subr.bf16.mxu0 %v636
    %1460 = vmatpush1.bf16.msra.mxu0 %v635
    %1461 = vmatprep.subr.bf16.mxu0 %v632
    %1462 = vmatpush1.bf16.msra.mxu0 %v631
    %1463 = vmatprep.subr.bf16.mxu0 %v628
    %1464 = vmatpush1.bf16.msra.mxu0 %v627
    %1465 = vmatprep.subr.bf16.mxu0 0
    %1466 = vmatpush2.bf16.msra.mxu0 0
    %1467 = vmatprep.subr.bf16.mxu0 0
    %1468 = vmatpush2.bf16.msra.mxu0 0
    %1469 = vmatprep.subr.bf16.mxu0 0
    %1470 = vmatpush2.bf16.msra.mxu0 0
    %1471 = vmatprep.subr.bf16.mxu0 0
    %1472 = vmatpush2.bf16.msra.mxu0 0
    %1473 = vmatprep.subr.bf16.mxu0 0
    %1474 = vmatpush2.bf16.msra.mxu0 0
    %1475 = vmatprep.subr.bf16.mxu0 0
    %1476 = vmatpush2.bf16.msra.mxu0 0
    %1477 = vmatprep.subr.bf16.mxu0 0
    %1478 = vmatpush2.bf16.msra.mxu0 0
    %1479 = vmatprep.subr.bf16.mxu0 0
    %1480 = vmatpush2.bf16.msra.mxu0 0
    %1481 = vmatprep.mubr.bf16.mxu0 0
    %1482 = vmatmul.mubr.bf16.gmra.mxu0 %v1398
    %v1483 = vpop.f32.mrf.mxu0
    %v1484 = vadd.f32 0.0, %v1483
    %v1485 = vpop.f32.mrf.mxu0
    %v1486 = vadd.f32 0.0, %v1485
    %v1487 = vpop.f32.mrf.mxu0
    %v1488 = vpop.f32.mrf.mxu0
    %1489 = vdwg.mxu0
    %v1490 = vadd.f32 %v1404, %v1443
    %v1491 = vadd.f32 %v1405, %v1445
    %v1492 = vadd.f32 %v1406, %v1484
    %v1493 = vadd.f32 %v1407, %v1486
    %v1494 = vxor.u32 %v1490, 2147483648
    %v1495 = vmul.f32 %v1494, 1.442695
    %v1496 = vpow.pop %v1495
    %v1497 = vadd.f32 %v1496, 1.0
    %v1498 = vrcp.pop %v1497
    %v1499 = vmul.f32 1.0, %v1498
    %v1500 = vxor.u32 %v1491, 2147483648
    %v1501 = vmul.f32 %v1500, 1.442695
    %v1502 = vpow.pop %v1501
    %v1503 = vadd.f32 %v1502, 1.0
    %v1504 = vrcp.pop %v1503
    %v1505 = vmul.f32 1.0, %v1504
    %v1506 = vtanh.pop %v1492
    %v1507 = vxor.u32 %v1493, 2147483648
    %v1508 = vmul.f32 %v1507, 1.442695
    %v1509 = vpow.pop %v1508
    %v1510 = vadd.f32 %v1509, 1.0
    %v1511 = vrcp.pop %v1510
    %v1512 = vmul.f32 1.0, %v1511
    %v1513 = vmul.f32 %v1505, %v1395
    %v1514 = vmul.f32 %v1499, %v1506
    %v1515 = vadd.f32 %v1513, %v1514
    %v1516 = vtanh.pop %v1515
    %v1517 = vmul.f32 %v1512, %v1516
    %v1518 = vpack.c.bf16 %v1517, %v1517
    %s1519 = scalar_lea.vmem %s6, 24
    %1520 = vst [vmem:[%s1519] sm:$0xf] %v1518
    %s1521 = smul.u32 7, 4
    %s1522 = smul.addr %s1521, 8
    %s1523 = scalar_lea.vmem [#allocation2], %s1522
    %v1524 = vld [vmem:[%s1523] sm:$0xff]
    %v1525 = vld [vmem:[%s1523 + $0x8] sm:$0xff]
    %v1526 = vld [vmem:[%s1523 + $0x10] sm:$0xff]
    %v1527 = vld [vmem:[%s1523 + $0x18] sm:$0xff]
    %1528 = vmatprep.subr.bf16.mxu0 %v654
    %1529 = vmatpush1.bf16.msra.mxu0 %v653
    %1530 = vmatprep.subr.bf16.mxu0 %v650
    %1531 = vmatpush1.bf16.msra.mxu0 %v649
    %1532 = vmatprep.subr.bf16.mxu0 %v646
    %1533 = vmatpush1.bf16.msra.mxu0 %v645
    %1534 = vmatprep.subr.bf16.mxu0 %v642
    %1535 = vmatpush1.bf16.msra.mxu0 %v641
    %1536 = vmatprep.subr.bf16.mxu0 %v638
    %1537 = vmatpush1.bf16.msra.mxu0 %v637
    %1538 = vmatprep.subr.bf16.mxu0 %v634
    %1539 = vmatpush1.bf16.msra.mxu0 %v633
    %1540 = vmatprep.subr.bf16.mxu0 %v630
    %1541 = vmatpush1.bf16.msra.mxu0 %v629
    %1542 = vmatprep.subr.bf16.mxu0 %v626
    %1543 = vmatpush1.bf16.msra.mxu0 %v625
    %1544 = vmatprep.subr.bf16.mxu0 0
    %1545 = vmatpush2.bf16.msra.mxu0 0
    %1546 = vmatprep.subr.bf16.mxu0 0
    %1547 = vmatpush2.bf16.msra.mxu0 0
    %1548 = vmatprep.subr.bf16.mxu0 0
    %1549 = vmatpush2.bf16.msra.mxu0 0
    %1550 = vmatprep.subr.bf16.mxu0 0
    %1551 = vmatpush2.bf16.msra.mxu0 0
    %1552 = vmatprep.subr.bf16.mxu0 0
    %1553 = vmatpush2.bf16.msra.mxu0 0
    %1554 = vmatprep.subr.bf16.mxu0 0
    %1555 = vmatpush2.bf16.msra.mxu0 0
    %1556 = vmatprep.subr.bf16.mxu0 0
    %1557 = vmatpush2.bf16.msra.mxu0 0
    %1558 = vmatprep.subr.bf16.mxu0 0
    %1559 = vmatpush2.bf16.msra.mxu0 0
    %1560 = vmatprep.mubr.bf16.mxu0 0
    %1561 = vmatmul.mubr.bf16.gmra.mxu0 %v1518
    %v1562 = vpop.f32.mrf.mxu0
    %v1563 = vadd.f32 0.0, %v1562
    %v1564 = vpop.f32.mrf.mxu0
    %v1565 = vadd.f32 0.0, %v1564
    %v1566 = vpop.f32.mrf.mxu0
    %v1567 = vpop.f32.mrf.mxu0
    %1568 = vdwg.mxu0
    %1569 = vmatprep.subr.bf16.mxu0 %v656
    %1570 = vmatpush1.bf16.msra.mxu0 %v655
    %1571 = vmatprep.subr.bf16.mxu0 %v652
    %1572 = vmatpush1.bf16.msra.mxu0 %v651
    %1573 = vmatprep.subr.bf16.mxu0 %v648
    %1574 = vmatpush1.bf16.msra.mxu0 %v647
    %1575 = vmatprep.subr.bf16.mxu0 %v644
    %1576 = vmatpush1.bf16.msra.mxu0 %v643
    %1577 = vmatprep.subr.bf16.mxu0 %v640
    %1578 = vmatpush1.bf16.msra.mxu0 %v639
    %1579 = vmatprep.subr.bf16.mxu0 %v636
    %1580 = vmatpush1.bf16.msra.mxu0 %v635
    %1581 = vmatprep.subr.bf16.mxu0 %v632
    %1582 = vmatpush1.bf16.msra.mxu0 %v631
    %1583 = vmatprep.subr.bf16.mxu0 %v628
    %1584 = vmatpush1.bf16.msra.mxu0 %v627
    %1585 = vmatprep.subr.bf16.mxu0 0
    %1586 = vmatpush2.bf16.msra.mxu0 0
    %1587 = vmatprep.subr.bf16.mxu0 0
    %1588 = vmatpush2.bf16.msra.mxu0 0
    %1589 = vmatprep.subr.bf16.mxu0 0
    %1590 = vmatpush2.bf16.msra.mxu0 0
    %1591 = vmatprep.subr.bf16.mxu0 0
    %1592 = vmatpush2.bf16.msra.mxu0 0
    %1593 = vmatprep.subr.bf16.mxu0 0
    %1594 = vmatpush2.bf16.msra.mxu0 0
    %1595 = vmatprep.subr.bf16.mxu0 0
    %1596 = vmatpush2.bf16.msra.mxu0 0
    %1597 = vmatprep.subr.bf16.mxu0 0
    %1598 = vmatpush2.bf16.msra.mxu0 0
    %1599 = vmatprep.subr.bf16.mxu0 0
    %1600 = vmatpush2.bf16.msra.mxu0 0
    %1601 = vmatprep.mubr.bf16.mxu0 0
    %1602 = vmatmul.mubr.bf16.gmra.mxu0 %v1518
    %v1603 = vpop.f32.mrf.mxu0
    %v1604 = vadd.f32 0.0, %v1603
    %v1605 = vpop.f32.mrf.mxu0
    %v1606 = vadd.f32 0.0, %v1605
    %v1607 = vpop.f32.mrf.mxu0
    %v1608 = vpop.f32.mrf.mxu0
    %1609 = vdwg.mxu0
    %v1610 = vadd.f32 %v1524, %v1563
    %v1611 = vadd.f32 %v1525, %v1565
    %v1612 = vadd.f32 %v1526, %v1604
    %v1613 = vadd.f32 %v1527, %v1606
    %v1614 = vxor.u32 %v1610, 2147483648
    %v1615 = vmul.f32 %v1614, 1.442695
    %v1616 = vpow.pop %v1615
    %v1617 = vadd.f32 %v1616, 1.0
    %v1618 = vrcp.pop %v1617
    %v1619 = vmul.f32 1.0, %v1618
    %v1620 = vxor.u32 %v1611, 2147483648
    %v1621 = vmul.f32 %v1620, 1.442695
    %v1622 = vpow.pop %v1621
    %v1623 = vadd.f32 %v1622, 1.0
    %v1624 = vrcp.pop %v1623
    %v1625 = vmul.f32 1.0, %v1624
    %v1626 = vtanh.pop %v1612
    %v1627 = vxor.u32 %v1613, 2147483648
    %v1628 = vmul.f32 %v1627, 1.442695
    %v1629 = vpow.pop %v1628
    %v1630 = vadd.f32 %v1629, 1.0
    %v1631 = vrcp.pop %v1630
    %v1632 = vmul.f32 1.0, %v1631
    %v1633 = vmul.f32 %v1625, %v1515
    %v1634 = vmul.f32 %v1619, %v1626
    %v1635 = vadd.f32 %v1633, %v1634
    %v1636 = vtanh.pop %v1635
    %v1637 = vmul.f32 %v1632, %v1636
    %v1638 = vpack.c.bf16 %v1637, %v1637
    %s1639 = scalar_lea.vmem %s6, 28
    %1640 = vst [vmem:[%s1639] sm:$0xf] %v1638
    %1641 = vst [vmem:[%s7] sm:$0xff] %v1637
    %1642 = vst [vmem:[%s8] sm:$0xff] %v1635
    // Predicated region
    $region38: #{rnn_model_forward.3} parent=1 // pred_check
      _
    $region39: #{rnn_model_forward.3} parent=1 // pred_check_branch
      %1644 = sbr.rel (0) target = $region41
    $region40: #{rnn_model_forward.3} parent=1 // pred_region
      _
    $region41: #{rnn_model_forward.3} parent=1 // pred_fallthru
      _
    // Predicated region
    $region42: #{rnn_model_forward.3} parent=1 // pred_check
      _
    $region43: #{rnn_model_forward.3} parent=1 // pred_check_branch
      %1646 = sbr.rel (0) target = $region45
    $region44: #{rnn_model_forward.3} parent=1 // pred_region
      _
    $region45: #{rnn_model_forward.3} parent=1 // pred_fallthru
      _
    // Predicated region
    $region46: #{rnn_model_forward.3} parent=1 // pred_check
      _
    $region47: #{rnn_model_forward.3} parent=1 // pred_check_branch
      %1648 = sbr.rel (0) target = $region49
    $region48: #{rnn_model_forward.3} parent=1 // pred_region
      _
    $region49: #{rnn_model_forward.3} parent=1 // pred_fallthru
      _
    // Predicated region
    $region50: #{rnn_model_forward.3} parent=1 // pred_check
      _
    $region51: #{rnn_model_forward.3} parent=1 // pred_check_branch
      %1650 = sbr.rel (0) target = $region53
    $region52: #{rnn_model_forward.3} parent=1 // pred_region
      _
    $region53: #{rnn_model_forward.3} parent=1 // pred_fallthru
      _
    // Predicated region
    $region54: #{rnn_model_forward.3} parent=1 // pred_check
      _
    $region55: #{rnn_model_forward.3} parent=1 // pred_check_branch
      %1652 = sbr.rel (0) target = $region57
    $region56: #{rnn_model_forward.3} parent=1 // pred_region
      _
    $region57: #{rnn_model_forward.3} parent=1 // pred_fallthru
      _
    // Predicated region
    $region58: #{rnn_model_forward.3} parent=1 // pred_check
      _
    $region59: #{rnn_model_forward.3} parent=1 // pred_check_branch
      %1654 = sbr.rel (0) target = $region61
    $region60: #{rnn_model_forward.3} parent=1 // pred_region
      _
    $region61: #{rnn_model_forward.3} parent=1 // pred_fallthru
      _
    %1655 = vsyncpa [#allocation4], 1
    %1656 = vsyncpa [#allocation6], 1

// kernel: rnn_model_forward.4
$region0: #{rnn_model_forward.4}
  #allocation0 [shape = 'u32[]', space=smem, size = 0x4, offset = 0x4, fixed_abs, tag = 'smem constant byte address 0x4 - core index']
  #allocation1 [shape = 'u32[144,128]{1,0:T(1,128)}', space=vmem, size = 0x12000, scoped, tag = 'internal scratch']
  #allocation2 [shape = 'f32[64,512]{1,0:T(8,128)}', space=vmem, size = 0x20000, scoped, tag = 'scratch operand']
  %s0 = inlined_call_operand.vmem [shape: bf16[64,128], index: 0, kind: input, shape index: {}]
  %s1 = inlined_call_operand.vmem [shape: bf16[128,512], index: 1, kind: input, shape index: {}]
  %s2 = inlined_call_operand.vmem [shape: bf16[128,512], index: 2, kind: input, shape index: {}]
  %s3 = inlined_call_operand.vmem [shape: f32[1,512], index: 3, kind: input, shape index: {}]
  %s4 = inlined_call_operand.vmem [shape: f32[8,128], index: 4, kind: input, shape index: {}]
  %s5 = inlined_call_operand.vmem [shape: f32[8,128], index: 5, kind: input, shape index: {}]
  %s6 = inlined_call_operand.vmem [shape: bf16[8,8,128], index: 6, kind: output, shape index: {0}]
  %s7 = inlined_call_operand.vmem [shape: f32[8,128], index: 7, kind: output, shape index: {1}]
  %s8 = inlined_call_operand.vmem [shape: f32[8,128], index: 8, kind: output, shape index: {2}]
  %9 = xla_tuple %s6, %s7, %s8
  %s10 = sld [smem:[#allocation0]]
  $region54: #{rnn_model_forward.4} parent=0
    _
  %s12 = ssub.s32 1, %s10
  %s13 = scalar_select 0, %s12, %s10
  // Predicated region
  $region2: #{rnn_model_forward.4} parent=0 // pred_check
    _
  $region3: #{rnn_model_forward.4} parent=0 // pred_check_branch
    %15 = sbr.rel (0) target = $region5
  $region4: #{rnn_model_forward.4} parent=0 // pred_region
    _
  $region5: #{rnn_model_forward.4} parent=0 // pred_fallthru
    _
  // Predicated region
  $region6: #{rnn_model_forward.4} parent=0 // pred_check
    _
  $region7: #{rnn_model_forward.4} parent=0 // pred_check_branch
    %17 = sbr.rel (0) target = $region9
  $region8: #{rnn_model_forward.4} parent=0 // pred_region
    _
  $region9: #{rnn_model_forward.4} parent=0 // pred_fallthru
    _
  // Predicated region
  $region10: #{rnn_model_forward.4} parent=0 // pred_check
    _
  $region11: #{rnn_model_forward.4} parent=0 // pred_check_branch
    %19 = sbr.rel (0) target = $region13
  $region12: #{rnn_model_forward.4} parent=0 // pred_region
    _
  $region13: #{rnn_model_forward.4} parent=0 // pred_fallthru
    _
  // Predicated region
  $region14: #{rnn_model_forward.4} parent=0 // pred_check
    _
  $region15: #{rnn_model_forward.4} parent=0 // pred_check_branch
    %21 = sbr.rel (0) target = $region17
  $region16: #{rnn_model_forward.4} parent=0 // pred_region
    _
  $region17: #{rnn_model_forward.4} parent=0 // pred_fallthru
    _
  // Predicated region
  $region18: #{rnn_model_forward.4} parent=0 // pred_check
    _
  $region19: #{rnn_model_forward.4} parent=0 // pred_check_branch
    %23 = sbr.rel (0) target = $region21
  $region20: #{rnn_model_forward.4} parent=0 // pred_region
    _
  $region21: #{rnn_model_forward.4} parent=0 // pred_fallthru
    _
  // Predicated region
  $region22: #{rnn_model_forward.4} parent=0 // pred_check
    _
  $region23: #{rnn_model_forward.4} parent=0 // pred_check_branch
    %25 = sbr.rel (0) target = $region25
  $region24: #{rnn_model_forward.4} parent=0 // pred_region
    _
  $region25: #{rnn_model_forward.4} parent=0 // pred_fallthru
    _
  %p27 = scmp.eq.s32.totalorder 0, 0
  // Predicated region
  $region26: #{rnn_model_forward.4} parent=0 // pred_check
    %p28 = pneg %p27
  $region27: #{rnn_model_forward.4} parent=0 // pred_check_branch
    %30 = sbr.rel (%p28) target = $region29
  $region28: #{rnn_model_forward.4} parent=0 // pred_region
    %v31 = vld [vmem:[%s4] sm:$0xff]
    %32 = vst [vmem:[%s7] sm:$0xff] %v31
    %v33 = vld [vmem:[%s5] sm:$0xff]
    %34 = vst [vmem:[%s8] sm:$0xff] %v33
  $region29: #{rnn_model_forward.4} parent=0 // pred_fallthru
    _
  %v35 = vld [vmem:[%s0] sm:$0xf]
  %v36 = vld [vmem:[%s0 + $0x4] sm:$0xf]
  %v37 = vld [vmem:[%s0 + $0x8] sm:$0xf]
  %v38 = vld [vmem:[%s0 + $0xc] sm:$0xf]
  %v39 = vld [vmem:[%s0 + $0x10] sm:$0xf]
  %v40 = vld [vmem:[%s0 + $0x14] sm:$0xf]
  %v41 = vld [vmem:[%s0 + $0x18] sm:$0xf]
  %v42 = vld [vmem:[%s0 + $0x1c] sm:$0xf]
  %v43 = vld [vmem:[%s1] sm:$0xff]
  %v44 = vld [vmem:[%s1 + $0x8] sm:$0xff]
  %v45 = vld [vmem:[%s1 + $0x10] sm:$0xff]
  %v46 = vld [vmem:[%s1 + $0x18] sm:$0xff]
  %v47 = vld [vmem:[%s1 + $0x20] sm:$0xff]
  %v48 = vld [vmem:[%s1 + $0x28] sm:$0xff]
  %v49 = vld [vmem:[%s1 + $0x30] sm:$0xff]
  %v50 = vld [vmem:[%s1 + $0x38] sm:$0xff]
  %v51 = vld [vmem:[%s1 + $0x40] sm:$0xff]
  %v52 = vld [vmem:[%s1 + $0x48] sm:$0xff]
  %v53 = vld [vmem:[%s1 + $0x50] sm:$0xff]
  %v54 = vld [vmem:[%s1 + $0x58] sm:$0xff]
  %v55 = vld [vmem:[%s1 + $0x60] sm:$0xff]
  %v56 = vld [vmem:[%s1 + $0x68] sm:$0xff]
  %v57 = vld [vmem:[%s1 + $0x70] sm:$0xff]
  %v58 = vld [vmem:[%s1 + $0x78] sm:$0xff]
  %v59 = vld [vmem:[%s1 + $0x80] sm:$0xff]
  %v60 = vld [vmem:[%s1 + $0x88] sm:$0xff]
  %v61 = vld [vmem:[%s1 + $0x90] sm:$0xff]
  %v62 = vld [vmem:[%s1 + $0x98] sm:$0xff]
  %v63 = vld [vmem:[%s1 + $0xa0] sm:$0xff]
  %v64 = vld [vmem:[%s1 + $0xa8] sm:$0xff]
  %v65 = vld [vmem:[%s1 + $0xb0] sm:$0xff]
  %v66 = vld [vmem:[%s1 + $0xb8] sm:$0xff]
  %v67 = vld [vmem:[%s1 + $0xc0] sm:$0xff]
  %v68 = vld [vmem:[%s1 + $0xc8] sm:$0xff]
  %v69 = vld [vmem:[%s1 + $0xd0] sm:$0xff]
  %v70 = vld [vmem:[%s1 + $0xd8] sm:$0xff]
  %v71 = vld [vmem:[%s1 + $0xe0] sm:$0xff]
  %v72 = vld [vmem:[%s1 + $0xe8] sm:$0xff]
  %v73 = vld [vmem:[%s1 + $0xf0] sm:$0xff]
  %v74 = vld [vmem:[%s1 + $0xf8] sm:$0xff]
  %v75 = vld [vmem:[%s3] sm:$0xf]
  %v77 = vlaneseq
  %v78 = vshrl.u32 %v77, 7
  %v79 = vsub.s32 0, %v78
  %v80 = vrot.slane %v75, %v79
  %v81 = vlaneseq
  %v82 = vshrl.u32 %v81, 7
  %v83 = vsub.s32 1, %v82
  %v84 = vrot.slane %v75, %v83
  %v85 = vlaneseq
  %v86 = vshrl.u32 %v85, 7
  %v87 = vsub.s32 2, %v86
  %v88 = vrot.slane %v75, %v87
  %v89 = vlaneseq
  %v90 = vshrl.u32 %v89, 7
  %v91 = vsub.s32 3, %v90
  %v92 = vrot.slane %v75, %v91
  %v105 = vunpack.c.l.b16 %v35
  %v106 = vunpack.c.l.b16 %v36
  %v107 = vunpack.c.l.b16 %v37
  %v108 = vunpack.c.l.b16 %v38
  %v109 = vunpack.c.l.b16 %v39
  %v110 = vunpack.c.l.b16 %v40
  %v111 = vunpack.c.l.b16 %v41
  %v112 = vunpack.c.l.b16 %v42
  %v113 = vpack.c.b16 %v106, %v105
  %v114 = vpack.c.b16 %v108, %v107
  %v115 = vpack.c.b16 %v110, %v109
  %v116 = vpack.c.b16 %v112, %v111
  %v153 = vunpack.c.l.b16 %v43
  %v154 = vunpack.c.h.b16 %v43
  %v155 = vunpack.c.l.b16 %v44
  %v156 = vunpack.c.h.b16 %v44
  %v157 = vunpack.c.l.b16 %v45
  %v158 = vunpack.c.h.b16 %v45
  %v159 = vunpack.c.l.b16 %v46
  %v160 = vunpack.c.h.b16 %v46
  %v161 = vunpack.c.l.b16 %v47
  %v162 = vunpack.c.h.b16 %v47
  %v163 = vunpack.c.l.b16 %v48
  %v164 = vunpack.c.h.b16 %v48
  %v165 = vunpack.c.l.b16 %v49
  %v166 = vunpack.c.h.b16 %v49
  %v167 = vunpack.c.l.b16 %v50
  %v168 = vunpack.c.h.b16 %v50
  %v169 = vunpack.c.l.b16 %v51
  %v170 = vunpack.c.h.b16 %v51
  %v171 = vunpack.c.l.b16 %v52
  %v172 = vunpack.c.h.b16 %v52
  %v173 = vunpack.c.l.b16 %v53
  %v174 = vunpack.c.h.b16 %v53
  %v175 = vunpack.c.l.b16 %v54
  %v176 = vunpack.c.h.b16 %v54
  %v177 = vunpack.c.l.b16 %v55
  %v178 = vunpack.c.h.b16 %v55
  %v179 = vunpack.c.l.b16 %v56
  %v180 = vunpack.c.h.b16 %v56
  %v181 = vunpack.c.l.b16 %v57
  %v182 = vunpack.c.h.b16 %v57
  %v183 = vunpack.c.l.b16 %v58
  %v184 = vunpack.c.h.b16 %v58
  %v185 = vunpack.c.l.b16 %v59
  %v186 = vunpack.c.h.b16 %v59
  %v187 = vunpack.c.l.b16 %v60
  %v188 = vunpack.c.h.b16 %v60
  %v189 = vunpack.c.l.b16 %v61
  %v190 = vunpack.c.h.b16 %v61
  %v191 = vunpack.c.l.b16 %v62
  %v192 = vunpack.c.h.b16 %v62
  %v193 = vunpack.c.l.b16 %v63
  %v194 = vunpack.c.h.b16 %v63
  %v195 = vunpack.c.l.b16 %v64
  %v196 = vunpack.c.h.b16 %v64
  %v197 = vunpack.c.l.b16 %v65
  %v198 = vunpack.c.h.b16 %v65
  %v199 = vunpack.c.l.b16 %v66
  %v200 = vunpack.c.h.b16 %v66
  %v201 = vunpack.c.l.b16 %v67
  %v202 = vunpack.c.h.b16 %v67
  %v203 = vunpack.c.l.b16 %v68
  %v204 = vunpack.c.h.b16 %v68
  %v205 = vunpack.c.l.b16 %v69
  %v206 = vunpack.c.h.b16 %v69
  %v207 = vunpack.c.l.b16 %v70
  %v208 = vunpack.c.h.b16 %v70
  %v209 = vunpack.c.l.b16 %v71
  %v210 = vunpack.c.h.b16 %v71
  %v211 = vunpack.c.l.b16 %v72
  %v212 = vunpack.c.h.b16 %v72
  %v213 = vunpack.c.l.b16 %v73
  %v214 = vunpack.c.h.b16 %v73
  %v215 = vunpack.c.l.b16 %v74
  %v216 = vunpack.c.h.b16 %v74
  %v217 = vpack.c.b16 %v157, %v153
  %v218 = vpack.c.b16 %v158, %v154
  %v219 = vpack.c.b16 %v159, %v155
  %v220 = vpack.c.b16 %v160, %v156
  %v221 = vpack.c.b16 %v165, %v161
  %v222 = vpack.c.b16 %v166, %v162
  %v223 = vpack.c.b16 %v167, %v163
  %v224 = vpack.c.b16 %v168, %v164
  %v225 = vpack.c.b16 %v173, %v169
  %v226 = vpack.c.b16 %v174, %v170
  %v227 = vpack.c.b16 %v175, %v171
  %v228 = vpack.c.b16 %v176, %v172
  %v229 = vpack.c.b16 %v181, %v177
  %v230 = vpack.c.b16 %v182, %v178
  %v231 = vpack.c.b16 %v183, %v179
  %v232 = vpack.c.b16 %v184, %v180
  %v233 = vpack.c.b16 %v189, %v185
  %v234 = vpack.c.b16 %v190, %v186
  %v235 = vpack.c.b16 %v191, %v187
  %v236 = vpack.c.b16 %v192, %v188
  %v237 = vpack.c.b16 %v197, %v193
  %v238 = vpack.c.b16 %v198, %v194
  %v239 = vpack.c.b16 %v199, %v195
  %v240 = vpack.c.b16 %v200, %v196
  %v241 = vpack.c.b16 %v205, %v201
  %v242 = vpack.c.b16 %v206, %v202
  %v243 = vpack.c.b16 %v207, %v203
  %v244 = vpack.c.b16 %v208, %v204
  %v245 = vpack.c.b16 %v213, %v209
  %v246 = vpack.c.b16 %v214, %v210
  %v247 = vpack.c.b16 %v215, %v211
  %v248 = vpack.c.b16 %v216, %v212
  %281 = vmatprep.subr.bf16.mxu0 %v246
  %282 = vmatpush1.bf16.msra.mxu0 %v245
  %283 = vmatprep.subr.bf16.mxu0 %v242
  %284 = vmatpush1.bf16.msra.mxu0 %v241
  %285 = vmatprep.subr.bf16.mxu0 %v238
  %286 = vmatpush1.bf16.msra.mxu0 %v237
  %287 = vmatprep.subr.bf16.mxu0 %v234
  %288 = vmatpush1.bf16.msra.mxu0 %v233
  %289 = vmatprep.subr.bf16.mxu0 %v230
  %290 = vmatpush1.bf16.msra.mxu0 %v229
  %291 = vmatprep.subr.bf16.mxu0 %v226
  %292 = vmatpush1.bf16.msra.mxu0 %v225
  %293 = vmatprep.subr.bf16.mxu0 %v222
  %294 = vmatpush1.bf16.msra.mxu0 %v221
  %295 = vmatprep.subr.bf16.mxu0 %v218
  %296 = vmatpush1.bf16.msra.mxu0 %v217
  %297 = vmatprep.subr.bf16.mxu0 0
  %298 = vmatpush2.bf16.msra.mxu0 0
  %299 = vmatprep.subr.bf16.mxu0 0
  %300 = vmatpush2.bf16.msra.mxu0 0
  %301 = vmatprep.subr.bf16.mxu0 0
  %302 = vmatpush2.bf16.msra.mxu0 0
  %303 = vmatprep.subr.bf16.mxu0 0
  %304 = vmatpush2.bf16.msra.mxu0 0
  %305 = vmatprep.subr.bf16.mxu0 0
  %306 = vmatpush2.bf16.msra.mxu0 0
  %307 = vmatprep.subr.bf16.mxu0 0
  %308 = vmatpush2.bf16.msra.mxu0 0
  %309 = vmatprep.subr.bf16.mxu0 0
  %310 = vmatpush2.bf16.msra.mxu0 0
  %311 = vmatprep.subr.bf16.mxu0 0
  %312 = vmatpush2.bf16.msra.mxu0 0
  %313 = vmatprep.mubr.bf16.mxu0 0
  %314 = vmatmul.mubr.bf16.gmra.mxu0 %v113
  %v315 = vpop.f32.mrf.mxu0
  %v316 = vadd.f32 %v80, %v315
  %v317 = vpop.f32.mrf.mxu0
  %v318 = vadd.f32 %v84, %v317
  %v319 = vpop.f32.mrf.mxu0
  %v320 = vadd.f32 %v80, %v319
  %v321 = vpop.f32.mrf.mxu0
  %v322 = vadd.f32 %v84, %v321
  %323 = vmatprep.mubr.bf16.mxu0 0
  %324 = vmatmul.mubr.bf16.gmra.mxu0 %v114
  %v325 = vpop.f32.mrf.mxu0
  %v326 = vadd.f32 %v80, %v325
  %v327 = vpop.f32.mrf.mxu0
  %v328 = vadd.f32 %v84, %v327
  %v329 = vpop.f32.mrf.mxu0
  %v330 = vadd.f32 %v80, %v329
  %v331 = vpop.f32.mrf.mxu0
  %v332 = vadd.f32 %v84, %v331
  %333 = vmatprep.mubr.bf16.mxu0 0
  %334 = vmatmul.mubr.bf16.gmra.mxu0 %v115
  %v335 = vpop.f32.mrf.mxu0
  %v336 = vadd.f32 %v80, %v335
  %v337 = vpop.f32.mrf.mxu0
  %v338 = vadd.f32 %v84, %v337
  %v339 = vpop.f32.mrf.mxu0
  %v340 = vadd.f32 %v80, %v339
  %v341 = vpop.f32.mrf.mxu0
  %v342 = vadd.f32 %v84, %v341
  %343 = vmatprep.mubr.bf16.mxu0 0
  %344 = vmatmul.mubr.bf16.gmra.mxu0 %v116
  %v345 = vpop.f32.mrf.mxu0
  %v346 = vadd.f32 %v80, %v345
  %v347 = vpop.f32.mrf.mxu0
  %v348 = vadd.f32 %v84, %v347
  %v349 = vpop.f32.mrf.mxu0
  %v350 = vadd.f32 %v80, %v349
  %v351 = vpop.f32.mrf.mxu0
  %v352 = vadd.f32 %v84, %v351
  %353 = vdwg.mxu0
  %354 = vmatprep.subr.bf16.mxu0 %v248
  %355 = vmatpush1.bf16.msra.mxu0 %v247
  %356 = vmatprep.subr.bf16.mxu0 %v244
  %357 = vmatpush1.bf16.msra.mxu0 %v243
  %358 = vmatprep.subr.bf16.mxu0 %v240
  %359 = vmatpush1.bf16.msra.mxu0 %v239
  %360 = vmatprep.subr.bf16.mxu0 %v236
  %361 = vmatpush1.bf16.msra.mxu0 %v235
  %362 = vmatprep.subr.bf16.mxu0 %v232
  %363 = vmatpush1.bf16.msra.mxu0 %v231
  %364 = vmatprep.subr.bf16.mxu0 %v228
  %365 = vmatpush1.bf16.msra.mxu0 %v227
  %366 = vmatprep.subr.bf16.mxu0 %v224
  %367 = vmatpush1.bf16.msra.mxu0 %v223
  %368 = vmatprep.subr.bf16.mxu0 %v220
  %369 = vmatpush1.bf16.msra.mxu0 %v219
  %370 = vmatprep.subr.bf16.mxu0 0
  %371 = vmatpush2.bf16.msra.mxu0 0
  %372 = vmatprep.subr.bf16.mxu0 0
  %373 = vmatpush2.bf16.msra.mxu0 0
  %374 = vmatprep.subr.bf16.mxu0 0
  %375 = vmatpush2.bf16.msra.mxu0 0
  %376 = vmatprep.subr.bf16.mxu0 0
  %377 = vmatpush2.bf16.msra.mxu0 0
  %378 = vmatprep.subr.bf16.mxu0 0
  %379 = vmatpush2.bf16.msra.mxu0 0
  %380 = vmatprep.subr.bf16.mxu0 0
  %381 = vmatpush2.bf16.msra.mxu0 0
  %382 = vmatprep.subr.bf16.mxu0 0
  %383 = vmatpush2.bf16.msra.mxu0 0
  %384 = vmatprep.subr.bf16.mxu0 0
  %385 = vmatpush2.bf16.msra.mxu0 0
  %386 = vmatprep.mubr.bf16.mxu0 0
  %387 = vmatmul.mubr.bf16.gmra.mxu0 %v113
  %v388 = vpop.f32.mrf.mxu0
  %v389 = vadd.f32 %v88, %v388
  %v390 = vpop.f32.mrf.mxu0
  %v391 = vadd.f32 %v92, %v390
  %v392 = vpop.f32.mrf.mxu0
  %v393 = vadd.f32 %v88, %v392
  %v394 = vpop.f32.mrf.mxu0
  %v395 = vadd.f32 %v92, %v394
  %396 = vmatprep.mubr.bf16.mxu0 0
  %397 = vmatmul.mubr.bf16.gmra.mxu0 %v114
  %v398 = vpop.f32.mrf.mxu0
  %v399 = vadd.f32 %v88, %v398
  %v400 = vpop.f32.mrf.mxu0
  %v401 = vadd.f32 %v92, %v400
  %v402 = vpop.f32.mrf.mxu0
  %v403 = vadd.f32 %v88, %v402
  %v404 = vpop.f32.mrf.mxu0
  %v405 = vadd.f32 %v92, %v404
  %406 = vmatprep.mubr.bf16.mxu0 0
  %407 = vmatmul.mubr.bf16.gmra.mxu0 %v115
  %v408 = vpop.f32.mrf.mxu0
  %v409 = vadd.f32 %v88, %v408
  %v410 = vpop.f32.mrf.mxu0
  %v411 = vadd.f32 %v92, %v410
  %v412 = vpop.f32.mrf.mxu0
  %v413 = vadd.f32 %v88, %v412
  %v414 = vpop.f32.mrf.mxu0
  %v415 = vadd.f32 %v92, %v414
  %416 = vmatprep.mubr.bf16.mxu0 0
  %417 = vmatmul.mubr.bf16.gmra.mxu0 %v116
  %v418 = vpop.f32.mrf.mxu0
  %v419 = vadd.f32 %v88, %v418
  %v420 = vpop.f32.mrf.mxu0
  %v421 = vadd.f32 %v92, %v420
  %v422 = vpop.f32.mrf.mxu0
  %v423 = vadd.f32 %v88, %v422
  %v424 = vpop.f32.mrf.mxu0
  %v425 = vadd.f32 %v92, %v424
  %426 = vdwg.mxu0
  %427 = vst [vmem:[#allocation2] sm:$0xff] %v316
  %428 = vst [vmem:[#allocation2 + $0x8] sm:$0xff] %v318
  %429 = vst [vmem:[#allocation2 + $0x10] sm:$0xff] %v389
  %430 = vst [vmem:[#allocation2 + $0x18] sm:$0xff] %v391
  %431 = vst [vmem:[#allocation2 + $0x20] sm:$0xff] %v320
  %432 = vst [vmem:[#allocation2 + $0x28] sm:$0xff] %v322
  %433 = vst [vmem:[#allocation2 + $0x30] sm:$0xff] %v393
  %434 = vst [vmem:[#allocation2 + $0x38] sm:$0xff] %v395
  %435 = vst [vmem:[#allocation2 + $0x40] sm:$0xff] %v326
  %436 = vst [vmem:[#allocation2 + $0x48] sm:$0xff] %v328
  %437 = vst [vmem:[#allocation2 + $0x50] sm:$0xff] %v399
  %438 = vst [vmem:[#allocation2 + $0x58] sm:$0xff] %v401
  %439 = vst [vmem:[#allocation2 + $0x60] sm:$0xff] %v330
  %440 = vst [vmem:[#allocation2 + $0x68] sm:$0xff] %v332
  %441 = vst [vmem:[#allocation2 + $0x70] sm:$0xff] %v403
  %442 = vst [vmem:[#allocation2 + $0x78] sm:$0xff] %v405
  %443 = vst [vmem:[#allocation2 + $0x80] sm:$0xff] %v336
  %444 = vst [vmem:[#allocation2 + $0x88] sm:$0xff] %v338
  %445 = vst [vmem:[#allocation2 + $0x90] sm:$0xff] %v409
  %446 = vst [vmem:[#allocation2 + $0x98] sm:$0xff] %v411
  %447 = vst [vmem:[#allocation2 + $0xa0] sm:$0xff] %v340
  %448 = vst [vmem:[#allocation2 + $0xa8] sm:$0xff] %v342
  %449 = vst [vmem:[#allocation2 + $0xb0] sm:$0xff] %v413
  %450 = vst [vmem:[#allocation2 + $0xb8] sm:$0xff] %v415
  %451 = vst [vmem:[#allocation2 + $0xc0] sm:$0xff] %v346
  %452 = vst [vmem:[#allocation2 + $0xc8] sm:$0xff] %v348
  %453 = vst [vmem:[#allocation2 + $0xd0] sm:$0xff] %v419
  %454 = vst [vmem:[#allocation2 + $0xd8] sm:$0xff] %v421
  %455 = vst [vmem:[#allocation2 + $0xe0] sm:$0xff] %v350
  %456 = vst [vmem:[#allocation2 + $0xe8] sm:$0xff] %v352
  %457 = vst [vmem:[#allocation2 + $0xf0] sm:$0xff] %v423
  %458 = vst [vmem:[#allocation2 + $0xf8] sm:$0xff] %v425
  %v459 = vld [vmem:[%s2] sm:$0xff]
  %v460 = vld [vmem:[%s2 + $0x8] sm:$0xff]
  %v461 = vld [vmem:[%s2 + $0x10] sm:$0xff]
  %v462 = vld [vmem:[%s2 + $0x18] sm:$0xff]
  %v463 = vld [vmem:[%s2 + $0x20] sm:$0xff]
  %v464 = vld [vmem:[%s2 + $0x28] sm:$0xff]
  %v465 = vld [vmem:[%s2 + $0x30] sm:$0xff]
  %v466 = vld [vmem:[%s2 + $0x38] sm:$0xff]
  %v467 = vld [vmem:[%s2 + $0x40] sm:$0xff]
  %v468 = vld [vmem:[%s2 + $0x48] sm:$0xff]
  %v469 = vld [vmem:[%s2 + $0x50] sm:$0xff]
  %v470 = vld [vmem:[%s2 + $0x58] sm:$0xff]
  %v471 = vld [vmem:[%s2 + $0x60] sm:$0xff]
  %v472 = vld [vmem:[%s2 + $0x68] sm:$0xff]
  %v473 = vld [vmem:[%s2 + $0x70] sm:$0xff]
  %v474 = vld [vmem:[%s2 + $0x78] sm:$0xff]
  %v475 = vld [vmem:[%s2 + $0x80] sm:$0xff]
  %v476 = vld [vmem:[%s2 + $0x88] sm:$0xff]
  %v477 = vld [vmem:[%s2 + $0x90] sm:$0xff]
  %v478 = vld [vmem:[%s2 + $0x98] sm:$0xff]
  %v479 = vld [vmem:[%s2 + $0xa0] sm:$0xff]
  %v480 = vld [vmem:[%s2 + $0xa8] sm:$0xff]
  %v481 = vld [vmem:[%s2 + $0xb0] sm:$0xff]
  %v482 = vld [vmem:[%s2 + $0xb8] sm:$0xff]
  %v483 = vld [vmem:[%s2 + $0xc0] sm:$0xff]
  %v484 = vld [vmem:[%s2 + $0xc8] sm:$0xff]
  %v485 = vld [vmem:[%s2 + $0xd0] sm:$0xff]
  %v486 = vld [vmem:[%s2 + $0xd8] sm:$0xff]
  %v487 = vld [vmem:[%s2 + $0xe0] sm:$0xff]
  %v488 = vld [vmem:[%s2 + $0xe8] sm:$0xff]
  %v489 = vld [vmem:[%s2 + $0xf0] sm:$0xff]
  %v490 = vld [vmem:[%s2 + $0xf8] sm:$0xff]
  %v491 = vld [vmem:[%s7] sm:$0xff]
  %v492 = vld [vmem:[%s8] sm:$0xff]
  %s493 = smul.u32 0, 4
  %s494 = smul.addr %s493, 8
  %s495 = scalar_lea.vmem [#allocation2], %s494
  %v496 = vld [vmem:[%s495] sm:$0xff]
  %v497 = vld [vmem:[%s495 + $0x8] sm:$0xff]
  %v498 = vld [vmem:[%s495 + $0x10] sm:$0xff]
  %v499 = vld [vmem:[%s495 + $0x18] sm:$0xff]
  %v500 = vpack.c.bf16 %v491, %v491
  %v533 = vunpack.c.l.b16 %v459
  %v534 = vunpack.c.h.b16 %v459
  %v535 = vunpack.c.l.b16 %v460
  %v536 = vunpack.c.h.b16 %v460
  %v537 = vunpack.c.l.b16 %v461
  %v538 = vunpack.c.h.b16 %v461
  %v539 = vunpack.c.l.b16 %v462
  %v540 = vunpack.c.h.b16 %v462
  %v541 = vunpack.c.l.b16 %v463
  %v542 = vunpack.c.h.b16 %v463
  %v543 = vunpack.c.l.b16 %v464
  %v544 = vunpack.c.h.b16 %v464
  %v545 = vunpack.c.l.b16 %v465
  %v546 = vunpack.c.h.b16 %v465
  %v547 = vunpack.c.l.b16 %v466
  %v548 = vunpack.c.h.b16 %v466
  %v549 = vunpack.c.l.b16 %v467
  %v550 = vunpack.c.h.b16 %v467
  %v551 = vunpack.c.l.b16 %v468
  %v552 = vunpack.c.h.b16 %v468
  %v553 = vunpack.c.l.b16 %v469
  %v554 = vunpack.c.h.b16 %v469
  %v555 = vunpack.c.l.b16 %v470
  %v556 = vunpack.c.h.b16 %v470
  %v557 = vunpack.c.l.b16 %v471
  %v558 = vunpack.c.h.b16 %v471
  %v559 = vunpack.c.l.b16 %v472
  %v560 = vunpack.c.h.b16 %v472
  %v561 = vunpack.c.l.b16 %v473
  %v562 = vunpack.c.h.b16 %v473
  %v563 = vunpack.c.l.b16 %v474
  %v564 = vunpack.c.h.b16 %v474
  %v565 = vunpack.c.l.b16 %v475
  %v566 = vunpack.c.h.b16 %v475
  %v567 = vunpack.c.l.b16 %v476
  %v568 = vunpack.c.h.b16 %v476
  %v569 = vunpack.c.l.b16 %v477
  %v570 = vunpack.c.h.b16 %v477
  %v571 = vunpack.c.l.b16 %v478
  %v572 = vunpack.c.h.b16 %v478
  %v573 = vunpack.c.l.b16 %v479
  %v574 = vunpack.c.h.b16 %v479
  %v575 = vunpack.c.l.b16 %v480
  %v576 = vunpack.c.h.b16 %v480
  %v577 = vunpack.c.l.b16 %v481
  %v578 = vunpack.c.h.b16 %v481
  %v579 = vunpack.c.l.b16 %v482
  %v580 = vunpack.c.h.b16 %v482
  %v581 = vunpack.c.l.b16 %v483
  %v582 = vunpack.c.h.b16 %v483
  %v583 = vunpack.c.l.b16 %v484
  %v584 = vunpack.c.h.b16 %v484
  %v585 = vunpack.c.l.b16 %v485
  %v586 = vunpack.c.h.b16 %v485
  %v587 = vunpack.c.l.b16 %v486
  %v588 = vunpack.c.h.b16 %v486
  %v589 = vunpack.c.l.b16 %v487
  %v590 = vunpack.c.h.b16 %v487
  %v591 = vunpack.c.l.b16 %v488
  %v592 = vunpack.c.h.b16 %v488
  %v593 = vunpack.c.l.b16 %v489
  %v594 = vunpack.c.h.b16 %v489
  %v595 = vunpack.c.l.b16 %v490
  %v596 = vunpack.c.h.b16 %v490
  %v597 = vpack.c.b16 %v537, %v533
  %v598 = vpack.c.b16 %v538, %v534
  %v599 = vpack.c.b16 %v539, %v535
  %v600 = vpack.c.b16 %v540, %v536
  %v601 = vpack.c.b16 %v545, %v541
  %v602 = vpack.c.b16 %v546, %v542
  %v603 = vpack.c.b16 %v547, %v543
  %v604 = vpack.c.b16 %v548, %v544
  %v605 = vpack.c.b16 %v553, %v549
  %v606 = vpack.c.b16 %v554, %v550
  %v607 = vpack.c.b16 %v555, %v551
  %v608 = vpack.c.b16 %v556, %v552
  %v609 = vpack.c.b16 %v561, %v557
  %v610 = vpack.c.b16 %v562, %v558
  %v611 = vpack.c.b16 %v563, %v559
  %v612 = vpack.c.b16 %v564, %v560
  %v613 = vpack.c.b16 %v569, %v565
  %v614 = vpack.c.b16 %v570, %v566
  %v615 = vpack.c.b16 %v571, %v567
  %v616 = vpack.c.b16 %v572, %v568
  %v617 = vpack.c.b16 %v577, %v573
  %v618 = vpack.c.b16 %v578, %v574
  %v619 = vpack.c.b16 %v579, %v575
  %v620 = vpack.c.b16 %v580, %v576
  %v621 = vpack.c.b16 %v585, %v581
  %v622 = vpack.c.b16 %v586, %v582
  %v623 = vpack.c.b16 %v587, %v583
  %v624 = vpack.c.b16 %v588, %v584
  %v625 = vpack.c.b16 %v593, %v589
  %v626 = vpack.c.b16 %v594, %v590
  %v627 = vpack.c.b16 %v595, %v591
  %v628 = vpack.c.b16 %v596, %v592
  %661 = vmatprep.subr.bf16.mxu0 %v626
  %662 = vmatpush1.bf16.msra.mxu0 %v625
  %663 = vmatprep.subr.bf16.mxu0 %v622
  %664 = vmatpush1.bf16.msra.mxu0 %v621
  %665 = vmatprep.subr.bf16.mxu0 %v618
  %666 = vmatpush1.bf16.msra.mxu0 %v617
  %667 = vmatprep.subr.bf16.mxu0 %v614
  %668 = vmatpush1.bf16.msra.mxu0 %v613
  %669 = vmatprep.subr.bf16.mxu0 %v610
  %670 = vmatpush1.bf16.msra.mxu0 %v609
  %671 = vmatprep.subr.bf16.mxu0 %v606
  %672 = vmatpush1.bf16.msra.mxu0 %v605
  %673 = vmatprep.subr.bf16.mxu0 %v602
  %674 = vmatpush1.bf16.msra.mxu0 %v601
  %675 = vmatprep.subr.bf16.mxu0 %v598
  %676 = vmatpush1.bf16.msra.mxu0 %v597
  %677 = vmatprep.subr.bf16.mxu0 0
  %678 = vmatpush2.bf16.msra.mxu0 0
  %679 = vmatprep.subr.bf16.mxu0 0
  %680 = vmatpush2.bf16.msra.mxu0 0
  %681 = vmatprep.subr.bf16.mxu0 0
  %682 = vmatpush2.bf16.msra.mxu0 0
  %683 = vmatprep.subr.bf16.mxu0 0
  %684 = vmatpush2.bf16.msra.mxu0 0
  %685 = vmatprep.subr.bf16.mxu0 0
  %686 = vmatpush2.bf16.msra.mxu0 0
  %687 = vmatprep.subr.bf16.mxu0 0
  %688 = vmatpush2.bf16.msra.mxu0 0
  %689 = vmatprep.subr.bf16.mxu0 0
  %690 = vmatpush2.bf16.msra.mxu0 0
  %691 = vmatprep.subr.bf16.mxu0 0
  %692 = vmatpush2.bf16.msra.mxu0 0
  %693 = vmatprep.mubr.bf16.mxu0 0
  %694 = vmatmul.mubr.bf16.gmra.mxu0 %v500
  %v695 = vpop.f32.mrf.mxu0
  %v696 = vadd.f32 0.0, %v695
  %v697 = vpop.f32.mrf.mxu0
  %v698 = vadd.f32 0.0, %v697
  %v699 = vpop.f32.mrf.mxu0
  %v700 = vpop.f32.mrf.mxu0
  %701 = vdwg.mxu0
  %702 = vmatprep.subr.bf16.mxu0 %v628
  %703 = vmatpush1.bf16.msra.mxu0 %v627
  %704 = vmatprep.subr.bf16.mxu0 %v624
  %705 = vmatpush1.bf16.msra.mxu0 %v623
  %706 = vmatprep.subr.bf16.mxu0 %v620
  %707 = vmatpush1.bf16.msra.mxu0 %v619
  %708 = vmatprep.subr.bf16.mxu0 %v616
  %709 = vmatpush1.bf16.msra.mxu0 %v615
  %710 = vmatprep.subr.bf16.mxu0 %v612
  %711 = vmatpush1.bf16.msra.mxu0 %v611
  %712 = vmatprep.subr.bf16.mxu0 %v608
  %713 = vmatpush1.bf16.msra.mxu0 %v607
  %714 = vmatprep.subr.bf16.mxu0 %v604
  %715 = vmatpush1.bf16.msra.mxu0 %v603
  %716 = vmatprep.subr.bf16.mxu0 %v600
  %717 = vmatpush1.bf16.msra.mxu0 %v599
  %718 = vmatprep.subr.bf16.mxu0 0
  %719 = vmatpush2.bf16.msra.mxu0 0
  %720 = vmatprep.subr.bf16.mxu0 0
  %721 = vmatpush2.bf16.msra.mxu0 0
  %722 = vmatprep.subr.bf16.mxu0 0
  %723 = vmatpush2.bf16.msra.mxu0 0
  %724 = vmatprep.subr.bf16.mxu0 0
  %725 = vmatpush2.bf16.msra.mxu0 0
  %726 = vmatprep.subr.bf16.mxu0 0
  %727 = vmatpush2.bf16.msra.mxu0 0
  %728 = vmatprep.subr.bf16.mxu0 0
  %729 = vmatpush2.bf16.msra.mxu0 0
  %730 = vmatprep.subr.bf16.mxu0 0
  %731 = vmatpush2.bf16.msra.mxu0 0
  %732 = vmatprep.subr.bf16.mxu0 0
  %733 = vmatpush2.bf16.msra.mxu0 0
  %734 = vmatprep.mubr.bf16.mxu0 0
  %735 = vmatmul.mubr.bf16.gmra.mxu0 %v500
  %v736 = vpop.f32.mrf.mxu0
  %v737 = vadd.f32 0.0, %v736
  %v738 = vpop.f32.mrf.mxu0
  %v739 = vadd.f32 0.0, %v738
  %v740 = vpop.f32.mrf.mxu0
  %v741 = vpop.f32.mrf.mxu0
  %742 = vdwg.mxu0
  %v743 = vadd.f32 %v496, %v696
  %v744 = vadd.f32 %v497, %v698
  %v745 = vadd.f32 %v498, %v737
  %v746 = vadd.f32 %v499, %v739
  %v747 = vxor.u32 %v743, 2147483648
  %v748 = vmul.f32 %v747, 1.442695
  %v749 = vpow.pop %v748
  %v750 = vadd.f32 %v749, 1.0
  %v751 = vrcp.pop %v750
  %v752 = vmul.f32 1.0, %v751
  %v753 = vxor.u32 %v744, 2147483648
  %v754 = vmul.f32 %v753, 1.442695
  %v755 = vpow.pop %v754
  %v756 = vadd.f32 %v755, 1.0
  %v757 = vrcp.pop %v756
  %v758 = vmul.f32 1.0, %v757
  %v759 = vtanh.pop %v745
  %v760 = vxor.u32 %v746, 2147483648
  %v761 = vmul.f32 %v760, 1.442695
  %v762 = vpow.pop %v761
  %v763 = vadd.f32 %v762, 1.0
  %v764 = vrcp.pop %v763
  %v765 = vmul.f32 1.0, %v764
  %v766 = vmul.f32 %v758, %v492
  %v767 = vmul.f32 %v752, %v759
  %v768 = vadd.f32 %v766, %v767
  %v769 = vtanh.pop %v768
  %v770 = vmul.f32 %v765, %v769
  %v771 = vpack.c.bf16 %v770, %v770
  %772 = vst [vmem:[%s6] sm:$0xf] %v771
  %s773 = smul.u32 1, 4
  %s774 = smul.addr %s773, 8
  %s775 = scalar_lea.vmem [#allocation2], %s774
  %v776 = vld [vmem:[%s775] sm:$0xff]
  %v777 = vld [vmem:[%s775 + $0x8] sm:$0xff]
  %v778 = vld [vmem:[%s775 + $0x10] sm:$0xff]
  %v779 = vld [vmem:[%s775 + $0x18] sm:$0xff]
  %780 = vmatprep.subr.bf16.mxu0 %v626
  %781 = vmatpush1.bf16.msra.mxu0 %v625
  %782 = vmatprep.subr.bf16.mxu0 %v622
  %783 = vmatpush1.bf16.msra.mxu0 %v621
  %784 = vmatprep.subr.bf16.mxu0 %v618
  %785 = vmatpush1.bf16.msra.mxu0 %v617
  %786 = vmatprep.subr.bf16.mxu0 %v614
  %787 = vmatpush1.bf16.msra.mxu0 %v613
  %788 = vmatprep.subr.bf16.mxu0 %v610
  %789 = vmatpush1.bf16.msra.mxu0 %v609
  %790 = vmatprep.subr.bf16.mxu0 %v606
  %791 = vmatpush1.bf16.msra.mxu0 %v605
  %792 = vmatprep.subr.bf16.mxu0 %v602
  %793 = vmatpush1.bf16.msra.mxu0 %v601
  %794 = vmatprep.subr.bf16.mxu0 %v598
  %795 = vmatpush1.bf16.msra.mxu0 %v597
  %796 = vmatprep.subr.bf16.mxu0 0
  %797 = vmatpush2.bf16.msra.mxu0 0
  %798 = vmatprep.subr.bf16.mxu0 0
  %799 = vmatpush2.bf16.msra.mxu0 0
  %800 = vmatprep.subr.bf16.mxu0 0
  %801 = vmatpush2.bf16.msra.mxu0 0
  %802 = vmatprep.subr.bf16.mxu0 0
  %803 = vmatpush2.bf16.msra.mxu0 0
  %804 = vmatprep.subr.bf16.mxu0 0
  %805 = vmatpush2.bf16.msra.mxu0 0
  %806 = vmatprep.subr.bf16.mxu0 0
  %807 = vmatpush2.bf16.msra.mxu0 0
  %808 = vmatprep.subr.bf16.mxu0 0
  %809 = vmatpush2.bf16.msra.mxu0 0
  %810 = vmatprep.subr.bf16.mxu0 0
  %811 = vmatpush2.bf16.msra.mxu0 0
  %812 = vmatprep.mubr.bf16.mxu0 0
  %813 = vmatmul.mubr.bf16.gmra.mxu0 %v771
  %v814 = vpop.f32.mrf.mxu0
  %v815 = vadd.f32 0.0, %v814
  %v816 = vpop.f32.mrf.mxu0
  %v817 = vadd.f32 0.0, %v816
  %v818 = vpop.f32.mrf.mxu0
  %v819 = vpop.f32.mrf.mxu0
  %820 = vdwg.mxu0
  %821 = vmatprep.subr.bf16.mxu0 %v628
  %822 = vmatpush1.bf16.msra.mxu0 %v627
  %823 = vmatprep.subr.bf16.mxu0 %v624
  %824 = vmatpush1.bf16.msra.mxu0 %v623
  %825 = vmatprep.subr.bf16.mxu0 %v620
  %826 = vmatpush1.bf16.msra.mxu0 %v619
  %827 = vmatprep.subr.bf16.mxu0 %v616
  %828 = vmatpush1.bf16.msra.mxu0 %v615
  %829 = vmatprep.subr.bf16.mxu0 %v612
  %830 = vmatpush1.bf16.msra.mxu0 %v611
  %831 = vmatprep.subr.bf16.mxu0 %v608
  %832 = vmatpush1.bf16.msra.mxu0 %v607
  %833 = vmatprep.subr.bf16.mxu0 %v604
  %834 = vmatpush1.bf16.msra.mxu0 %v603
  %835 = vmatprep.subr.bf16.mxu0 %v600
  %836 = vmatpush1.bf16.msra.mxu0 %v599
  %837 = vmatprep.subr.bf16.mxu0 0
  %838 = vmatpush2.bf16.msra.mxu0 0
  %839 = vmatprep.subr.bf16.mxu0 0
  %840 = vmatpush2.bf16.msra.mxu0 0
  %841 = vmatprep.subr.bf16.mxu0 0
  %842 = vmatpush2.bf16.msra.mxu0 0
  %843 = vmatprep.subr.bf16.mxu0 0
  %844 = vmatpush2.bf16.msra.mxu0 0
  %845 = vmatprep.subr.bf16.mxu0 0
  %846 = vmatpush2.bf16.msra.mxu0 0
  %847 = vmatprep.subr.bf16.mxu0 0
  %848 = vmatpush2.bf16.msra.mxu0 0
  %849 = vmatprep.subr.bf16.mxu0 0
  %850 = vmatpush2.bf16.msra.mxu0 0
  %851 = vmatprep.subr.bf16.mxu0 0
  %852 = vmatpush2.bf16.msra.mxu0 0
  %853 = vmatprep.mubr.bf16.mxu0 0
  %854 = vmatmul.mubr.bf16.gmra.mxu0 %v771
  %v855 = vpop.f32.mrf.mxu0
  %v856 = vadd.f32 0.0, %v855
  %v857 = vpop.f32.mrf.mxu0
  %v858 = vadd.f32 0.0, %v857
  %v859 = vpop.f32.mrf.mxu0
  %v860 = vpop.f32.mrf.mxu0
  %861 = vdwg.mxu0
  %v862 = vadd.f32 %v776, %v815
  %v863 = vadd.f32 %v777, %v817
  %v864 = vadd.f32 %v778, %v856
  %v865 = vadd.f32 %v779, %v858
  %v866 = vxor.u32 %v862, 2147483648
  %v867 = vmul.f32 %v866, 1.442695
  %v868 = vpow.pop %v867
  %v869 = vadd.f32 %v868, 1.0
  %v870 = vrcp.pop %v869
  %v871 = vmul.f32 1.0, %v870
  %v872 = vxor.u32 %v863, 2147483648
  %v873 = vmul.f32 %v872, 1.442695
  %v874 = vpow.pop %v873
  %v875 = vadd.f32 %v874, 1.0
  %v876 = vrcp.pop %v875
  %v877 = vmul.f32 1.0, %v876
  %v878 = vtanh.pop %v864
  %v879 = vxor.u32 %v865, 2147483648
  %v880 = vmul.f32 %v879, 1.442695
  %v881 = vpow.pop %v880
  %v882 = vadd.f32 %v881, 1.0
  %v883 = vrcp.pop %v882
  %v884 = vmul.f32 1.0, %v883
  %v885 = vmul.f32 %v877, %v768
  %v886 = vmul.f32 %v871, %v878
  %v887 = vadd.f32 %v885, %v886
  %v888 = vtanh.pop %v887
  %v889 = vmul.f32 %v884, %v888
  %v890 = vpack.c.bf16 %v889, %v889
  %s891 = scalar_lea.vmem %s6, 4
  %892 = vst [vmem:[%s891] sm:$0xf] %v890
  %s893 = smul.u32 2, 4
  %s894 = smul.addr %s893, 8
  %s895 = scalar_lea.vmem [#allocation2], %s894
  %v896 = vld [vmem:[%s895] sm:$0xff]
  %v897 = vld [vmem:[%s895 + $0x8] sm:$0xff]
  %v898 = vld [vmem:[%s895 + $0x10] sm:$0xff]
  %v899 = vld [vmem:[%s895 + $0x18] sm:$0xff]
  %900 = vmatprep.subr.bf16.mxu0 %v626
  %901 = vmatpush1.bf16.msra.mxu0 %v625
  %902 = vmatprep.subr.bf16.mxu0 %v622
  %903 = vmatpush1.bf16.msra.mxu0 %v621
  %904 = vmatprep.subr.bf16.mxu0 %v618
  %905 = vmatpush1.bf16.msra.mxu0 %v617
  %906 = vmatprep.subr.bf16.mxu0 %v614
  %907 = vmatpush1.bf16.msra.mxu0 %v613
  %908 = vmatprep.subr.bf16.mxu0 %v610
  %909 = vmatpush1.bf16.msra.mxu0 %v609
  %910 = vmatprep.subr.bf16.mxu0 %v606
  %911 = vmatpush1.bf16.msra.mxu0 %v605
  %912 = vmatprep.subr.bf16.mxu0 %v602
  %913 = vmatpush1.bf16.msra.mxu0 %v601
  %914 = vmatprep.subr.bf16.mxu0 %v598
  %915 = vmatpush1.bf16.msra.mxu0 %v597
  %916 = vmatprep.subr.bf16.mxu0 0
  %917 = vmatpush2.bf16.msra.mxu0 0
  %918 = vmatprep.subr.bf16.mxu0 0
  %919 = vmatpush2.bf16.msra.mxu0 0
  %920 = vmatprep.subr.bf16.mxu0 0
  %921 = vmatpush2.bf16.msra.mxu0 0
  %922 = vmatprep.subr.bf16.mxu0 0
  %923 = vmatpush2.bf16.msra.mxu0 0
  %924 = vmatprep.subr.bf16.mxu0 0
  %925 = vmatpush2.bf16.msra.mxu0 0
  %926 = vmatprep.subr.bf16.mxu0 0
  %927 = vmatpush2.bf16.msra.mxu0 0
  %928 = vmatprep.subr.bf16.mxu0 0
  %929 = vmatpush2.bf16.msra.mxu0 0
  %930 = vmatprep.subr.bf16.mxu0 0
  %931 = vmatpush2.bf16.msra.mxu0 0
  %932 = vmatprep.mubr.bf16.mxu0 0
  %933 = vmatmul.mubr.bf16.gmra.mxu0 %v890
  %v934 = vpop.f32.mrf.mxu0
  %v935 = vadd.f32 0.0, %v934
  %v936 = vpop.f32.mrf.mxu0
  %v937 = vadd.f32 0.0, %v936
  %v938 = vpop.f32.mrf.mxu0
  %v939 = vpop.f32.mrf.mxu0
  %940 = vdwg.mxu0
  %941 = vmatprep.subr.bf16.mxu0 %v628
  %942 = vmatpush1.bf16.msra.mxu0 %v627
  %943 = vmatprep.subr.bf16.mxu0 %v624
  %944 = vmatpush1.bf16.msra.mxu0 %v623
  %945 = vmatprep.subr.bf16.mxu0 %v620
  %946 = vmatpush1.bf16.msra.mxu0 %v619
  %947 = vmatprep.subr.bf16.mxu0 %v616
  %948 = vmatpush1.bf16.msra.mxu0 %v615
  %949 = vmatprep.subr.bf16.mxu0 %v612
  %950 = vmatpush1.bf16.msra.mxu0 %v611
  %951 = vmatprep.subr.bf16.mxu0 %v608
  %952 = vmatpush1.bf16.msra.mxu0 %v607
  %953 = vmatprep.subr.bf16.mxu0 %v604
  %954 = vmatpush1.bf16.msra.mxu0 %v603
  %955 = vmatprep.subr.bf16.mxu0 %v600
  %956 = vmatpush1.bf16.msra.mxu0 %v599
  %957 = vmatprep.subr.bf16.mxu0 0
  %958 = vmatpush2.bf16.msra.mxu0 0
  %959 = vmatprep.subr.bf16.mxu0 0
  %960 = vmatpush2.bf16.msra.mxu0 0
  %961 = vmatprep.subr.bf16.mxu0 0
  %962 = vmatpush2.bf16.msra.mxu0 0
  %963 = vmatprep.subr.bf16.mxu0 0
  %964 = vmatpush2.bf16.msra.mxu0 0
  %965 = vmatprep.subr.bf16.mxu0 0
  %966 = vmatpush2.bf16.msra.mxu0 0
  %967 = vmatprep.subr.bf16.mxu0 0
  %968 = vmatpush2.bf16.msra.mxu0 0
  %969 = vmatprep.subr.bf16.mxu0 0
  %970 = vmatpush2.bf16.msra.mxu0 0
  %971 = vmatprep.subr.bf16.mxu0 0
  %972 = vmatpush2.bf16.msra.mxu0 0
  %973 = vmatprep.mubr.bf16.mxu0 0
  %974 = vmatmul.mubr.bf16.gmra.mxu0 %v890
  %v975 = vpop.f32.mrf.mxu0
  %v976 = vadd.f32 0.0, %v975
  %v977 = vpop.f32.mrf.mxu0
  %v978 = vadd.f32 0.0, %v977
  %v979 = vpop.f32.mrf.mxu0
  %v980 = vpop.f32.mrf.mxu0
  %981 = vdwg.mxu0
  %v982 = vadd.f32 %v896, %v935
  %v983 = vadd.f32 %v897, %v937
  %v984 = vadd.f32 %v898, %v976
  %v985 = vadd.f32 %v899, %v978
  %v986 = vxor.u32 %v982, 2147483648
  %v987 = vmul.f32 %v986, 1.442695
  %v988 = vpow.pop %v987
  %v989 = vadd.f32 %v988, 1.0
  %v990 = vrcp.pop %v989
  %v991 = vmul.f32 1.0, %v990
  %v992 = vxor.u32 %v983, 2147483648
  %v993 = vmul.f32 %v992, 1.442695
  %v994 = vpow.pop %v993
  %v995 = vadd.f32 %v994, 1.0
  %v996 = vrcp.pop %v995
  %v997 = vmul.f32 1.0, %v996
  %v998 = vtanh.pop %v984
  %v999 = vxor.u32 %v985, 2147483648
  %v1000 = vmul.f32 %v999, 1.442695
  %v1001 = vpow.pop %v1000
  %v1002 = vadd.f32 %v1001, 1.0
  %v1003 = vrcp.pop %v1002
  %v1004 = vmul.f32 1.0, %v1003
  %v1005 = vmul.f32 %v997, %v887
  %v1006 = vmul.f32 %v991, %v998
  %v1007 = vadd.f32 %v1005, %v1006
  %v1008 = vtanh.pop %v1007
  %v1009 = vmul.f32 %v1004, %v1008
  %v1010 = vpack.c.bf16 %v1009, %v1009
  %s1011 = scalar_lea.vmem %s6, 8
  %1012 = vst [vmem:[%s1011] sm:$0xf] %v1010
  %s1013 = smul.u32 3, 4
  %s1014 = smul.addr %s1013, 8
  %s1015 = scalar_lea.vmem [#allocation2], %s1014
  %v1016 = vld [vmem:[%s1015] sm:$0xff]
  %v1017 = vld [vmem:[%s1015 + $0x8] sm:$0xff]
  %v1018 = vld [vmem:[%s1015 + $0x10] sm:$0xff]
  %v1019 = vld [vmem:[%s1015 + $0x18] sm:$0xff]
  %1020 = vmatprep.subr.bf16.mxu0 %v626
  %1021 = vmatpush1.bf16.msra.mxu0 %v625
  %1022 = vmatprep.subr.bf16.mxu0 %v622
  %1023 = vmatpush1.bf16.msra.mxu0 %v621
  %1024 = vmatprep.subr.bf16.mxu0 %v618
  %1025 = vmatpush1.bf16.msra.mxu0 %v617
  %1026 = vmatprep.subr.bf16.mxu0 %v614
  %1027 = vmatpush1.bf16.msra.mxu0 %v613
  %1028 = vmatprep.subr.bf16.mxu0 %v610
  %1029 = vmatpush1.bf16.msra.mxu0 %v609
  %1030 = vmatprep.subr.bf16.mxu0 %v606
  %1031 = vmatpush1.bf16.msra.mxu0 %v605
  %1032 = vmatprep.subr.bf16.mxu0 %v602
  %1033 = vmatpush1.bf16.msra.mxu0 %v601
  %1034 = vmatprep.subr.bf16.mxu0 %v598
  %1035 = vmatpush1.bf16.msra.mxu0 %v597
  %1036 = vmatprep.subr.bf16.mxu0 0
  %1037 = vmatpush2.bf16.msra.mxu0 0
  %1038 = vmatprep.subr.bf16.mxu0 0
  %1039 = vmatpush2.bf16.msra.mxu0 0
  %1040 = vmatprep.subr.bf16.mxu0 0
  %1041 = vmatpush2.bf16.msra.mxu0 0
  %1042 = vmatprep.subr.bf16.mxu0 0
  %1043 = vmatpush2.bf16.msra.mxu0 0
  %1044 = vmatprep.subr.bf16.mxu0 0
  %1045 = vmatpush2.bf16.msra.mxu0 0
  %1046 = vmatprep.subr.bf16.mxu0 0
  %1047 = vmatpush2.bf16.msra.mxu0 0
  %1048 = vmatprep.subr.bf16.mxu0 0
  %1049 = vmatpush2.bf16.msra.mxu0 0
  %1050 = vmatprep.subr.bf16.mxu0 0
  %1051 = vmatpush2.bf16.msra.mxu0 0
  %1052 = vmatprep.mubr.bf16.mxu0 0
  %1053 = vmatmul.mubr.bf16.gmra.mxu0 %v1010
  %v1054 = vpop.f32.mrf.mxu0
  %v1055 = vadd.f32 0.0, %v1054
  %v1056 = vpop.f32.mrf.mxu0
  %v1057 = vadd.f32 0.0, %v1056
  %v1058 = vpop.f32.mrf.mxu0
  %v1059 = vpop.f32.mrf.mxu0
  %1060 = vdwg.mxu0
  %1061 = vmatprep.subr.bf16.mxu0 %v628
  %1062 = vmatpush1.bf16.msra.mxu0 %v627
  %1063 = vmatprep.subr.bf16.mxu0 %v624
  %1064 = vmatpush1.bf16.msra.mxu0 %v623
  %1065 = vmatprep.subr.bf16.mxu0 %v620
  %1066 = vmatpush1.bf16.msra.mxu0 %v619
  %1067 = vmatprep.subr.bf16.mxu0 %v616
  %1068 = vmatpush1.bf16.msra.mxu0 %v615
  %1069 = vmatprep.subr.bf16.mxu0 %v612
  %1070 = vmatpush1.bf16.msra.mxu0 %v611
  %1071 = vmatprep.subr.bf16.mxu0 %v608
  %1072 = vmatpush1.bf16.msra.mxu0 %v607
  %1073 = vmatprep.subr.bf16.mxu0 %v604
  %1074 = vmatpush1.bf16.msra.mxu0 %v603
  %1075 = vmatprep.subr.bf16.mxu0 %v600
  %1076 = vmatpush1.bf16.msra.mxu0 %v599
  %1077 = vmatprep.subr.bf16.mxu0 0
  %1078 = vmatpush2.bf16.msra.mxu0 0
  %1079 = vmatprep.subr.bf16.mxu0 0
  %1080 = vmatpush2.bf16.msra.mxu0 0
  %1081 = vmatprep.subr.bf16.mxu0 0
  %1082 = vmatpush2.bf16.msra.mxu0 0
  %1083 = vmatprep.subr.bf16.mxu0 0
  %1084 = vmatpush2.bf16.msra.mxu0 0
  %1085 = vmatprep.subr.bf16.mxu0 0
  %1086 = vmatpush2.bf16.msra.mxu0 0
  %1087 = vmatprep.subr.bf16.mxu0 0
  %1088 = vmatpush2.bf16.msra.mxu0 0
  %1089 = vmatprep.subr.bf16.mxu0 0
  %1090 = vmatpush2.bf16.msra.mxu0 0
  %1091 = vmatprep.subr.bf16.mxu0 0
  %1092 = vmatpush2.bf16.msra.mxu0 0
  %1093 = vmatprep.mubr.bf16.mxu0 0
  %1094 = vmatmul.mubr.bf16.gmra.mxu0 %v1010
  %v1095 = vpop.f32.mrf.mxu0
  %v1096 = vadd.f32 0.0, %v1095
  %v1097 = vpop.f32.mrf.mxu0
  %v1098 = vadd.f32 0.0, %v1097
  %v1099 = vpop.f32.mrf.mxu0
  %v1100 = vpop.f32.mrf.mxu0
  %1101 = vdwg.mxu0
  %v1102 = vadd.f32 %v1016, %v1055
  %v1103 = vadd.f32 %v1017, %v1057
  %v1104 = vadd.f32 %v1018, %v1096
  %v1105 = vadd.f32 %v1019, %v1098
  %v1106 = vxor.u32 %v1102, 2147483648
  %v1107 = vmul.f32 %v1106, 1.442695
  %v1108 = vpow.pop %v1107
  %v1109 = vadd.f32 %v1108, 1.0
  %v1110 = vrcp.pop %v1109
  %v1111 = vmul.f32 1.0, %v1110
  %v1112 = vxor.u32 %v1103, 2147483648
  %v1113 = vmul.f32 %v1112, 1.442695
  %v1114 = vpow.pop %v1113
  %v1115 = vadd.f32 %v1114, 1.0
  %v1116 = vrcp.pop %v1115
  %v1117 = vmul.f32 1.0, %v1116
  %v1118 = vtanh.pop %v1104
  %v1119 = vxor.u32 %v1105, 2147483648
  %v1120 = vmul.f32 %v1119, 1.442695
  %v1121 = vpow.pop %v1120
  %v1122 = vadd.f32 %v1121, 1.0
  %v1123 = vrcp.pop %v1122
  %v1124 = vmul.f32 1.0, %v1123
  %v1125 = vmul.f32 %v1117, %v1007
  %v1126 = vmul.f32 %v1111, %v1118
  %v1127 = vadd.f32 %v1125, %v1126
  %v1128 = vtanh.pop %v1127
  %v1129 = vmul.f32 %v1124, %v1128
  %v1130 = vpack.c.bf16 %v1129, %v1129
  %s1131 = scalar_lea.vmem %s6, 12
  %1132 = vst [vmem:[%s1131] sm:$0xf] %v1130
  %s1133 = smul.u32 4, 4
  %s1134 = smul.addr %s1133, 8
  %s1135 = scalar_lea.vmem [#allocation2], %s1134
  %v1136 = vld [vmem:[%s1135] sm:$0xff]
  %v1137 = vld [vmem:[%s1135 + $0x8] sm:$0xff]
  %v1138 = vld [vmem:[%s1135 + $0x10] sm:$0xff]
  %v1139 = vld [vmem:[%s1135 + $0x18] sm:$0xff]
  %1140 = vmatprep.subr.bf16.mxu0 %v626
  %1141 = vmatpush1.bf16.msra.mxu0 %v625
  %1142 = vmatprep.subr.bf16.mxu0 %v622
  %1143 = vmatpush1.bf16.msra.mxu0 %v621
  %1144 = vmatprep.subr.bf16.mxu0 %v618
  %1145 = vmatpush1.bf16.msra.mxu0 %v617
  %1146 = vmatprep.subr.bf16.mxu0 %v614
  %1147 = vmatpush1.bf16.msra.mxu0 %v613
  %1148 = vmatprep.subr.bf16.mxu0 %v610
  %1149 = vmatpush1.bf16.msra.mxu0 %v609
  %1150 = vmatprep.subr.bf16.mxu0 %v606
  %1151 = vmatpush1.bf16.msra.mxu0 %v605
  %1152 = vmatprep.subr.bf16.mxu0 %v602
  %1153 = vmatpush1.bf16.msra.mxu0 %v601
  %1154 = vmatprep.subr.bf16.mxu0 %v598
  %1155 = vmatpush1.bf16.msra.mxu0 %v597
  %1156 = vmatprep.subr.bf16.mxu0 0
  %1157 = vmatpush2.bf16.msra.mxu0 0
  %1158 = vmatprep.subr.bf16.mxu0 0
  %1159 = vmatpush2.bf16.msra.mxu0 0
  %1160 = vmatprep.subr.bf16.mxu0 0
  %1161 = vmatpush2.bf16.msra.mxu0 0
  %1162 = vmatprep.subr.bf16.mxu0 0
  %1163 = vmatpush2.bf16.msra.mxu0 0
  %1164 = vmatprep.subr.bf16.mxu0 0
  %1165 = vmatpush2.bf16.msra.mxu0 0
  %1166 = vmatprep.subr.bf16.mxu0 0
  %1167 = vmatpush2.bf16.msra.mxu0 0
  %1168 = vmatprep.subr.bf16.mxu0 0
  %1169 = vmatpush2.bf16.msra.mxu0 0
  %1170 = vmatprep.subr.bf16.mxu0 0
  %1171 = vmatpush2.bf16.msra.mxu0 0
  %1172 = vmatprep.mubr.bf16.mxu0 0
  %1173 = vmatmul.mubr.bf16.gmra.mxu0 %v1130
  %v1174 = vpop.f32.mrf.mxu0
  %v1175 = vadd.f32 0.0, %v1174
  %v1176 = vpop.f32.mrf.mxu0
  %v1177 = vadd.f32 0.0, %v1176
  %v1178 = vpop.f32.mrf.mxu0
  %v1179 = vpop.f32.mrf.mxu0
  %1180 = vdwg.mxu0
  %1181 = vmatprep.subr.bf16.mxu0 %v628
  %1182 = vmatpush1.bf16.msra.mxu0 %v627
  %1183 = vmatprep.subr.bf16.mxu0 %v624
  %1184 = vmatpush1.bf16.msra.mxu0 %v623
  %1185 = vmatprep.subr.bf16.mxu0 %v620
  %1186 = vmatpush1.bf16.msra.mxu0 %v619
  %1187 = vmatprep.subr.bf16.mxu0 %v616
  %1188 = vmatpush1.bf16.msra.mxu0 %v615
  %1189 = vmatprep.subr.bf16.mxu0 %v612
  %1190 = vmatpush1.bf16.msra.mxu0 %v611
  %1191 = vmatprep.subr.bf16.mxu0 %v608
  %1192 = vmatpush1.bf16.msra.mxu0 %v607
  %1193 = vmatprep.subr.bf16.mxu0 %v604
  %1194 = vmatpush1.bf16.msra.mxu0 %v603
  %1195 = vmatprep.subr.bf16.mxu0 %v600
  %1196 = vmatpush1.bf16.msra.mxu0 %v599
  %1197 = vmatprep.subr.bf16.mxu0 0
  %1198 = vmatpush2.bf16.msra.mxu0 0
  %1199 = vmatprep.subr.bf16.mxu0 0
  %1200 = vmatpush2.bf16.msra.mxu0 0
  %1201 = vmatprep.subr.bf16.mxu0 0
  %1202 = vmatpush2.bf16.msra.mxu0 0
  %1203 = vmatprep.subr.bf16.mxu0 0
  %1204 = vmatpush2.bf16.msra.mxu0 0
  %1205 = vmatprep.subr.bf16.mxu0 0
  %1206 = vmatpush2.bf16.msra.mxu0 0
  %1207 = vmatprep.subr.bf16.mxu0 0
  %1208 = vmatpush2.bf16.msra.mxu0 0
  %1209 = vmatprep.subr.bf16.mxu0 0
  %1210 = vmatpush2.bf16.msra.mxu0 0
  %1211 = vmatprep.subr.bf16.mxu0 0
  %1212 = vmatpush2.bf16.msra.mxu0 0
  %1213 = vmatprep.mubr.bf16.mxu0 0
  %1214 = vmatmul.mubr.bf16.gmra.mxu0 %v1130
  %v1215 = vpop.f32.mrf.mxu0
  %v1216 = vadd.f32 0.0, %v1215
  %v1217 = vpop.f32.mrf.mxu0
  %v1218 = vadd.f32 0.0, %v1217
  %v1219 = vpop.f32.mrf.mxu0
  %v1220 = vpop.f32.mrf.mxu0
  %1221 = vdwg.mxu0
  %v1222 = vadd.f32 %v1136, %v1175
  %v1223 = vadd.f32 %v1137, %v1177
  %v1224 = vadd.f32 %v1138, %v1216
  %v1225 = vadd.f32 %v1139, %v1218
  %v1226 = vxor.u32 %v1222, 2147483648
  %v1227 = vmul.f32 %v1226, 1.442695
  %v1228 = vpow.pop %v1227
  %v1229 = vadd.f32 %v1228, 1.0
  %v1230 = vrcp.pop %v1229
  %v1231 = vmul.f32 1.0, %v1230
  %v1232 = vxor.u32 %v1223, 2147483648
  %v1233 = vmul.f32 %v1232, 1.442695
  %v1234 = vpow.pop %v1233
  %v1235 = vadd.f32 %v1234, 1.0
  %v1236 = vrcp.pop %v1235
  %v1237 = vmul.f32 1.0, %v1236
  %v1238 = vtanh.pop %v1224
  %v1239 = vxor.u32 %v1225, 2147483648
  %v1240 = vmul.f32 %v1239, 1.442695
  %v1241 = vpow.pop %v1240
  %v1242 = vadd.f32 %v1241, 1.0
  %v1243 = vrcp.pop %v1242
  %v1244 = vmul.f32 1.0, %v1243
  %v1245 = vmul.f32 %v1237, %v1127
  %v1246 = vmul.f32 %v1231, %v1238
  %v1247 = vadd.f32 %v1245, %v1246
  %v1248 = vtanh.pop %v1247
  %v1249 = vmul.f32 %v1244, %v1248
  %v1250 = vpack.c.bf16 %v1249, %v1249
  %s1251 = scalar_lea.vmem %s6, 16
  %1252 = vst [vmem:[%s1251] sm:$0xf] %v1250
  %s1253 = smul.u32 5, 4
  %s1254 = smul.addr %s1253, 8
  %s1255 = scalar_lea.vmem [#allocation2], %s1254
  %v1256 = vld [vmem:[%s1255] sm:$0xff]
  %v1257 = vld [vmem:[%s1255 + $0x8] sm:$0xff]
  %v1258 = vld [vmem:[%s1255 + $0x10] sm:$0xff]
  %v1259 = vld [vmem:[%s1255 + $0x18] sm:$0xff]
  %1260 = vmatprep.subr.bf16.mxu0 %v626
  %1261 = vmatpush1.bf16.msra.mxu0 %v625
  %1262 = vmatprep.subr.bf16.mxu0 %v622
  %1263 = vmatpush1.bf16.msra.mxu0 %v621
  %1264 = vmatprep.subr.bf16.mxu0 %v618
  %1265 = vmatpush1.bf16.msra.mxu0 %v617
  %1266 = vmatprep.subr.bf16.mxu0 %v614
  %1267 = vmatpush1.bf16.msra.mxu0 %v613
  %1268 = vmatprep.subr.bf16.mxu0 %v610
  %1269 = vmatpush1.bf16.msra.mxu0 %v609
  %1270 = vmatprep.subr.bf16.mxu0 %v606
  %1271 = vmatpush1.bf16.msra.mxu0 %v605
  %1272 = vmatprep.subr.bf16.mxu0 %v602
  %1273 = vmatpush1.bf16.msra.mxu0 %v601
  %1274 = vmatprep.subr.bf16.mxu0 %v598
  %1275 = vmatpush1.bf16.msra.mxu0 %v597
  %1276 = vmatprep.subr.bf16.mxu0 0
  %1277 = vmatpush2.bf16.msra.mxu0 0
  %1278 = vmatprep.subr.bf16.mxu0 0
  %1279 = vmatpush2.bf16.msra.mxu0 0
  %1280 = vmatprep.subr.bf16.mxu0 0
  %1281 = vmatpush2.bf16.msra.mxu0 0
  %1282 = vmatprep.subr.bf16.mxu0 0
  %1283 = vmatpush2.bf16.msra.mxu0 0
  %1284 = vmatprep.subr.bf16.mxu0 0
  %1285 = vmatpush2.bf16.msra.mxu0 0
  %1286 = vmatprep.subr.bf16.mxu0 0
  %1287 = vmatpush2.bf16.msra.mxu0 0
  %1288 = vmatprep.subr.bf16.mxu0 0
  %1289 = vmatpush2.bf16.msra.mxu0 0
  %1290 = vmatprep.subr.bf16.mxu0 0
  %1291 = vmatpush2.bf16.msra.mxu0 0
  %1292 = vmatprep.mubr.bf16.mxu0 0
  %1293 = vmatmul.mubr.bf16.gmra.mxu0 %v1250
  %v1294 = vpop.f32.mrf.mxu0
  %v1295 = vadd.f32 0.0, %v1294
  %v1296 = vpop.f32.mrf.mxu0
  %v1297 = vadd.f32 0.0, %v1296
  %v1298 = vpop.f32.mrf.mxu0
  %v1299 = vpop.f32.mrf.mxu0
  %1300 = vdwg.mxu0
  %1301 = vmatprep.subr.bf16.mxu0 %v628
  %1302 = vmatpush1.bf16.msra.mxu0 %v627
  %1303 = vmatprep.subr.bf16.mxu0 %v624
  %1304 = vmatpush1.bf16.msra.mxu0 %v623
  %1305 = vmatprep.subr.bf16.mxu0 %v620
  %1306 = vmatpush1.bf16.msra.mxu0 %v619
  %1307 = vmatprep.subr.bf16.mxu0 %v616
  %1308 = vmatpush1.bf16.msra.mxu0 %v615
  %1309 = vmatprep.subr.bf16.mxu0 %v612
  %1310 = vmatpush1.bf16.msra.mxu0 %v611
  %1311 = vmatprep.subr.bf16.mxu0 %v608
  %1312 = vmatpush1.bf16.msra.mxu0 %v607
  %1313 = vmatprep.subr.bf16.mxu0 %v604
  %1314 = vmatpush1.bf16.msra.mxu0 %v603
  %1315 = vmatprep.subr.bf16.mxu0 %v600
  %1316 = vmatpush1.bf16.msra.mxu0 %v599
  %1317 = vmatprep.subr.bf16.mxu0 0
  %1318 = vmatpush2.bf16.msra.mxu0 0
  %1319 = vmatprep.subr.bf16.mxu0 0
  %1320 = vmatpush2.bf16.msra.mxu0 0
  %1321 = vmatprep.subr.bf16.mxu0 0
  %1322 = vmatpush2.bf16.msra.mxu0 0
  %1323 = vmatprep.subr.bf16.mxu0 0
  %1324 = vmatpush2.bf16.msra.mxu0 0
  %1325 = vmatprep.subr.bf16.mxu0 0
  %1326 = vmatpush2.bf16.msra.mxu0 0
  %1327 = vmatprep.subr.bf16.mxu0 0
  %1328 = vmatpush2.bf16.msra.mxu0 0
  %1329 = vmatprep.subr.bf16.mxu0 0
  %1330 = vmatpush2.bf16.msra.mxu0 0
  %1331 = vmatprep.subr.bf16.mxu0 0
  %1332 = vmatpush2.bf16.msra.mxu0 0
  %1333 = vmatprep.mubr.bf16.mxu0 0
  %1334 = vmatmul.mubr.bf16.gmra.mxu0 %v1250
  %v1335 = vpop.f32.mrf.mxu0
  %v1336 = vadd.f32 0.0, %v1335
  %v1337 = vpop.f32.mrf.mxu0
  %v1338 = vadd.f32 0.0, %v1337
  %v1339 = vpop.f32.mrf.mxu0
  %v1340 = vpop.f32.mrf.mxu0
  %1341 = vdwg.mxu0
  %v1342 = vadd.f32 %v1256, %v1295
  %v1343 = vadd.f32 %v1257, %v1297
  %v1344 = vadd.f32 %v1258, %v1336
  %v1345 = vadd.f32 %v1259, %v1338
  %v1346 = vxor.u32 %v1342, 2147483648
  %v1347 = vmul.f32 %v1346, 1.442695
  %v1348 = vpow.pop %v1347
  %v1349 = vadd.f32 %v1348, 1.0
  %v1350 = vrcp.pop %v1349
  %v1351 = vmul.f32 1.0, %v1350
  %v1352 = vxor.u32 %v1343, 2147483648
  %v1353 = vmul.f32 %v1352, 1.442695
  %v1354 = vpow.pop %v1353
  %v1355 = vadd.f32 %v1354, 1.0
  %v1356 = vrcp.pop %v1355
  %v1357 = vmul.f32 1.0, %v1356
  %v1358 = vtanh.pop %v1344
  %v1359 = vxor.u32 %v1345, 2147483648
  %v1360 = vmul.f32 %v1359, 1.442695
  %v1361 = vpow.pop %v1360
  %v1362 = vadd.f32 %v1361, 1.0
  %v1363 = vrcp.pop %v1362
  %v1364 = vmul.f32 1.0, %v1363
  %v1365 = vmul.f32 %v1357, %v1247
  %v1366 = vmul.f32 %v1351, %v1358
  %v1367 = vadd.f32 %v1365, %v1366
  %v1368 = vtanh.pop %v1367
  %v1369 = vmul.f32 %v1364, %v1368
  %v1370 = vpack.c.bf16 %v1369, %v1369
  %s1371 = scalar_lea.vmem %s6, 20
  %1372 = vst [vmem:[%s1371] sm:$0xf] %v1370
  %s1373 = smul.u32 6, 4
  %s1374 = smul.addr %s1373, 8
  %s1375 = scalar_lea.vmem [#allocation2], %s1374
  %v1376 = vld [vmem:[%s1375] sm:$0xff]
  %v1377 = vld [vmem:[%s1375 + $0x8] sm:$0xff]
  %v1378 = vld [vmem:[%s1375 + $0x10] sm:$0xff]
  %v1379 = vld [vmem:[%s1375 + $0x18] sm:$0xff]
  %1380 = vmatprep.subr.bf16.mxu0 %v626
  %1381 = vmatpush1.bf16.msra.mxu0 %v625
  %1382 = vmatprep.subr.bf16.mxu0 %v622
  %1383 = vmatpush1.bf16.msra.mxu0 %v621
  %1384 = vmatprep.subr.bf16.mxu0 %v618
  %1385 = vmatpush1.bf16.msra.mxu0 %v617
  %1386 = vmatprep.subr.bf16.mxu0 %v614
  %1387 = vmatpush1.bf16.msra.mxu0 %v613
  %1388 = vmatprep.subr.bf16.mxu0 %v610
  %1389 = vmatpush1.bf16.msra.mxu0 %v609
  %1390 = vmatprep.subr.bf16.mxu0 %v606
  %1391 = vmatpush1.bf16.msra.mxu0 %v605
  %1392 = vmatprep.subr.bf16.mxu0 %v602
  %1393 = vmatpush1.bf16.msra.mxu0 %v601
  %1394 = vmatprep.subr.bf16.mxu0 %v598
  %1395 = vmatpush1.bf16.msra.mxu0 %v597
  %1396 = vmatprep.subr.bf16.mxu0 0
  %1397 = vmatpush2.bf16.msra.mxu0 0
  %1398 = vmatprep.subr.bf16.mxu0 0
  %1399 = vmatpush2.bf16.msra.mxu0 0
  %1400 = vmatprep.subr.bf16.mxu0 0
  %1401 = vmatpush2.bf16.msra.mxu0 0
  %1402 = vmatprep.subr.bf16.mxu0 0
  %1403 = vmatpush2.bf16.msra.mxu0 0
  %1404 = vmatprep.subr.bf16.mxu0 0
  %1405 = vmatpush2.bf16.msra.mxu0 0
  %1406 = vmatprep.subr.bf16.mxu0 0
  %1407 = vmatpush2.bf16.msra.mxu0 0
  %1408 = vmatprep.subr.bf16.mxu0 0
  %1409 = vmatpush2.bf16.msra.mxu0 0
  %1410 = vmatprep.subr.bf16.mxu0 0
  %1411 = vmatpush2.bf16.msra.mxu0 0
  %1412 = vmatprep.mubr.bf16.mxu0 0
  %1413 = vmatmul.mubr.bf16.gmra.mxu0 %v1370
  %v1414 = vpop.f32.mrf.mxu0
  %v1415 = vadd.f32 0.0, %v1414
  %v1416 = vpop.f32.mrf.mxu0
  %v1417 = vadd.f32 0.0, %v1416
  %v1418 = vpop.f32.mrf.mxu0
  %v1419 = vpop.f32.mrf.mxu0
  %1420 = vdwg.mxu0
  %1421 = vmatprep.subr.bf16.mxu0 %v628
  %1422 = vmatpush1.bf16.msra.mxu0 %v627
  %1423 = vmatprep.subr.bf16.mxu0 %v624
  %1424 = vmatpush1.bf16.msra.mxu0 %v623
  %1425 = vmatprep.subr.bf16.mxu0 %v620
  %1426 = vmatpush1.bf16.msra.mxu0 %v619
  %1427 = vmatprep.subr.bf16.mxu0 %v616
  %1428 = vmatpush1.bf16.msra.mxu0 %v615
  %1429 = vmatprep.subr.bf16.mxu0 %v612
  %1430 = vmatpush1.bf16.msra.mxu0 %v611
  %1431 = vmatprep.subr.bf16.mxu0 %v608
  %1432 = vmatpush1.bf16.msra.mxu0 %v607
  %1433 = vmatprep.subr.bf16.mxu0 %v604
  %1434 = vmatpush1.bf16.msra.mxu0 %v603
  %1435 = vmatprep.subr.bf16.mxu0 %v600
  %1436 = vmatpush1.bf16.msra.mxu0 %v599
  %1437 = vmatprep.subr.bf16.mxu0 0
  %1438 = vmatpush2.bf16.msra.mxu0 0
  %1439 = vmatprep.subr.bf16.mxu0 0
  %1440 = vmatpush2.bf16.msra.mxu0 0
  %1441 = vmatprep.subr.bf16.mxu0 0
  %1442 = vmatpush2.bf16.msra.mxu0 0
  %1443 = vmatprep.subr.bf16.mxu0 0
  %1444 = vmatpush2.bf16.msra.mxu0 0
  %1445 = vmatprep.subr.bf16.mxu0 0
  %1446 = vmatpush2.bf16.msra.mxu0 0
  %1447 = vmatprep.subr.bf16.mxu0 0
  %1448 = vmatpush2.bf16.msra.mxu0 0
  %1449 = vmatprep.subr.bf16.mxu0 0
  %1450 = vmatpush2.bf16.msra.mxu0 0
  %1451 = vmatprep.subr.bf16.mxu0 0
  %1452 = vmatpush2.bf16.msra.mxu0 0
  %1453 = vmatprep.mubr.bf16.mxu0 0
  %1454 = vmatmul.mubr.bf16.gmra.mxu0 %v1370
  %v1455 = vpop.f32.mrf.mxu0
  %v1456 = vadd.f32 0.0, %v1455
  %v1457 = vpop.f32.mrf.mxu0
  %v1458 = vadd.f32 0.0, %v1457
  %v1459 = vpop.f32.mrf.mxu0
  %v1460 = vpop.f32.mrf.mxu0
  %1461 = vdwg.mxu0
  %v1462 = vadd.f32 %v1376, %v1415
  %v1463 = vadd.f32 %v1377, %v1417
  %v1464 = vadd.f32 %v1378, %v1456
  %v1465 = vadd.f32 %v1379, %v1458
  %v1466 = vxor.u32 %v1462, 2147483648
  %v1467 = vmul.f32 %v1466, 1.442695
  %v1468 = vpow.pop %v1467
  %v1469 = vadd.f32 %v1468, 1.0
  %v1470 = vrcp.pop %v1469
  %v1471 = vmul.f32 1.0, %v1470
  %v1472 = vxor.u32 %v1463, 2147483648
  %v1473 = vmul.f32 %v1472, 1.442695
  %v1474 = vpow.pop %v1473
  %v1475 = vadd.f32 %v1474, 1.0
  %v1476 = vrcp.pop %v1475
  %v1477 = vmul.f32 1.0, %v1476
  %v1478 = vtanh.pop %v1464
  %v1479 = vxor.u32 %v1465, 2147483648
  %v1480 = vmul.f32 %v1479, 1.442695
  %v1481 = vpow.pop %v1480
  %v1482 = vadd.f32 %v1481, 1.0
  %v1483 = vrcp.pop %v1482
  %v1484 = vmul.f32 1.0, %v1483
  %v1485 = vmul.f32 %v1477, %v1367
  %v1486 = vmul.f32 %v1471, %v1478
  %v1487 = vadd.f32 %v1485, %v1486
  %v1488 = vtanh.pop %v1487
  %v1489 = vmul.f32 %v1484, %v1488
  %v1490 = vpack.c.bf16 %v1489, %v1489
  %s1491 = scalar_lea.vmem %s6, 24
  %1492 = vst [vmem:[%s1491] sm:$0xf] %v1490
  %s1493 = smul.u32 7, 4
  %s1494 = smul.addr %s1493, 8
  %s1495 = scalar_lea.vmem [#allocation2], %s1494
  %v1496 = vld [vmem:[%s1495] sm:$0xff]
  %v1497 = vld [vmem:[%s1495 + $0x8] sm:$0xff]
  %v1498 = vld [vmem:[%s1495 + $0x10] sm:$0xff]
  %v1499 = vld [vmem:[%s1495 + $0x18] sm:$0xff]
  %1500 = vmatprep.subr.bf16.mxu0 %v626
  %1501 = vmatpush1.bf16.msra.mxu0 %v625
  %1502 = vmatprep.subr.bf16.mxu0 %v622
  %1503 = vmatpush1.bf16.msra.mxu0 %v621
  %1504 = vmatprep.subr.bf16.mxu0 %v618
  %1505 = vmatpush1.bf16.msra.mxu0 %v617
  %1506 = vmatprep.subr.bf16.mxu0 %v614
  %1507 = vmatpush1.bf16.msra.mxu0 %v613
  %1508 = vmatprep.subr.bf16.mxu0 %v610
  %1509 = vmatpush1.bf16.msra.mxu0 %v609
  %1510 = vmatprep.subr.bf16.mxu0 %v606
  %1511 = vmatpush1.bf16.msra.mxu0 %v605
  %1512 = vmatprep.subr.bf16.mxu0 %v602
  %1513 = vmatpush1.bf16.msra.mxu0 %v601
  %1514 = vmatprep.subr.bf16.mxu0 %v598
  %1515 = vmatpush1.bf16.msra.mxu0 %v597
  %1516 = vmatprep.subr.bf16.mxu0 0
  %1517 = vmatpush2.bf16.msra.mxu0 0
  %1518 = vmatprep.subr.bf16.mxu0 0
  %1519 = vmatpush2.bf16.msra.mxu0 0
  %1520 = vmatprep.subr.bf16.mxu0 0
  %1521 = vmatpush2.bf16.msra.mxu0 0
  %1522 = vmatprep.subr.bf16.mxu0 0
  %1523 = vmatpush2.bf16.msra.mxu0 0
  %1524 = vmatprep.subr.bf16.mxu0 0
  %1525 = vmatpush2.bf16.msra.mxu0 0
  %1526 = vmatprep.subr.bf16.mxu0 0
  %1527 = vmatpush2.bf16.msra.mxu0 0
  %1528 = vmatprep.subr.bf16.mxu0 0
  %1529 = vmatpush2.bf16.msra.mxu0 0
  %1530 = vmatprep.subr.bf16.mxu0 0
  %1531 = vmatpush2.bf16.msra.mxu0 0
  %1532 = vmatprep.mubr.bf16.mxu0 0
  %1533 = vmatmul.mubr.bf16.gmra.mxu0 %v1490
  %v1534 = vpop.f32.mrf.mxu0
  %v1535 = vadd.f32 0.0, %v1534
  %v1536 = vpop.f32.mrf.mxu0
  %v1537 = vadd.f32 0.0, %v1536
  %v1538 = vpop.f32.mrf.mxu0
  %v1539 = vpop.f32.mrf.mxu0
  %1540 = vdwg.mxu0
  %1541 = vmatprep.subr.bf16.mxu0 %v628
  %1542 = vmatpush1.bf16.msra.mxu0 %v627
  %1543 = vmatprep.subr.bf16.mxu0 %v624
  %1544 = vmatpush1.bf16.msra.mxu0 %v623
  %1545 = vmatprep.subr.bf16.mxu0 %v620
  %1546 = vmatpush1.bf16.msra.mxu0 %v619
  %1547 = vmatprep.subr.bf16.mxu0 %v616
  %1548 = vmatpush1.bf16.msra.mxu0 %v615
  %1549 = vmatprep.subr.bf16.mxu0 %v612
  %1550 = vmatpush1.bf16.msra.mxu0 %v611
  %1551 = vmatprep.subr.bf16.mxu0 %v608
  %1552 = vmatpush1.bf16.msra.mxu0 %v607
  %1553 = vmatprep.subr.bf16.mxu0 %v604
  %1554 = vmatpush1.bf16.msra.mxu0 %v603
  %1555 = vmatprep.subr.bf16.mxu0 %v600
  %1556 = vmatpush1.bf16.msra.mxu0 %v599
  %1557 = vmatprep.subr.bf16.mxu0 0
  %1558 = vmatpush2.bf16.msra.mxu0 0
  %1559 = vmatprep.subr.bf16.mxu0 0
  %1560 = vmatpush2.bf16.msra.mxu0 0
  %1561 = vmatprep.subr.bf16.mxu0 0
  %1562 = vmatpush2.bf16.msra.mxu0 0
  %1563 = vmatprep.subr.bf16.mxu0 0
  %1564 = vmatpush2.bf16.msra.mxu0 0
  %1565 = vmatprep.subr.bf16.mxu0 0
  %1566 = vmatpush2.bf16.msra.mxu0 0
  %1567 = vmatprep.subr.bf16.mxu0 0
  %1568 = vmatpush2.bf16.msra.mxu0 0
  %1569 = vmatprep.subr.bf16.mxu0 0
  %1570 = vmatpush2.bf16.msra.mxu0 0
  %1571 = vmatprep.subr.bf16.mxu0 0
  %1572 = vmatpush2.bf16.msra.mxu0 0
  %1573 = vmatprep.mubr.bf16.mxu0 0
  %1574 = vmatmul.mubr.bf16.gmra.mxu0 %v1490
  %v1575 = vpop.f32.mrf.mxu0
  %v1576 = vadd.f32 0.0, %v1575
  %v1577 = vpop.f32.mrf.mxu0
  %v1578 = vadd.f32 0.0, %v1577
  %v1579 = vpop.f32.mrf.mxu0
  %v1580 = vpop.f32.mrf.mxu0
  %1581 = vdwg.mxu0
  %v1582 = vadd.f32 %v1496, %v1535
  %v1583 = vadd.f32 %v1497, %v1537
  %v1584 = vadd.f32 %v1498, %v1576
  %v1585 = vadd.f32 %v1499, %v1578
  %v1586 = vxor.u32 %v1582, 2147483648
  %v1587 = vmul.f32 %v1586, 1.442695
  %v1588 = vpow.pop %v1587
  %v1589 = vadd.f32 %v1588, 1.0
  %v1590 = vrcp.pop %v1589
  %v1591 = vmul.f32 1.0, %v1590
  %v1592 = vxor.u32 %v1583, 2147483648
  %v1593 = vmul.f32 %v1592, 1.442695
  %v1594 = vpow.pop %v1593
  %v1595 = vadd.f32 %v1594, 1.0
  %v1596 = vrcp.pop %v1595
  %v1597 = vmul.f32 1.0, %v1596
  %v1598 = vtanh.pop %v1584
  %v1599 = vxor.u32 %v1585, 2147483648
  %v1600 = vmul.f32 %v1599, 1.442695
  %v1601 = vpow.pop %v1600
  %v1602 = vadd.f32 %v1601, 1.0
  %v1603 = vrcp.pop %v1602
  %v1604 = vmul.f32 1.0, %v1603
  %v1605 = vmul.f32 %v1597, %v1487
  %v1606 = vmul.f32 %v1591, %v1598
  %v1607 = vadd.f32 %v1605, %v1606
  %v1608 = vtanh.pop %v1607
  %v1609 = vmul.f32 %v1604, %v1608
  %v1610 = vpack.c.bf16 %v1609, %v1609
  %s1611 = scalar_lea.vmem %s6, 28
  %1612 = vst [vmem:[%s1611] sm:$0xf] %v1610
  %1613 = vst [vmem:[%s7] sm:$0xff] %v1609
  %1614 = vst [vmem:[%s8] sm:$0xff] %v1607
  // Predicated region
  $region30: #{rnn_model_forward.4} parent=0 // pred_check
    _
  $region31: #{rnn_model_forward.4} parent=0 // pred_check_branch
    %1616 = sbr.rel (0) target = $region33
  $region32: #{rnn_model_forward.4} parent=0 // pred_region
    _
  $region33: #{rnn_model_forward.4} parent=0 // pred_fallthru
    _
  // Predicated region
  $region34: #{rnn_model_forward.4} parent=0 // pred_check
    _
  $region35: #{rnn_model_forward.4} parent=0 // pred_check_branch
    %1618 = sbr.rel (0) target = $region37
  $region36: #{rnn_model_forward.4} parent=0 // pred_region
    _
  $region37: #{rnn_model_forward.4} parent=0 // pred_fallthru
    _
  // Predicated region
  $region38: #{rnn_model_forward.4} parent=0 // pred_check
    _
  $region39: #{rnn_model_forward.4} parent=0 // pred_check_branch
    %1620 = sbr.rel (0) target = $region41
  $region40: #{rnn_model_forward.4} parent=0 // pred_region
    _
  $region41: #{rnn_model_forward.4} parent=0 // pred_fallthru
    _
  // Predicated region
  $region42: #{rnn_model_forward.4} parent=0 // pred_check
    _
  $region43: #{rnn_model_forward.4} parent=0 // pred_check_branch
    %1622 = sbr.rel (0) target = $region45
  $region44: #{rnn_model_forward.4} parent=0 // pred_region
    _
  $region45: #{rnn_model_forward.4} parent=0 // pred_fallthru
    _
  // Predicated region
  $region46: #{rnn_model_forward.4} parent=0 // pred_check
    _
  $region47: #{rnn_model_forward.4} parent=0 // pred_check_branch
    %1624 = sbr.rel (0) target = $region49
  $region48: #{rnn_model_forward.4} parent=0 // pred_region
    _
  $region49: #{rnn_model_forward.4} parent=0 // pred_fallthru
    _
  // Predicated region
  $region50: #{rnn_model_forward.4} parent=0 // pred_check
    _
  $region51: #{rnn_model_forward.4} parent=0 // pred_check_branch
    %1626 = sbr.rel (0) target = $region53
  $region52: #{rnn_model_forward.4} parent=0 // pred_region
    _
  $region53: #{rnn_model_forward.4} parent=0 // pred_fallthru
    _

</llo_original>
